<compile_context>
chip_gen: v6e
topology: v6e:2x2x1
jax: 0.10.0
libtpu: 0.0.40
codegen_flags: <defaults>
</compile_context>

<pallas_src>
import numpy as np
import jax
import jax.numpy as jnp
from jax.experimental import pallas as pl
from jax.experimental.pallas import tpu as pltpu


LATENT_PAD = 128  # latent_dim (100) zero-padded up to a lane-dense 128


def _round_up(x, m):
    return (x + m - 1) // m * m


def _choose_tm(B):
    # Multiple of 16 (bf16 sublane tile); aim for >= 2 grid steps; cap at 512 so
    # the tile fits every generation's default scoped VMEM (incl. v5e's 16 MiB).
    if B <= 32:
        return 16
    return min(512, _round_up((B + 1) // 2, 16))


def autoencoder_kernel(x_ref,
                       w1_ref, b1_ref,   # encoder: input_dim -> 128
                       w2_ref, b2_ref,   # encoder: 128 -> LATENT_PAD (zero-padded cols)
                       w3_ref, b3_ref,   # decoder: LATENT_PAD -> 128 (zero-padded rows)
                       w4_ref, b4_ref,   # decoder: 128 -> 512
                       w5_ref, b5_ref,   # decoder: 512 -> input_dim
                       recon_ref, z_ref):
    # bf16 operands (x already streamed in bf16), f32 accumulation on the MXU.
    x = x_ref[...]

    # ---- encoder ----
    h1 = jnp.dot(x, w1_ref[...], preferred_element_type=jnp.float32) + b1_ref[...]
    h1 = jnp.maximum(h1, 0.0).astype(jnp.bfloat16)                      # ReLU
    z = jnp.dot(h1, w2_ref[...], preferred_element_type=jnp.float32) + b2_ref[...]
    z_ref[...] = z                                                      # lane-dense (TM,128) store

    # ---- decoder ----
    d1 = jnp.dot(z.astype(jnp.bfloat16), w3_ref[...],
                 preferred_element_type=jnp.float32) + b3_ref[...]
    d1 = jnp.maximum(d1, 0.0).astype(jnp.bfloat16)                      # ReLU
    d2 = jnp.dot(d1, w4_ref[...], preferred_element_type=jnp.float32) + b4_ref[...]
    d2 = jnp.maximum(d2, 0.0).astype(jnp.bfloat16)                      # ReLU
    logits = jnp.dot(d2, w5_ref[...], preferred_element_type=jnp.float32) + b5_ref[...]
    # Sigmoid: exp + approx reciprocal -> rides the EUP slot. Clamp so
    # exp(-logits) stays finite (sigmoid(-30) ~ 9e-14, below any tolerance).
    safe = jnp.maximum(logits, -30.0)
    recon_ref[...] = pl.reciprocal(1.0 + jnp.exp(-safe), approx=True)


def prepare_params(params):
    """One-time prep: pad latent dim to LATENT_PAD, cast weights to bf16.

    `params` holds f32 weights w_i of shape (in, out) (transpose of nn.Linear)
    and biases b_i of shape (1, out). Padded cols/rows are zero, so the padded
    matmul is exact.
    """
    latent_dim = params["w2"].shape[1]
    assert latent_dim <= LATENT_PAD
    pad = LATENT_PAD - latent_dim
    prep = {
        "latent_dim": latent_dim,
        "w1": params["w1"].astype(jnp.bfloat16),
        "b1": params["b1"].astype(jnp.float32),
        "w2": jnp.pad(params["w2"], ((0, 0), (0, pad))).astype(jnp.bfloat16),
        "b2": jnp.pad(params["b2"], ((0, 0), (0, pad))).astype(jnp.float32),
        "w3": jnp.pad(params["w3"], ((0, pad), (0, 0))).astype(jnp.bfloat16),
        "b3": params["b3"].astype(jnp.float32),
        "w4": params["w4"].astype(jnp.bfloat16),
        "b4": params["b4"].astype(jnp.float32),
        "w5": params["w5"].astype(jnp.bfloat16),
        "b5": params["b5"].astype(jnp.float32),
    }
    return jax.tree_util.tree_map(jnp.asarray, prep)


def autoencoder_forward(x, prep):
    """x: [B, C, H, W] float32; prep: output of prepare_params()."""
    B = x.shape[0]
    input_dim = int(np.prod(x.shape[1:]))
    latent_dim = prep["latent_dim"]

    # nn.Flatten (row-major) + bf16 cast fused into one wrapper-side op.
    x2d = x.reshape(B, input_dim).astype(jnp.bfloat16)

    # --- batch tiling: TM rows per grid step, padded with zero rows ---
    TM = _choose_tm(B)
    B_pad = _round_up(B, TM)
    if B_pad // TM < 2:
        B_pad = 2 * TM          # >= 2 grid steps so both v7x TensorCores get work
    if B_pad != B:
        x2d = jnp.pad(x2d, ((0, B_pad - B), (0, 0)))
    grid = (B_pad // TM,)

    w1, b1 = prep["w1"], prep["b1"]
    w2, b2 = prep["w2"], prep["b2"]
    w3, b3 = prep["w3"], prep["b3"]
    w4, b4 = prep["w4"], prep["b4"]
    w5, b5 = prep["w5"], prep["b5"]

    def resident(arr):
        # Same block index every grid step -> fetched once, stays in VMEM.
        # Single-buffered: nothing to prefetch, halves the weight VMEM footprint.
        return pl.BlockSpec(arr.shape, lambda i: (0, 0),
                            pipeline_mode=pl.Buffered(1))

    in_specs = [pl.BlockSpec((TM, input_dim), lambda i: (i, 0)),
                resident(w1), resident(b1),
                resident(w2), resident(b2),
                resident(w3), resident(b3),
                resident(w4), resident(b4),
                resident(w5), resident(b5)]
    out_specs = (pl.BlockSpec((TM, input_dim), lambda i: (i, 0)),
                 pl.BlockSpec((TM, LATENT_PAD), lambda i: (i, 0)))

    # Advisory cost estimate for XLA's scheduler.
    matmul_macs = (input_dim * 128 + 128 * LATENT_PAD + LATENT_PAD * 128
                   + 128 * 512 + 512 * input_dim)
    weight_bytes = 2 * matmul_macs + 4 * (128 + LATENT_PAD + 128 + 512 + input_dim)
    cost = pl.CostEstimate(
        flops=2 * B_pad * matmul_macs,
        transcendentals=2 * B_pad * input_dim,          # exp + rcp per output elem
        bytes_accessed=(B_pad * input_dim * 2           # x (bf16 in)
                        + B_pad * input_dim * 4         # recon (f32 out)
                        + B_pad * LATENT_PAD * 4        # z (f32 out)
                        + weight_bytes))

    recon_p, z_p = pl.pallas_call(
        autoencoder_kernel,
        out_shape=(jax.ShapeDtypeStruct((B_pad, input_dim), jnp.float32),
                   jax.ShapeDtypeStruct((B_pad, LATENT_PAD), jnp.float32)),
        grid=grid,
        in_specs=in_specs,
        out_specs=out_specs,
        compiler_params=pltpu.CompilerParams(
            dimension_semantics=("parallel",)),
        cost_estimate=cost,
    )(x2d, w1, b1, w2, b2, w3, b3, w4, b4, w5, b5)

    # Slice away batch padding and the latent padding.
    return recon_p[:B], z_p[:B, :latent_dim]


def init_params(key, input_dim, latent_dim=100):
    """Deterministic init. Weights stored as (in_features, out_features) (transpose of nn.Linear)."""
    dims = [(input_dim, 128), (128, latent_dim),              # encoder
            (latent_dim, 128), (128, 512), (512, input_dim)]  # decoder
    params = {}
    for i, (din, dout) in enumerate(dims, start=1):
        key, kw, kb = jax.random.split(key, 3)
        bound = 1.0 / np.sqrt(din)  # mimic nn.Linear default uniform init
        params[f"w{i}"] = jax.random.uniform(kw, (din, dout), jnp.float32, -bound, bound)
        params[f"b{i}"] = jax.random.uniform(kb, (1, dout), jnp.float32, -bound, bound)
    return params


def reference_forward(x, params):
    """Pure-JAX reference using the same bf16-operand / f32-accumulation math."""
    B = x.shape[0]

    def bdot(a, w):
        return jnp.dot(a.astype(jnp.bfloat16), w.astype(jnp.bfloat16),
                       preferred_element_type=jnp.float32)

    h = x.reshape(B, -1)
    h1 = jnp.maximum(bdot(h, params["w1"]) + params["b1"], 0.0)
    z = bdot(h1, params["w2"]) + params["b2"]
    d1 = jnp.maximum(bdot(z, params["w3"]) + params["b3"], 0.0)
    d2 = jnp.maximum(bdot(d1, params["w4"]) + params["b4"], 0.0)
    recon = jax.nn.sigmoid(bdot(d2, params["w5"]) + params["b5"])
    return recon, z


if __name__ == "__main__":
    key = jax.random.PRNGKey(0)
    kx, kp = jax.random.split(key)

    B, C, H, W = 2, 4, 16, 16           # input_dim = 1024
    input_dim = C * H * W
    latent_dim = 100

    x = jax.random.normal(kx, (B, C, H, W), dtype=jnp.float32)
    params = init_params(kp, input_dim, latent_dim)
    prep = prepare_params(params)       # one-time pad/cast, hoisted out of forward

    recon, z = autoencoder_forward(x, prep)
    recon = jax.block_until_ready(recon)
    z = jax.block_until_ready(z)

    recon_ref, z_ref = reference_forward(x, params)
    np.testing.assert_allclose(np.asarray(z), np.asarray(z_ref), rtol=2e-3, atol=2e-3)
    np.testing.assert_allclose(np.asarray(recon), np.asarray(recon_ref), rtol=2e-3, atol=2e-3)

    assert recon.shape == (B, input_dim) and z.shape == (B, latent_dim)
    print("KERNEL_OK")
</pallas_src>

<mosaic_0001>
module attributes {stable_mosaic.version = 11 : i64} {
  func.func @autoencoder_kernel(%arg0: i32, %arg1: memref<16x1024xbf16, #tpu.memory_space<vmem>>, %arg2: memref<1024x128xbf16, #tpu.memory_space<vmem>>, %arg3: memref<1x128xf32, #tpu.memory_space<vmem>>, %arg4: memref<128x128xbf16, #tpu.memory_space<vmem>>, %arg5: memref<1x128xf32, #tpu.memory_space<vmem>>, %arg6: memref<128x128xbf16, #tpu.memory_space<vmem>>, %arg7: memref<1x128xf32, #tpu.memory_space<vmem>>, %arg8: memref<128x512xbf16, #tpu.memory_space<vmem>>, %arg9: memref<1x512xf32, #tpu.memory_space<vmem>>, %arg10: memref<512x1024xbf16, #tpu.memory_space<vmem>>, %arg11: memref<1x1024xf32, #tpu.memory_space<vmem>>, %arg12: memref<16x1024xf32, #tpu.memory_space<vmem>>, %arg13: memref<16x128xf32, #tpu.memory_space<vmem>>) attributes {dimension_semantics = [#tpu.dimension_semantics<parallel>], iteration_bounds = array<i64: 2>, scalar_prefetch = 0 : i64, scratch_operands = 0 : i64, tpu.core_type = #tpu.core_type<tc>, window_params = [{transform_indices = @transform_0, window_bounds = array<i64: 16, 1024>}, {pipeline_mode = #tpu.pipeline_mode<synchronous>, transform_indices = @transform_1, window_bounds = array<i64: 1024, 128>}, {pipeline_mode = #tpu.pipeline_mode<synchronous>, transform_indices = @transform_2, window_bounds = array<i64: 1, 128>}, {pipeline_mode = #tpu.pipeline_mode<synchronous>, transform_indices = @transform_3, window_bounds = array<i64: 128, 128>}, {pipeline_mode = #tpu.pipeline_mode<synchronous>, transform_indices = @transform_4, window_bounds = array<i64: 1, 128>}, {pipeline_mode = #tpu.pipeline_mode<synchronous>, transform_indices = @transform_5, window_bounds = array<i64: 128, 128>}, {pipeline_mode = #tpu.pipeline_mode<synchronous>, transform_indices = @transform_6, window_bounds = array<i64: 1, 128>}, {pipeline_mode = #tpu.pipeline_mode<synchronous>, transform_indices = @transform_7, window_bounds = array<i64: 128, 512>}, {pipeline_mode = #tpu.pipeline_mode<synchronous>, transform_indices = @transform_8, window_bounds = array<i64: 1, 512>}, {pipeline_mode = #tpu.pipeline_mode<synchronous>, transform_indices = @transform_9, window_bounds = array<i64: 512, 1024>}, {pipeline_mode = #tpu.pipeline_mode<synchronous>, transform_indices = @transform_10, window_bounds = array<i64: 1, 1024>}, {transform_indices = @transform_11, window_bounds = array<i64: 16, 1024>}, {transform_indices = @transform_12, window_bounds = array<i64: 16, 128>}]} {
    %c0 = arith.constant 0 : index
    %c0_0 = arith.constant 0 : index
    %0 = vector.load %arg1[%c0, %c0_0] : memref<16x1024xbf16, #tpu.memory_space<vmem>>, vector<16x1024xbf16>
    %c0_1 = arith.constant 0 : index
    %c0_2 = arith.constant 0 : index
    %1 = vector.load %arg2[%c0_1, %c0_2] : memref<1024x128xbf16, #tpu.memory_space<vmem>>, vector<1024x128xbf16>
    %cst = arith.constant dense<0.000000e+00> : vector<16x128xf32>
    %2 = tpu.matmul %0, %1, %cst {dimension_numbers = #tpu.dot_dimension_numbers<[1], [0], [0], [1], [0, 0, 1, 1], [], []>} : vector<16x1024xbf16>, vector<1024x128xbf16>, vector<16x128xf32> -> vector<16x128xf32>
    %c0_3 = arith.constant 0 : index
    %c0_4 = arith.constant 0 : index
    %3 = vector.load %arg3[%c0_3, %c0_4] : memref<1x128xf32, #tpu.memory_space<vmem>>, vector<1x128xf32>
    %4 = vector.broadcast %3 : vector<1x128xf32> to vector<16x128xf32>
    %5 = arith.addf %2, %4 : vector<16x128xf32>
    %cst_5 = arith.constant 0.000000e+00 : f32
    %6 = vector.broadcast %cst_5 : f32 to vector<16x128xf32>
    %7 = arith.maximumf %5, %6 : vector<16x128xf32>
    %8 = arith.truncf %7 : vector<16x128xf32> to vector<16x128xbf16>
    %c0_6 = arith.constant 0 : index
    %c0_7 = arith.constant 0 : index
    %9 = vector.load %arg4[%c0_6, %c0_7] : memref<128x128xbf16, #tpu.memory_space<vmem>>, vector<128x128xbf16>
    %cst_8 = arith.constant dense<0.000000e+00> : vector<16x128xf32>
    %10 = tpu.matmul %8, %9, %cst_8 {dimension_numbers = #tpu.dot_dimension_numbers<[1], [0], [0], [1], [0, 0, 1, 1], [], []>} : vector<16x128xbf16>, vector<128x128xbf16>, vector<16x128xf32> -> vector<16x128xf32>
    %c0_9 = arith.constant 0 : index
    %c0_10 = arith.constant 0 : index
    %11 = vector.load %arg5[%c0_9, %c0_10] : memref<1x128xf32, #tpu.memory_space<vmem>>, vector<1x128xf32>
    %12 = vector.broadcast %11 : vector<1x128xf32> to vector<16x128xf32>
    %13 = arith.addf %10, %12 : vector<16x128xf32>
    %c0_11 = arith.constant 0 : index
    %c0_12 = arith.constant 0 : index
    %14 = vector.load %arg13[%c0_11, %c0_12] : memref<16x128xf32, #tpu.memory_space<vmem>>, vector<16x128xf32>
    tpu.vector_store %arg13[%c0_11, %c0_12], %13 {strides = array<i32>} : memref<16x128xf32, #tpu.memory_space<vmem>>, vector<16x128xf32>,
    %15 = arith.truncf %13 : vector<16x128xf32> to vector<16x128xbf16>
    %c0_13 = arith.constant 0 : index
    %c0_14 = arith.constant 0 : index
    %16 = vector.load %arg6[%c0_13, %c0_14] : memref<128x128xbf16, #tpu.memory_space<vmem>>, vector<128x128xbf16>
    %cst_15 = arith.constant dense<0.000000e+00> : vector<16x128xf32>
    %17 = tpu.matmul %15, %16, %cst_15 {dimension_numbers = #tpu.dot_dimension_numbers<[1], [0], [0], [1], [0, 0, 1, 1], [], []>} : vector<16x128xbf16>, vector<128x128xbf16>, vector<16x128xf32> -> vector<16x128xf32>
    %c0_16 = arith.constant 0 : index
    %c0_17 = arith.constant 0 : index
    %18 = vector.load %arg7[%c0_16, %c0_17] : memref<1x128xf32, #tpu.memory_space<vmem>>, vector<1x128xf32>
    %19 = vector.broadcast %18 : vector<1x128xf32> to vector<16x128xf32>
    %20 = arith.addf %17, %19 : vector<16x128xf32>
    %cst_18 = arith.constant 0.000000e+00 : f32
    %21 = vector.broadcast %cst_18 : f32 to vector<16x128xf32>
    %22 = arith.maximumf %20, %21 : vector<16x128xf32>
    %23 = arith.truncf %22 : vector<16x128xf32> to vector<16x128xbf16>
    %c0_19 = arith.constant 0 : index
    %c0_20 = arith.constant 0 : index
    %24 = vector.load %arg8[%c0_19, %c0_20] : memref<128x512xbf16, #tpu.memory_space<vmem>>, vector<128x512xbf16>
    %cst_21 = arith.constant dense<0.000000e+00> : vector<16x512xf32>
    %25 = tpu.matmul %23, %24, %cst_21 {dimension_numbers = #tpu.dot_dimension_numbers<[1], [0], [0], [1], [0, 0, 1, 1], [], []>} : vector<16x128xbf16>, vector<128x512xbf16>, vector<16x512xf32> -> vector<16x512xf32>
    %c0_22 = arith.constant 0 : index
    %c0_23 = arith.constant 0 : index
    %26 = vector.load %arg9[%c0_22, %c0_23] : memref<1x512xf32, #tpu.memory_space<vmem>>, vector<1x512xf32>
    %27 = vector.broadcast %26 : vector<1x512xf32> to vector<16x512xf32>
    %28 = arith.addf %25, %27 : vector<16x512xf32>
    %cst_24 = arith.constant 0.000000e+00 : f32
    %29 = vector.broadcast %cst_24 : f32 to vector<16x512xf32>
    %30 = arith.maximumf %28, %29 : vector<16x512xf32>
    %31 = arith.truncf %30 : vector<16x512xf32> to vector<16x512xbf16>
    %c0_25 = arith.constant 0 : index
    %c0_26 = arith.constant 0 : index
    %32 = vector.load %arg10[%c0_25, %c0_26] : memref<512x1024xbf16, #tpu.memory_space<vmem>>, vector<512x1024xbf16>
    %cst_27 = arith.constant dense<0.000000e+00> : vector<16x1024xf32>
    %33 = tpu.matmul %31, %32, %cst_27 {dimension_numbers = #tpu.dot_dimension_numbers<[1], [0], [0], [1], [0, 0, 1, 1], [], []>} : vector<16x512xbf16>, vector<512x1024xbf16>, vector<16x1024xf32> -> vector<16x1024xf32>
    %c0_28 = arith.constant 0 : index
    %c0_29 = arith.constant 0 : index
    %34 = vector.load %arg11[%c0_28, %c0_29] : memref<1x1024xf32, #tpu.memory_space<vmem>>, vector<1x1024xf32>
    %35 = vector.broadcast %34 : vector<1x1024xf32> to vector<16x1024xf32>
    %36 = arith.addf %33, %35 : vector<16x1024xf32>
    %cst_30 = arith.constant -3.000000e+01 : f32
    %37 = vector.broadcast %cst_30 : f32 to vector<16x1024xf32>
    %38 = arith.maximumf %36, %37 : vector<16x1024xf32>
    %cst_31 = arith.constant 0.000000e+00 : f32
    %39 = vector.broadcast %cst_31 : f32 to vector<16x1024xf32>
    %40 = arith.subf %39, %38 : vector<16x1024xf32>
    %41 = math.exp %40 : vector<16x1024xf32>
    %cst_32 = arith.constant 1.000000e+00 : f32
    %42 = vector.broadcast %cst_32 : f32 to vector<16x1024xf32>
    %43 = arith.addf %42, %41 : vector<16x1024xf32>
    %44 = tpu.reciprocal %43 {approx = true} : vector<16x1024xf32> -> vector<16x1024xf32>
    %c0_33 = arith.constant 0 : index
    %c0_34 = arith.constant 0 : index
    %45 = vector.load %arg12[%c0_33, %c0_34] : memref<16x1024xf32, #tpu.memory_space<vmem>>, vector<16x1024xf32>
    tpu.vector_store %arg12[%c0_33, %c0_34], %44 {strides = array<i32>} : memref<16x1024xf32, #tpu.memory_space<vmem>>, vector<16x1024xf32>,
    return
  }
  func.func @transform_0(%arg0: i32) -> (i32, i32) {
    %c0_i32 = arith.constant 0 : i32
    %c0_i32_0 = arith.constant 0 : i32
    return %arg0, %c0_i32 : i32, i32
  }
  func.func @transform_1(%arg0: i32) -> (i32, i32) {
    %c0_i32 = arith.constant 0 : i32
    %c0_i32_0 = arith.constant 0 : i32
    %c0_i32_1 = arith.constant 0 : i32
    return %c0_i32, %c0_i32_0 : i32, i32
  }
  func.func @transform_2(%arg0: i32) -> (i32, i32) {
    %c0_i32 = arith.constant 0 : i32
    %c0_i32_0 = arith.constant 0 : i32
    %c0_i32_1 = arith.constant 0 : i32
    return %c0_i32, %c0_i32_0 : i32, i32
  }
  func.func @transform_3(%arg0: i32) -> (i32, i32) {
    %c0_i32 = arith.constant 0 : i32
    %c0_i32_0 = arith.constant 0 : i32
    %c0_i32_1 = arith.constant 0 : i32
    return %c0_i32, %c0_i32_0 : i32, i32
  }
  func.func @transform_4(%arg0: i32) -> (i32, i32) {
    %c0_i32 = arith.constant 0 : i32
    %c0_i32_0 = arith.constant 0 : i32
    %c0_i32_1 = arith.constant 0 : i32
    return %c0_i32, %c0_i32_0 : i32, i32
  }
  func.func @transform_5(%arg0: i32) -> (i32, i32) {
    %c0_i32 = arith.constant 0 : i32
    %c0_i32_0 = arith.constant 0 : i32
    %c0_i32_1 = arith.constant 0 : i32
    return %c0_i32, %c0_i32_0 : i32, i32
  }
  func.func @transform_6(%arg0: i32) -> (i32, i32) {
    %c0_i32 = arith.constant 0 : i32
    %c0_i32_0 = arith.constant 0 : i32
    %c0_i32_1 = arith.constant 0 : i32
    return %c0_i32, %c0_i32_0 : i32, i32
  }
  func.func @transform_7(%arg0: i32) -> (i32, i32) {
    %c0_i32 = arith.constant 0 : i32
    %c0_i32_0 = arith.constant 0 : i32
    %c0_i32_1 = arith.constant 0 : i32
    return %c0_i32, %c0_i32_0 : i32, i32
  }
  func.func @transform_8(%arg0: i32) -> (i32, i32) {
    %c0_i32 = arith.constant 0 : i32
    %c0_i32_0 = arith.constant 0 : i32
    %c0_i32_1 = arith.constant 0 : i32
    return %c0_i32, %c0_i32_0 : i32, i32
  }
  func.func @transform_9(%arg0: i32) -> (i32, i32) {
    %c0_i32 = arith.constant 0 : i32
    %c0_i32_0 = arith.constant 0 : i32
    %c0_i32_1 = arith.constant 0 : i32
    return %c0_i32, %c0_i32_0 : i32, i32
  }
  func.func @transform_10(%arg0: i32) -> (i32, i32) {
    %c0_i32 = arith.constant 0 : i32
    %c0_i32_0 = arith.constant 0 : i32
    %c0_i32_1 = arith.constant 0 : i32
    return %c0_i32, %c0_i32_0 : i32, i32
  }
  func.func @transform_11(%arg0: i32) -> (i32, i32) {
    %c0_i32 = arith.constant 0 : i32
    %c0_i32_0 = arith.constant 0 : i32
    return %arg0, %c0_i32 : i32, i32
  }
  func.func @transform_12(%arg0: i32) -> (i32, i32) {
    %c0_i32 = arith.constant 0 : i32
    %c0_i32_0 = arith.constant 0 : i32
    return %arg0, %c0_i32 : i32, i32
  }
}

</mosaic_0001>

<llo_original>
// kernel: tpu_custom_call.1
$region0: #{tpu_custom_call.1}
  #allocation0 [shape = 'u32[]', space=smem, size = 0x4, offset = 0x4, fixed_abs, tag = 'smem constant byte address 0x4 - core index']
  #allocation1 [shape = 'u32[144,128]{1,0:T(1,128)}', space=vmem, size = 0x12000, scoped, tag = 'internal scratch']
  %s0 = inlined_call_operand.hbm [shape: bf16[32,1024], index: 0, kind: input, shape index: {}]
  %s1 = inlined_call_operand.hbm [shape: bf16[1024,128], index: 1, kind: input, shape index: {}]
  %s2 = inlined_call_operand.vmem [shape: f32[1,128], index: 2, kind: input, shape index: {}]
  %s3 = inlined_call_operand.hbm [shape: bf16[128,128], index: 3, kind: input, shape index: {}]
  %s4 = inlined_call_operand.vmem [shape: f32[1,128], index: 4, kind: input, shape index: {}]
  %s5 = inlined_call_operand.hbm [shape: bf16[128,128], index: 5, kind: input, shape index: {}]
  %s6 = inlined_call_operand.vmem [shape: f32[1,128], index: 6, kind: input, shape index: {}]
  %s7 = inlined_call_operand.hbm [shape: bf16[128,512], index: 7, kind: input, shape index: {}]
  %s8 = inlined_call_operand.vmem [shape: f32[1,512], index: 8, kind: input, shape index: {}]
  %s9 = inlined_call_operand.hbm [shape: bf16[512,1024], index: 9, kind: input, shape index: {}]
  %s10 = inlined_call_operand.vmem [shape: f32[1,1024], index: 10, kind: input, shape index: {}]
  %s11 = inlined_call_operand.hbm [shape: f32[32,1024], index: 11, kind: output, shape index: {0}]
  %s12 = inlined_call_operand.hbm [shape: f32[32,128], index: 12, kind: output, shape index: {1}]
  %13 = xla_tuple %s11, %s12
  %s14 = sld [smem:[#allocation0]]
  $region109: #{tpu_custom_call.1} parent=0
    _
  %s16 = ssub.s32 1, %s14
  %s17 = scalar_select 0, %s16, %s14
  $region1: #{tpu_custom_call.1} parent=0
    #allocation2 [shape = 'u8[65536]{0}', space=vmem, size = 0x10000, scoped, tag = 'input window, operand 0']
    #allocation3 [shape = 's32[2]{0}', space=sflag, size = 0x8, scoped, tag = 'scoped memory for tpu_custom_call.1']
    #allocation4 [shape = 's32[2]{0}', space=sflag, size = 0x8, scoped, tag = 'scoped memory for tpu_custom_call.1']
    #allocation5 [shape = 'u8[262144]{0}', space=vmem, size = 0x40000, scoped, tag = 'input window, operand 1, single buffered']
    #allocation6 [shape = 's32[1]{0}', space=sflag, size = 0x4, scoped, tag = 'scoped memory for tpu_custom_call.1']
    #allocation7 [shape = 'u8[32768]{0}', space=vmem, size = 0x8000, scoped, tag = 'input window, operand 3, single buffered']
    #allocation8 [shape = 'u8[32768]{0}', space=vmem, size = 0x8000, scoped, tag = 'input window, operand 5, single buffered']
    #allocation9 [shape = 's32[1]{0}', space=sflag, size = 0x4, scoped, tag = 'scoped memory for tpu_custom_call.1']
    #allocation10 [shape = 'u8[131072]{0}', space=vmem, size = 0x20000, scoped, tag = 'input window, operand 7, single buffered']
    #allocation11 [shape = 'u8[1048576]{0}', space=vmem, size = 0x100000, scoped, tag = 'input window, operand 9, single buffered']
    #allocation12 [shape = 's32[1]{0}', space=sflag, size = 0x4, scoped, tag = 'scoped memory for tpu_custom_call.1']
    #allocation13 [shape = 'u8[131072]{0}', space=vmem, size = 0x20000, scoped, tag = 'output window, operand 0']
    #allocation14 [shape = 'u8[16384]{0}', space=vmem, size = 0x4000, scoped, tag = 'output window, operand 1']
    #allocation15 [shape = 's32[2]{0}', space=sflag, size = 0x8, scoped, tag = 'scoped memory for tpu_custom_call.1']
    %18 = vsyncpa [#allocation3], 0
    %s19 = scalar_lea.sflag [#allocation3], 1
    %20 = vsyncpa %s19, 0
    %21 = vsyncpa [#allocation6], 0
    %22 = vsyncpa [#allocation9], 0
    %23 = vsyncpa [#allocation12], 0
    %24 = vsyncpa [#allocation4], 0
    %s25 = scalar_lea.sflag [#allocation4], 1
    %26 = vsyncpa %s25, 0
    %27 = vsyncpa [#allocation15], 0
    %s28 = scalar_lea.sflag [#allocation15], 1
    %29 = vsyncpa %s28, 0
    loop: start=0, step=1, limit=4
    $region2: #{tpu_custom_call.1} parent=1 // loop_pre_header
      _
    $region3: #{tpu_custom_call.1} parent=1 // loop_header
      %s31 = sphi 0, %s35
      %p32 = scmp.ge.s32.totalorder %s31, 4
      %s41 = sphi 0, %s43
      %s44 = sphi 0, %s41
      %s45 = sphi 0, %s44
      %s61 = sphi 0, %s45
      %s65 = sphi 0, %s65
      %s67 = sphi 0, %s65
      %s68 = sphi 0, %s67
      %s82 = sphi 0, %s68
      %s86 = sphi 0, %s86
      %s88 = sphi 0, %s86
      %s89 = sphi 0, %s88
      %s103 = sphi 0, %s89
      %s107 = sphi 0, %s107
      %s109 = sphi 0, %s107
      %s110 = sphi 0, %s109
      %s124 = sphi 0, %s110
      %s128 = sphi 0, %s128
      %s130 = sphi 0, %s128
      %s131 = sphi 0, %s130
      %s145 = sphi 0, %s131
      %s149 = sphi 0, %s149
      %s151 = sphi 0, %s149
      %s152 = sphi 0, %s151
      %s166 = sphi 0, %s152
      %s170 = sphi 0, %s170
      %s172 = sphi 0, %s170
      %s173 = sphi 0, %s172
      %s187 = sphi 0, %s173
      %s191 = sphi 0, %s191
      %s193 = sphi 0, %s191
      %s194 = sphi 0, %s193
      %s208 = sphi 0, %s194
      %s212 = sphi 0, %s212
      %s214 = sphi 0, %s212
      %s215 = sphi 0, %s214
      %s229 = sphi 0, %s215
      %s233 = sphi 0, %s233
      %s235 = sphi 0, %s233
      %s236 = sphi 0, %s235
      %s250 = sphi 0, %s236
      %s254 = sphi 0, %s254
      %s256 = sphi 0, %s254
      %s257 = sphi 0, %s256
      %s271 = sphi 0, %s257
      %s277 = sphi 0, %s279
      %s280 = sphi 0, %s277
      %s281 = sphi 0, %s280
      %s297 = sphi 0, %s281
      %s303 = sphi 0, %s305
      %s306 = sphi 0, %s303
      %s307 = sphi 0, %s306
      %s323 = sphi 0, %s307
    $region4: #{tpu_custom_call.1} parent=1 // loop_header_branch
      %34 = sbr.rel (%p32) target = $region8
    $region5: #{tpu_custom_call.1} parent=1 // loop_body
      %s36 = ssub.s32 %s31, 1
      %s37 = ssub.s32 %s31, 2
      %s38 = sadd.s32 %s31, 1
      %s39 = ssub.s32 %s31, %s38
      %p40 = scmp.eq.s32.totalorder %s39, 0
      %s42 = sadd.s32 %s41, 1
      %s43 = scalar_select %p40, %s41, %s42
      %p46 = pneg %p40
      %p47 = scmp.eq.s32.totalorder %s31, 1
      %p48 = por %p46, %p47
      %p49 = scmp.ne.s32.totalorder %s41, %s44
      %p50 = scmp.eq.s32.totalorder %s31, 0
      %p51 = por %p49, %p50
      %p52 = scmp.ne.s32.totalorder %s41, %s44
      %p53 = scmp.eq.s32.totalorder %s36, 1
      %p54 = por %p52, %p53
      %p55 = scmp.ne.s32.totalorder %s44, %s45
      %p56 = scmp.eq.s32.totalorder %s36, 0
      %p57 = por %p55, %p56
      %p58 = scmp.ne.s32.totalorder %s44, %s45
      %p59 = scmp.eq.s32.totalorder %s37, 1
      %p60 = por %p58, %p59
      %p62 = scmp.ne.s32.totalorder %s45, %s61
      %p63 = scmp.eq.s32.totalorder %s37, 0
      %p64 = por %p62, %p63
      %s66 = sadd.s32 %s65, 1
      %p69 = scmp.eq.s32.totalorder %s31, 1
      %p70 = scmp.ne.s32.totalorder %s65, %s67
      %p71 = scmp.eq.s32.totalorder %s31, 0
      %p72 = por %p70, %p71
      %p73 = scmp.ne.s32.totalorder %s65, %s67
      %p74 = scmp.eq.s32.totalorder %s36, 1
      %p75 = por %p73, %p74
      %p76 = scmp.ne.s32.totalorder %s67, %s68
      %p77 = scmp.eq.s32.totalorder %s36, 0
      %p78 = por %p76, %p77
      %p79 = scmp.ne.s32.totalorder %s67, %s68
      %p80 = scmp.eq.s32.totalorder %s37, 1
      %p81 = por %p79, %p80
      %p83 = scmp.ne.s32.totalorder %s68, %s82
      %p84 = scmp.eq.s32.totalorder %s37, 0
      %p85 = por %p83, %p84
      %s87 = sadd.s32 %s86, 1
      %p90 = scmp.eq.s32.totalorder %s31, 1
      %p91 = scmp.ne.s32.totalorder %s86, %s88
      %p92 = scmp.eq.s32.totalorder %s31, 0
      %p93 = por %p91, %p92
      %p94 = scmp.ne.s32.totalorder %s86, %s88
      %p95 = scmp.eq.s32.totalorder %s36, 1
      %p96 = por %p94, %p95
      %p97 = scmp.ne.s32.totalorder %s88, %s89
      %p98 = scmp.eq.s32.totalorder %s36, 0
      %p99 = por %p97, %p98
      %p100 = scmp.ne.s32.totalorder %s88, %s89
      %p101 = scmp.eq.s32.totalorder %s37, 1
      %p102 = por %p100, %p101
      %p104 = scmp.ne.s32.totalorder %s89, %s103
      %p105 = scmp.eq.s32.totalorder %s37, 0
      %p106 = por %p104, %p105
      %s108 = sadd.s32 %s107, 1
      %p111 = scmp.eq.s32.totalorder %s31, 1
      %p112 = scmp.ne.s32.totalorder %s107, %s109
      %p113 = scmp.eq.s32.totalorder %s31, 0
      %p114 = por %p112, %p113
      %p115 = scmp.ne.s32.totalorder %s107, %s109
      %p116 = scmp.eq.s32.totalorder %s36, 1
      %p117 = por %p115, %p116
      %p118 = scmp.ne.s32.totalorder %s109, %s110
      %p119 = scmp.eq.s32.totalorder %s36, 0
      %p120 = por %p118, %p119
      %p121 = scmp.ne.s32.totalorder %s109, %s110
      %p122 = scmp.eq.s32.totalorder %s37, 1
      %p123 = por %p121, %p122
      %p125 = scmp.ne.s32.totalorder %s110, %s124
      %p126 = scmp.eq.s32.totalorder %s37, 0
      %p127 = por %p125, %p126
      %s129 = sadd.s32 %s128, 1
      %p132 = scmp.eq.s32.totalorder %s31, 1
      %p133 = scmp.ne.s32.totalorder %s128, %s130
      %p134 = scmp.eq.s32.totalorder %s31, 0
      %p135 = por %p133, %p134
      %p136 = scmp.ne.s32.totalorder %s128, %s130
      %p137 = scmp.eq.s32.totalorder %s36, 1
      %p138 = por %p136, %p137
      %p139 = scmp.ne.s32.totalorder %s130, %s131
      %p140 = scmp.eq.s32.totalorder %s36, 0
      %p141 = por %p139, %p140
      %p142 = scmp.ne.s32.totalorder %s130, %s131
      %p143 = scmp.eq.s32.totalorder %s37, 1
      %p144 = por %p142, %p143
      %p146 = scmp.ne.s32.totalorder %s131, %s145
      %p147 = scmp.eq.s32.totalorder %s37, 0
      %p148 = por %p146, %p147
      %s150 = sadd.s32 %s149, 1
      %p153 = scmp.eq.s32.totalorder %s31, 1
      %p154 = scmp.ne.s32.totalorder %s149, %s151
      %p155 = scmp.eq.s32.totalorder %s31, 0
      %p156 = por %p154, %p155
      %p157 = scmp.ne.s32.totalorder %s149, %s151
      %p158 = scmp.eq.s32.totalorder %s36, 1
      %p159 = por %p157, %p158
      %p160 = scmp.ne.s32.totalorder %s151, %s152
      %p161 = scmp.eq.s32.totalorder %s36, 0
      %p162 = por %p160, %p161
      %p163 = scmp.ne.s32.totalorder %s151, %s152
      %p164 = scmp.eq.s32.totalorder %s37, 1
      %p165 = por %p163, %p164
      %p167 = scmp.ne.s32.totalorder %s152, %s166
      %p168 = scmp.eq.s32.totalorder %s37, 0
      %p169 = por %p167, %p168
      %s171 = sadd.s32 %s170, 1
      %p174 = scmp.eq.s32.totalorder %s31, 1
      %p175 = scmp.ne.s32.totalorder %s170, %s172
      %p176 = scmp.eq.s32.totalorder %s31, 0
      %p177 = por %p175, %p176
      %p178 = scmp.ne.s32.totalorder %s170, %s172
      %p179 = scmp.eq.s32.totalorder %s36, 1
      %p180 = por %p178, %p179
      %p181 = scmp.ne.s32.totalorder %s172, %s173
      %p182 = scmp.eq.s32.totalorder %s36, 0
      %p183 = por %p181, %p182
      %p184 = scmp.ne.s32.totalorder %s172, %s173
      %p185 = scmp.eq.s32.totalorder %s37, 1
      %p186 = por %p184, %p185
      %p188 = scmp.ne.s32.totalorder %s173, %s187
      %p189 = scmp.eq.s32.totalorder %s37, 0
      %p190 = por %p188, %p189
      %s192 = sadd.s32 %s191, 1
      %p195 = scmp.eq.s32.totalorder %s31, 1
      %p196 = scmp.ne.s32.totalorder %s191, %s193
      %p197 = scmp.eq.s32.totalorder %s31, 0
      %p198 = por %p196, %p197
      %p199 = scmp.ne.s32.totalorder %s191, %s193
      %p200 = scmp.eq.s32.totalorder %s36, 1
      %p201 = por %p199, %p200
      %p202 = scmp.ne.s32.totalorder %s193, %s194
      %p203 = scmp.eq.s32.totalorder %s36, 0
      %p204 = por %p202, %p203
      %p205 = scmp.ne.s32.totalorder %s193, %s194
      %p206 = scmp.eq.s32.totalorder %s37, 1
      %p207 = por %p205, %p206
      %p209 = scmp.ne.s32.totalorder %s194, %s208
      %p210 = scmp.eq.s32.totalorder %s37, 0
      %p211 = por %p209, %p210
      %s213 = sadd.s32 %s212, 1
      %p216 = scmp.eq.s32.totalorder %s31, 1
      %p217 = scmp.ne.s32.totalorder %s212, %s214
      %p218 = scmp.eq.s32.totalorder %s31, 0
      %p219 = por %p217, %p218
      %p220 = scmp.ne.s32.totalorder %s212, %s214
      %p221 = scmp.eq.s32.totalorder %s36, 1
      %p222 = por %p220, %p221
      %p223 = scmp.ne.s32.totalorder %s214, %s215
      %p224 = scmp.eq.s32.totalorder %s36, 0
      %p225 = por %p223, %p224
      %p226 = scmp.ne.s32.totalorder %s214, %s215
      %p227 = scmp.eq.s32.totalorder %s37, 1
      %p228 = por %p226, %p227
      %p230 = scmp.ne.s32.totalorder %s215, %s229
      %p231 = scmp.eq.s32.totalorder %s37, 0
      %p232 = por %p230, %p231
      %s234 = sadd.s32 %s233, 1
      %p237 = scmp.eq.s32.totalorder %s31, 1
      %p238 = scmp.ne.s32.totalorder %s233, %s235
      %p239 = scmp.eq.s32.totalorder %s31, 0
      %p240 = por %p238, %p239
      %p241 = scmp.ne.s32.totalorder %s233, %s235
      %p242 = scmp.eq.s32.totalorder %s36, 1
      %p243 = por %p241, %p242
      %p244 = scmp.ne.s32.totalorder %s235, %s236
      %p245 = scmp.eq.s32.totalorder %s36, 0
      %p246 = por %p244, %p245
      %p247 = scmp.ne.s32.totalorder %s235, %s236
      %p248 = scmp.eq.s32.totalorder %s37, 1
      %p249 = por %p247, %p248
      %p251 = scmp.ne.s32.totalorder %s236, %s250
      %p252 = scmp.eq.s32.totalorder %s37, 0
      %p253 = por %p251, %p252
      %s255 = sadd.s32 %s254, 1
      %p258 = scmp.eq.s32.totalorder %s31, 1
      %p259 = scmp.ne.s32.totalorder %s254, %s256
      %p260 = scmp.eq.s32.totalorder %s31, 0
      %p261 = por %p259, %p260
      %p262 = scmp.ne.s32.totalorder %s254, %s256
      %p263 = scmp.eq.s32.totalorder %s36, 1
      %p264 = por %p262, %p263
      %p265 = scmp.ne.s32.totalorder %s256, %s257
      %p266 = scmp.eq.s32.totalorder %s36, 0
      %p267 = por %p265, %p266
      %p268 = scmp.ne.s32.totalorder %s256, %s257
      %p269 = scmp.eq.s32.totalorder %s37, 1
      %p270 = por %p268, %p269
      %p272 = scmp.ne.s32.totalorder %s257, %s271
      %p273 = scmp.eq.s32.totalorder %s37, 0
      %p274 = por %p272, %p273
      %s275 = ssub.s32 %s31, %s38
      %p276 = scmp.eq.s32.totalorder %s275, 0
      %s278 = sadd.s32 %s277, 1
      %s279 = scalar_select %p276, %s277, %s278
      %p282 = pneg %p276
      %p283 = scmp.eq.s32.totalorder %s31, 1
      %p284 = por %p282, %p283
      %p285 = scmp.ne.s32.totalorder %s277, %s280
      %p286 = scmp.eq.s32.totalorder %s31, 0
      %p287 = por %p285, %p286
      %p288 = scmp.ne.s32.totalorder %s277, %s280
      %p289 = scmp.eq.s32.totalorder %s36, 1
      %p290 = por %p288, %p289
      %p291 = scmp.ne.s32.totalorder %s280, %s281
      %p292 = scmp.eq.s32.totalorder %s36, 0
      %p293 = por %p291, %p292
      %p294 = scmp.ne.s32.totalorder %s280, %s281
      %p295 = scmp.eq.s32.totalorder %s37, 1
      %p296 = por %p294, %p295
      %p298 = scmp.ne.s32.totalorder %s281, %s297
      %p299 = scmp.eq.s32.totalorder %s37, 0
      %p300 = por %p298, %p299
      %s301 = ssub.s32 %s31, %s38
      %p302 = scmp.eq.s32.totalorder %s301, 0
      %s304 = sadd.s32 %s303, 1
      %s305 = scalar_select %p302, %s303, %s304
      %p308 = pneg %p302
      %p309 = scmp.eq.s32.totalorder %s31, 1
      %p310 = por %p308, %p309
      %p311 = scmp.ne.s32.totalorder %s303, %s306
      %p312 = scmp.eq.s32.totalorder %s31, 0
      %p313 = por %p311, %p312
      %p314 = scmp.ne.s32.totalorder %s303, %s306
      %p315 = scmp.eq.s32.totalorder %s36, 1
      %p316 = por %p314, %p315
      %p317 = scmp.ne.s32.totalorder %s306, %s307
      %p318 = scmp.eq.s32.totalorder %s36, 0
      %p319 = por %p317, %p318
      %p320 = scmp.ne.s32.totalorder %s306, %s307
      %p321 = scmp.eq.s32.totalorder %s37, 1
      %p322 = por %p320, %p321
      %p324 = scmp.ne.s32.totalorder %s307, %s323
      %p325 = scmp.eq.s32.totalorder %s37, 0
      %p326 = por %p324, %p325
      %p327 = scmp.le.s32.totalorder 1, %s31
      %p328 = scmp.lt.s32.totalorder %s31, 3
      %p329 = pnand %p327, %p328
      %p330 = pneg %p329
      // Predicated region
      $region9: #{tpu_custom_call.1} parent=5 // pred_check
        _
      $region10: #{tpu_custom_call.1} parent=5 // pred_check_branch
        %332 = sbr.rel (%p329) target = $region12
      $region11: #{tpu_custom_call.1} parent=5 // pred_region
        %s333 = ssub.s32 %s31, 1
        // Predicated region
        $region13: #{tpu_custom_call.1} parent=11 // pred_check
          %p334 = pneg %p78
        $region14: #{tpu_custom_call.1} parent=11 // pred_check_branch
          %336 = sbr.rel (%p334) target = $region16
        $region15: #{tpu_custom_call.1} parent=11 // pred_region
          %s338 = ssub.s32 8192, 8192
          %339 = vsyncadd [#allocation6], %s338
          %s340 = sshll.u32 [#allocation5], 4
          %s341 = int_to_ptr.vmem [resolvable:$true] %s340
          %346 = dma.hbm_to_vmem [thread:$0]  %s1, 8192, %s341, [#allocation6], 64, 64, 4
        $region16: #{tpu_custom_call.1} parent=11 // pred_fallthru
          _
        // Predicated region
        $region17: #{tpu_custom_call.1} parent=11 // pred_check
          %p347 = pneg %p99
        $region18: #{tpu_custom_call.1} parent=11 // pred_check_branch
          %349 = sbr.rel (%p347) target = $region20
        $region19: #{tpu_custom_call.1} parent=11 // pred_region
          _
        $region20: #{tpu_custom_call.1} parent=11 // pred_fallthru
          _
        // Predicated region
        $region21: #{tpu_custom_call.1} parent=11 // pred_check
          %p350 = pneg %p120
        $region22: #{tpu_custom_call.1} parent=11 // pred_check_branch
          %352 = sbr.rel (%p350) target = $region24
        $region23: #{tpu_custom_call.1} parent=11 // pred_region
          %s354 = ssub.s32 1024, 1024
          %355 = vsyncadd [#allocation6], %s354
          %s356 = sshll.u32 [#allocation7], 4
          %s357 = int_to_ptr.vmem [resolvable:$true] %s356
          %362 = dma.hbm_to_vmem [thread:$0]  %s3, 1024, %s357, [#allocation6], 64, 64, 4
        $region24: #{tpu_custom_call.1} parent=11 // pred_fallthru
          _
        // Predicated region
        $region25: #{tpu_custom_call.1} parent=11 // pred_check
          %p363 = pneg %p141
        $region26: #{tpu_custom_call.1} parent=11 // pred_check_branch
          %365 = sbr.rel (%p363) target = $region28
        $region27: #{tpu_custom_call.1} parent=11 // pred_region
          _
        $region28: #{tpu_custom_call.1} parent=11 // pred_fallthru
          _
        // Predicated region
        $region29: #{tpu_custom_call.1} parent=11 // pred_check
          %p366 = pneg %p162
        $region30: #{tpu_custom_call.1} parent=11 // pred_check_branch
          %368 = sbr.rel (%p366) target = $region32
        $region31: #{tpu_custom_call.1} parent=11 // pred_region
          %s370 = ssub.s32 1024, 1024
          %371 = vsyncadd [#allocation9], %s370
          %s372 = sshll.u32 [#allocation8], 4
          %s373 = int_to_ptr.vmem [resolvable:$true] %s372
          %378 = dma.hbm_to_vmem [thread:$0]  %s5, 1024, %s373, [#allocation9], 64, 64, 4
        $region32: #{tpu_custom_call.1} parent=11 // pred_fallthru
          _
        // Predicated region
        $region33: #{tpu_custom_call.1} parent=11 // pred_check
          %p379 = pneg %p183
        $region34: #{tpu_custom_call.1} parent=11 // pred_check_branch
          %381 = sbr.rel (%p379) target = $region36
        $region35: #{tpu_custom_call.1} parent=11 // pred_region
          _
        $region36: #{tpu_custom_call.1} parent=11 // pred_fallthru
          _
        // Predicated region
        $region37: #{tpu_custom_call.1} parent=11 // pred_check
          %p382 = pneg %p204
        $region38: #{tpu_custom_call.1} parent=11 // pred_check_branch
          %384 = sbr.rel (%p382) target = $region40
        $region39: #{tpu_custom_call.1} parent=11 // pred_region
          %s386 = ssub.s32 4096, 4096
          %387 = vsyncadd [#allocation9], %s386
          %s388 = sshll.u32 [#allocation10], 4
          %s389 = int_to_ptr.vmem [resolvable:$true] %s388
          %394 = dma.hbm_to_vmem [thread:$0]  %s7, 4096, %s389, [#allocation9], 256, 256, 16
        $region40: #{tpu_custom_call.1} parent=11 // pred_fallthru
          _
        // Predicated region
        $region41: #{tpu_custom_call.1} parent=11 // pred_check
          %p395 = pneg %p225
        $region42: #{tpu_custom_call.1} parent=11 // pred_check_branch
          %397 = sbr.rel (%p395) target = $region44
        $region43: #{tpu_custom_call.1} parent=11 // pred_region
          _
        $region44: #{tpu_custom_call.1} parent=11 // pred_fallthru
          _
        // Predicated region
        $region45: #{tpu_custom_call.1} parent=11 // pred_check
          %p398 = pneg %p246
        $region46: #{tpu_custom_call.1} parent=11 // pred_check_branch
          %400 = sbr.rel (%p398) target = $region48
        $region47: #{tpu_custom_call.1} parent=11 // pred_region
          %s402 = ssub.s32 32768, 32768
          %403 = vsyncadd [#allocation12], %s402
          %s404 = sshll.u32 [#allocation11], 4
          %s405 = int_to_ptr.vmem [resolvable:$true] %s404
          %410 = dma.hbm_to_vmem [thread:$0]  %s9, 32768, %s405, [#allocation12], 512, 512, 32
        $region48: #{tpu_custom_call.1} parent=11 // pred_fallthru
          _
        // Predicated region
        $region49: #{tpu_custom_call.1} parent=11 // pred_check
          %p411 = pneg %p267
        $region50: #{tpu_custom_call.1} parent=11 // pred_check_branch
          %413 = sbr.rel (%p411) target = $region52
        $region51: #{tpu_custom_call.1} parent=11 // pred_region
          _
        $region52: #{tpu_custom_call.1} parent=11 // pred_fallthru
          _
      $region12: #{tpu_custom_call.1} parent=5 // pred_fallthru
        _
      %p414 = scmp.lt.s32.totalorder %s31, 2
      // Predicated region
      $region53: #{tpu_custom_call.1} parent=5 // pred_check
        %p415 = pneg %p414
      $region54: #{tpu_custom_call.1} parent=5 // pred_check_branch
        %417 = sbr.rel (%p415) target = $region56
      $region55: #{tpu_custom_call.1} parent=5 // pred_region
        // Predicated region
        $region57: #{tpu_custom_call.1} parent=55 // pred_check
          %p418 = pneg %p51
        $region58: #{tpu_custom_call.1} parent=55 // pred_check_branch
          %420 = sbr.rel (%p418) target = $region60
        $region59: #{tpu_custom_call.1} parent=55 // pred_region
          %s421 = sand.u32 %s41, 1
          %s422 = scalar_lea.sflag [#allocation3], %s421
          %s423 = sand.u32 %s41, 1
          %s424 = smul.addr %s423, 64
          %s425 = scalar_lea.vmem [#allocation2], %s424
          %s426 = smul.u32 2, %s31
          %s428 = ssub.s32 1024, 1024
          %429 = vsyncadd %s422, %s428
          %s430 = smul.addr %s426, 8
          %s431 = smul.addr %s430, 64
          %s432 = scalar_lea.hbm %s0, %s431
          %s433 = sshll.u32 %s425, 4
          %s434 = int_to_ptr.vmem [resolvable:$true] %s433
          %439 = dma.hbm_to_vmem [thread:$0]  %s432, 1024, %s434, %s422, 512, 512, 32
        $region60: #{tpu_custom_call.1} parent=55 // pred_fallthru
          _
      $region56: #{tpu_custom_call.1} parent=5 // pred_fallthru
        _
      %p440 = scmp.le.s32.totalorder 1, %s31
      %p441 = scmp.lt.s32.totalorder %s31, 3
      %p442 = pnand %p440, %p441
      %p443 = pneg %p442
      // Predicated region
      $region61: #{tpu_custom_call.1} parent=5 // pred_check
        _
      $region62: #{tpu_custom_call.1} parent=5 // pred_check_branch
        %445 = sbr.rel (%p442) target = $region64
      $region63: #{tpu_custom_call.1} parent=5 // pred_region
        %s446 = ssub.s32 %s31, 1
        %s447 = sand.u32 %s44, 1
        %s448 = scalar_lea.sflag [#allocation3], %s447
        %s449 = sand.u32 %s44, 1
        %s450 = smul.addr %s449, 64
        %s451 = scalar_lea.vmem [#allocation2], %s450
        // Predicated region
        $region65: #{tpu_custom_call.1} parent=63 // pred_check
          %p452 = pneg %p57
        $region66: #{tpu_custom_call.1} parent=63 // pred_check_branch
          %454 = sbr.rel (%p452) target = $region68
        $region67: #{tpu_custom_call.1} parent=63 // pred_region
          %455 = dma.done %s448, 1024
        $region68: #{tpu_custom_call.1} parent=63 // pred_fallthru
          _
        // Predicated region
        $region69: #{tpu_custom_call.1} parent=63 // pred_check
          %p456 = pneg %p78
        $region70: #{tpu_custom_call.1} parent=63 // pred_check_branch
          %458 = sbr.rel (%p456) target = $region72
        $region71: #{tpu_custom_call.1} parent=63 // pred_region
          %459 = dma.done [#allocation6], 8192
        $region72: #{tpu_custom_call.1} parent=63 // pred_fallthru
          _
        // Predicated region
        $region73: #{tpu_custom_call.1} parent=63 // pred_check
          %p460 = pneg %p120
        $region74: #{tpu_custom_call.1} parent=63 // pred_check_branch
          %462 = sbr.rel (%p460) target = $region76
        $region75: #{tpu_custom_call.1} parent=63 // pred_region
          %463 = dma.done [#allocation6], 1024
        $region76: #{tpu_custom_call.1} parent=63 // pred_fallthru
          _
        // Predicated region
        $region77: #{tpu_custom_call.1} parent=63 // pred_check
          %p464 = pneg %p162
        $region78: #{tpu_custom_call.1} parent=63 // pred_check_branch
          %466 = sbr.rel (%p464) target = $region80
        $region79: #{tpu_custom_call.1} parent=63 // pred_region
          %467 = dma.done [#allocation9], 1024
        $region80: #{tpu_custom_call.1} parent=63 // pred_fallthru
          _
        // Predicated region
        $region81: #{tpu_custom_call.1} parent=63 // pred_check
          %p468 = pneg %p204
        $region82: #{tpu_custom_call.1} parent=63 // pred_check_branch
          %470 = sbr.rel (%p468) target = $region84
        $region83: #{tpu_custom_call.1} parent=63 // pred_region
          %471 = dma.done [#allocation9], 4096
        $region84: #{tpu_custom_call.1} parent=63 // pred_fallthru
          _
        // Predicated region
        $region85: #{tpu_custom_call.1} parent=63 // pred_check
          %p472 = pneg %p246
        $region86: #{tpu_custom_call.1} parent=63 // pred_check_branch
          %474 = sbr.rel (%p472) target = $region88
        $region87: #{tpu_custom_call.1} parent=63 // pred_region
          %475 = dma.done [#allocation12], 32768
        $region88: #{tpu_custom_call.1} parent=63 // pred_fallthru
          _
        %s476 = sand.u32 %s44, 1
        %s477 = scalar_lea.sflag [#allocation3], %s476
        %s478 = sand.u32 %s44, 1
        %s479 = smul.addr %s478, 64
        %s480 = scalar_lea.vmem [#allocation2], %s479
        %p481 = pneg %p57
        %p482 = pneg %p54
        %p483 = pneg %p78
        %p484 = pneg %p75
        %p485 = pneg %p99
        %p486 = pneg %p96
        %p487 = pneg %p120
        %p488 = pneg %p117
        %p489 = pneg %p141
        %p490 = pneg %p138
        %p491 = pneg %p162
        %p492 = pneg %p159
        %p493 = pneg %p183
        %p494 = pneg %p180
        %p495 = pneg %p204
        %p496 = pneg %p201
        %p497 = pneg %p225
        %p498 = pneg %p222
        %p499 = pneg %p246
        %p500 = pneg %p243
        %p501 = pneg %p267
        %p502 = pneg %p264
        %p503 = pneg %p293
        %p504 = pneg %p290
        %s505 = sand.u32 %s280, 1
        %s506 = scalar_lea.sflag [#allocation4], %s505
        %s507 = sand.u32 %s280, 1
        %s508 = smul.addr %s507, 128
        %s509 = scalar_lea.vmem [#allocation13], %s508
        %p510 = pneg %p319
        %p511 = pneg %p316
        %s512 = sand.u32 %s306, 1
        %s513 = scalar_lea.sflag [#allocation15], %s512
        %s514 = sand.u32 %s306, 1
        %s515 = smul.addr %s514, 16
        %s516 = scalar_lea.vmem [#allocation14], %s515
        %s517 = smul.u32 2, %s36
        %s518 = smul.u32 2, %s36
        %s519 = smul.u32 2, %s36
        %v521 = vld [vmem:[%s451] sm:$0xff]
        %v522 = vld [vmem:[%s451 + $0x8] sm:$0xff]
        %v523 = vld [vmem:[%s451 + $0x10] sm:$0xff]
        %v524 = vld [vmem:[%s451 + $0x18] sm:$0xff]
        %v525 = vld [vmem:[%s451 + $0x20] sm:$0xff]
        %v526 = vld [vmem:[%s451 + $0x28] sm:$0xff]
        %v527 = vld [vmem:[%s451 + $0x30] sm:$0xff]
        %v528 = vld [vmem:[%s451 + $0x38] sm:$0xff]
        %v529 = vld [vmem:[#allocation5] sm:$0xf]
        %v530 = vld [vmem:[#allocation5 + $0x4] sm:$0xf]
        %v531 = vld [vmem:[#allocation5 + $0x8] sm:$0xf]
        %v532 = vld [vmem:[#allocation5 + $0xc] sm:$0xf]
        %v533 = vld [vmem:[#allocation5 + $0x10] sm:$0xf]
        %v534 = vld [vmem:[#allocation5 + $0x14] sm:$0xf]
        %v535 = vld [vmem:[#allocation5 + $0x18] sm:$0xf]
        %v536 = vld [vmem:[#allocation5 + $0x1c] sm:$0xf]
        %v537 = vld [vmem:[#allocation5 + $0x20] sm:$0xf]
        %v538 = vld [vmem:[#allocation5 + $0x24] sm:$0xf]
        %v539 = vld [vmem:[#allocation5 + $0x28] sm:$0xf]
        %v540 = vld [vmem:[#allocation5 + $0x2c] sm:$0xf]
        %v541 = vld [vmem:[#allocation5 + $0x30] sm:$0xf]
        %v542 = vld [vmem:[#allocation5 + $0x34] sm:$0xf]
        %v543 = vld [vmem:[#allocation5 + $0x38] sm:$0xf]
        %v544 = vld [vmem:[#allocation5 + $0x3c] sm:$0xf]
        %v545 = vld [vmem:[#allocation5 + $0x40] sm:$0xf]
        %v546 = vld [vmem:[#allocation5 + $0x44] sm:$0xf]
        %v547 = vld [vmem:[#allocation5 + $0x48] sm:$0xf]
        %v548 = vld [vmem:[#allocation5 + $0x4c] sm:$0xf]
        %v549 = vld [vmem:[#allocation5 + $0x50] sm:$0xf]
        %v550 = vld [vmem:[#allocation5 + $0x54] sm:$0xf]
        %v551 = vld [vmem:[#allocation5 + $0x58] sm:$0xf]
        %v552 = vld [vmem:[#allocation5 + $0x5c] sm:$0xf]
        %v553 = vld [vmem:[#allocation5 + $0x60] sm:$0xf]
        %v554 = vld [vmem:[#allocation5 + $0x64] sm:$0xf]
        %v555 = vld [vmem:[#allocation5 + $0x68] sm:$0xf]
        %v556 = vld [vmem:[#allocation5 + $0x6c] sm:$0xf]
        %v557 = vld [vmem:[#allocation5 + $0x70] sm:$0xf]
        %v558 = vld [vmem:[#allocation5 + $0x74] sm:$0xf]
        %v559 = vld [vmem:[#allocation5 + $0x78] sm:$0xf]
        %v560 = vld [vmem:[#allocation5 + $0x7c] sm:$0xf]
        %v561 = vld [vmem:[#allocation5 + $0x80] sm:$0xf]
        %v562 = vld [vmem:[#allocation5 + $0x84] sm:$0xf]
        %v563 = vld [vmem:[#allocation5 + $0x88] sm:$0xf]
        %v564 = vld [vmem:[#allocation5 + $0x8c] sm:$0xf]
        %v565 = vld [vmem:[#allocation5 + $0x90] sm:$0xf]
        %v566 = vld [vmem:[#allocation5 + $0x94] sm:$0xf]
        %v567 = vld [vmem:[#allocation5 + $0x98] sm:$0xf]
        %v568 = vld [vmem:[#allocation5 + $0x9c] sm:$0xf]
        %v569 = vld [vmem:[#allocation5 + $0xa0] sm:$0xf]
        %v570 = vld [vmem:[#allocation5 + $0xa4] sm:$0xf]
        %v571 = vld [vmem:[#allocation5 + $0xa8] sm:$0xf]
        %v572 = vld [vmem:[#allocation5 + $0xac] sm:$0xf]
        %v573 = vld [vmem:[#allocation5 + $0xb0] sm:$0xf]
        %v574 = vld [vmem:[#allocation5 + $0xb4] sm:$0xf]
        %v575 = vld [vmem:[#allocation5 + $0xb8] sm:$0xf]
        %v576 = vld [vmem:[#allocation5 + $0xbc] sm:$0xf]
        %v577 = vld [vmem:[#allocation5 + $0xc0] sm:$0xf]
        %v578 = vld [vmem:[#allocation5 + $0xc4] sm:$0xf]
        %v579 = vld [vmem:[#allocation5 + $0xc8] sm:$0xf]
        %v580 = vld [vmem:[#allocation5 + $0xcc] sm:$0xf]
        %v581 = vld [vmem:[#allocation5 + $0xd0] sm:$0xf]
        %v582 = vld [vmem:[#allocation5 + $0xd4] sm:$0xf]
        %v583 = vld [vmem:[#allocation5 + $0xd8] sm:$0xf]
        %v584 = vld [vmem:[#allocation5 + $0xdc] sm:$0xf]
        %v585 = vld [vmem:[#allocation5 + $0xe0] sm:$0xf]
        %v586 = vld [vmem:[#allocation5 + $0xe4] sm:$0xf]
        %v587 = vld [vmem:[#allocation5 + $0xe8] sm:$0xf]
        %v588 = vld [vmem:[#allocation5 + $0xec] sm:$0xf]
        %v589 = vld [vmem:[#allocation5 + $0xf0] sm:$0xf]
        %v590 = vld [vmem:[#allocation5 + $0xf4] sm:$0xf]
        %v591 = vld [vmem:[#allocation5 + $0xf8] sm:$0xf]
        %v592 = vld [vmem:[#allocation5 + $0xfc] sm:$0xf]
        %v593 = vld [vmem:[#allocation5 + $0x100] sm:$0xf]
        %v594 = vld [vmem:[#allocation5 + $0x104] sm:$0xf]
        %v595 = vld [vmem:[#allocation5 + $0x108] sm:$0xf]
        %v596 = vld [vmem:[#allocation5 + $0x10c] sm:$0xf]
        %v597 = vld [vmem:[#allocation5 + $0x110] sm:$0xf]
        %v598 = vld [vmem:[#allocation5 + $0x114] sm:$0xf]
        %v599 = vld [vmem:[#allocation5 + $0x118] sm:$0xf]
        %v600 = vld [vmem:[#allocation5 + $0x11c] sm:$0xf]
        %v601 = vld [vmem:[#allocation5 + $0x120] sm:$0xf]
        %v602 = vld [vmem:[#allocation5 + $0x124] sm:$0xf]
        %v603 = vld [vmem:[#allocation5 + $0x128] sm:$0xf]
        %v604 = vld [vmem:[#allocation5 + $0x12c] sm:$0xf]
        %v605 = vld [vmem:[#allocation5 + $0x130] sm:$0xf]
        %v606 = vld [vmem:[#allocation5 + $0x134] sm:$0xf]
        %v607 = vld [vmem:[#allocation5 + $0x138] sm:$0xf]
        %v608 = vld [vmem:[#allocation5 + $0x13c] sm:$0xf]
        %v609 = vld [vmem:[#allocation5 + $0x140] sm:$0xf]
        %v610 = vld [vmem:[#allocation5 + $0x144] sm:$0xf]
        %v611 = vld [vmem:[#allocation5 + $0x148] sm:$0xf]
        %v612 = vld [vmem:[#allocation5 + $0x14c] sm:$0xf]
        %v613 = vld [vmem:[#allocation5 + $0x150] sm:$0xf]
        %v614 = vld [vmem:[#allocation5 + $0x154] sm:$0xf]
        %v615 = vld [vmem:[#allocation5 + $0x158] sm:$0xf]
        %v616 = vld [vmem:[#allocation5 + $0x15c] sm:$0xf]
        %v617 = vld [vmem:[#allocation5 + $0x160] sm:$0xf]
        %v618 = vld [vmem:[#allocation5 + $0x164] sm:$0xf]
        %v619 = vld [vmem:[#allocation5 + $0x168] sm:$0xf]
        %v620 = vld [vmem:[#allocation5 + $0x16c] sm:$0xf]
        %v621 = vld [vmem:[#allocation5 + $0x170] sm:$0xf]
        %v622 = vld [vmem:[#allocation5 + $0x174] sm:$0xf]
        %v623 = vld [vmem:[#allocation5 + $0x178] sm:$0xf]
        %v624 = vld [vmem:[#allocation5 + $0x17c] sm:$0xf]
        %v625 = vld [vmem:[#allocation5 + $0x180] sm:$0xf]
        %v626 = vld [vmem:[#allocation5 + $0x184] sm:$0xf]
        %v627 = vld [vmem:[#allocation5 + $0x188] sm:$0xf]
        %v628 = vld [vmem:[#allocation5 + $0x18c] sm:$0xf]
        %v629 = vld [vmem:[#allocation5 + $0x190] sm:$0xf]
        %v630 = vld [vmem:[#allocation5 + $0x194] sm:$0xf]
        %v631 = vld [vmem:[#allocation5 + $0x198] sm:$0xf]
        %v632 = vld [vmem:[#allocation5 + $0x19c] sm:$0xf]
        %v633 = vld [vmem:[#allocation5 + $0x1a0] sm:$0xf]
        %v634 = vld [vmem:[#allocation5 + $0x1a4] sm:$0xf]
        %v635 = vld [vmem:[#allocation5 + $0x1a8] sm:$0xf]
        %v636 = vld [vmem:[#allocation5 + $0x1ac] sm:$0xf]
        %v637 = vld [vmem:[#allocation5 + $0x1b0] sm:$0xf]
        %v638 = vld [vmem:[#allocation5 + $0x1b4] sm:$0xf]
        %v639 = vld [vmem:[#allocation5 + $0x1b8] sm:$0xf]
        %v640 = vld [vmem:[#allocation5 + $0x1bc] sm:$0xf]
        %v641 = vld [vmem:[#allocation5 + $0x1c0] sm:$0xf]
        %v642 = vld [vmem:[#allocation5 + $0x1c4] sm:$0xf]
        %v643 = vld [vmem:[#allocation5 + $0x1c8] sm:$0xf]
        %v644 = vld [vmem:[#allocation5 + $0x1cc] sm:$0xf]
        %v645 = vld [vmem:[#allocation5 + $0x1d0] sm:$0xf]
        %v646 = vld [vmem:[#allocation5 + $0x1d4] sm:$0xf]
        %v647 = vld [vmem:[#allocation5 + $0x1d8] sm:$0xf]
        %v648 = vld [vmem:[#allocation5 + $0x1dc] sm:$0xf]
        %v649 = vld [vmem:[#allocation5 + $0x1e0] sm:$0xf]
        %v650 = vld [vmem:[#allocation5 + $0x1e4] sm:$0xf]
        %v651 = vld [vmem:[#allocation5 + $0x1e8] sm:$0xf]
        %v652 = vld [vmem:[#allocation5 + $0x1ec] sm:$0xf]
        %v653 = vld [vmem:[#allocation5 + $0x1f0] sm:$0xf]
        %v654 = vld [vmem:[#allocation5 + $0x1f4] sm:$0xf]
        %v655 = vld [vmem:[#allocation5 + $0x1f8] sm:$0xf]
        %v656 = vld [vmem:[#allocation5 + $0x1fc] sm:$0xf]
        %v657 = vld [vmem:[%s2] sm:$0x1]
        %v659 = vlaneseq
        %v660 = vshrl.u32 %v659, 7
        %v661 = vsub.s32 0, %v660
        %v662 = vrot.slane %v657, %v661
        %v672 = vunpack.c.l.b16 %v521
        %v673 = vunpack.c.h.b16 %v521
        %v674 = vunpack.c.l.b16 %v522
        %v675 = vunpack.c.h.b16 %v522
        %v676 = vunpack.c.l.b16 %v523
        %v677 = vunpack.c.h.b16 %v523
        %v678 = vunpack.c.l.b16 %v524
        %v679 = vunpack.c.h.b16 %v524
        %v680 = vunpack.c.l.b16 %v525
        %v681 = vunpack.c.h.b16 %v525
        %v682 = vunpack.c.l.b16 %v526
        %v683 = vunpack.c.h.b16 %v526
        %v684 = vunpack.c.l.b16 %v527
        %v685 = vunpack.c.h.b16 %v527
        %v686 = vunpack.c.l.b16 %v528
        %v687 = vunpack.c.h.b16 %v528
        %v688 = vpack.c.b16 %v680, %v672
        %v689 = vpack.c.b16 %v681, %v673
        %v690 = vpack.c.b16 %v682, %v674
        %v691 = vpack.c.b16 %v683, %v675
        %v692 = vpack.c.b16 %v684, %v676
        %v693 = vpack.c.b16 %v685, %v677
        %v694 = vpack.c.b16 %v686, %v678
        %v695 = vpack.c.b16 %v687, %v679
        %v832 = vunpack.c.l.b16 %v529
        %v833 = vunpack.c.l.b16 %v530
        %v834 = vunpack.c.l.b16 %v531
        %v835 = vunpack.c.l.b16 %v532
        %v836 = vunpack.c.l.b16 %v533
        %v837 = vunpack.c.l.b16 %v534
        %v838 = vunpack.c.l.b16 %v535
        %v839 = vunpack.c.l.b16 %v536
        %v840 = vunpack.c.l.b16 %v537
        %v841 = vunpack.c.l.b16 %v538
        %v842 = vunpack.c.l.b16 %v539
        %v843 = vunpack.c.l.b16 %v540
        %v844 = vunpack.c.l.b16 %v541
        %v845 = vunpack.c.l.b16 %v542
        %v846 = vunpack.c.l.b16 %v543
        %v847 = vunpack.c.l.b16 %v544
        %v848 = vunpack.c.l.b16 %v545
        %v849 = vunpack.c.l.b16 %v546
        %v850 = vunpack.c.l.b16 %v547
        %v851 = vunpack.c.l.b16 %v548
        %v852 = vunpack.c.l.b16 %v549
        %v853 = vunpack.c.l.b16 %v550
        %v854 = vunpack.c.l.b16 %v551
        %v855 = vunpack.c.l.b16 %v552
        %v856 = vunpack.c.l.b16 %v553
        %v857 = vunpack.c.l.b16 %v554
        %v858 = vunpack.c.l.b16 %v555
        %v859 = vunpack.c.l.b16 %v556
        %v860 = vunpack.c.l.b16 %v557
        %v861 = vunpack.c.l.b16 %v558
        %v862 = vunpack.c.l.b16 %v559
        %v863 = vunpack.c.l.b16 %v560
        %v864 = vunpack.c.l.b16 %v561
        %v865 = vunpack.c.l.b16 %v562
        %v866 = vunpack.c.l.b16 %v563
        %v867 = vunpack.c.l.b16 %v564
        %v868 = vunpack.c.l.b16 %v565
        %v869 = vunpack.c.l.b16 %v566
        %v870 = vunpack.c.l.b16 %v567
        %v871 = vunpack.c.l.b16 %v568
        %v872 = vunpack.c.l.b16 %v569
        %v873 = vunpack.c.l.b16 %v570
        %v874 = vunpack.c.l.b16 %v571
        %v875 = vunpack.c.l.b16 %v572
        %v876 = vunpack.c.l.b16 %v573
        %v877 = vunpack.c.l.b16 %v574
        %v878 = vunpack.c.l.b16 %v575
        %v879 = vunpack.c.l.b16 %v576
        %v880 = vunpack.c.l.b16 %v577
        %v881 = vunpack.c.l.b16 %v578
        %v882 = vunpack.c.l.b16 %v579
        %v883 = vunpack.c.l.b16 %v580
        %v884 = vunpack.c.l.b16 %v581
        %v885 = vunpack.c.l.b16 %v582
        %v886 = vunpack.c.l.b16 %v583
        %v887 = vunpack.c.l.b16 %v584
        %v888 = vunpack.c.l.b16 %v585
        %v889 = vunpack.c.l.b16 %v586
        %v890 = vunpack.c.l.b16 %v587
        %v891 = vunpack.c.l.b16 %v588
        %v892 = vunpack.c.l.b16 %v589
        %v893 = vunpack.c.l.b16 %v590
        %v894 = vunpack.c.l.b16 %v591
        %v895 = vunpack.c.l.b16 %v592
        %v896 = vunpack.c.l.b16 %v593
        %v897 = vunpack.c.l.b16 %v594
        %v898 = vunpack.c.l.b16 %v595
        %v899 = vunpack.c.l.b16 %v596
        %v900 = vunpack.c.l.b16 %v597
        %v901 = vunpack.c.l.b16 %v598
        %v902 = vunpack.c.l.b16 %v599
        %v903 = vunpack.c.l.b16 %v600
        %v904 = vunpack.c.l.b16 %v601
        %v905 = vunpack.c.l.b16 %v602
        %v906 = vunpack.c.l.b16 %v603
        %v907 = vunpack.c.l.b16 %v604
        %v908 = vunpack.c.l.b16 %v605
        %v909 = vunpack.c.l.b16 %v606
        %v910 = vunpack.c.l.b16 %v607
        %v911 = vunpack.c.l.b16 %v608
        %v912 = vunpack.c.l.b16 %v609
        %v913 = vunpack.c.l.b16 %v610
        %v914 = vunpack.c.l.b16 %v611
        %v915 = vunpack.c.l.b16 %v612
        %v916 = vunpack.c.l.b16 %v613
        %v917 = vunpack.c.l.b16 %v614
        %v918 = vunpack.c.l.b16 %v615
        %v919 = vunpack.c.l.b16 %v616
        %v920 = vunpack.c.l.b16 %v617
        %v921 = vunpack.c.l.b16 %v618
        %v922 = vunpack.c.l.b16 %v619
        %v923 = vunpack.c.l.b16 %v620
        %v924 = vunpack.c.l.b16 %v621
        %v925 = vunpack.c.l.b16 %v622
        %v926 = vunpack.c.l.b16 %v623
        %v927 = vunpack.c.l.b16 %v624
        %v928 = vunpack.c.l.b16 %v625
        %v929 = vunpack.c.l.b16 %v626
        %v930 = vunpack.c.l.b16 %v627
        %v931 = vunpack.c.l.b16 %v628
        %v932 = vunpack.c.l.b16 %v629
        %v933 = vunpack.c.l.b16 %v630
        %v934 = vunpack.c.l.b16 %v631
        %v935 = vunpack.c.l.b16 %v632
        %v936 = vunpack.c.l.b16 %v633
        %v937 = vunpack.c.l.b16 %v634
        %v938 = vunpack.c.l.b16 %v635
        %v939 = vunpack.c.l.b16 %v636
        %v940 = vunpack.c.l.b16 %v637
        %v941 = vunpack.c.l.b16 %v638
        %v942 = vunpack.c.l.b16 %v639
        %v943 = vunpack.c.l.b16 %v640
        %v944 = vunpack.c.l.b16 %v641
        %v945 = vunpack.c.l.b16 %v642
        %v946 = vunpack.c.l.b16 %v643
        %v947 = vunpack.c.l.b16 %v644
        %v948 = vunpack.c.l.b16 %v645
        %v949 = vunpack.c.l.b16 %v646
        %v950 = vunpack.c.l.b16 %v647
        %v951 = vunpack.c.l.b16 %v648
        %v952 = vunpack.c.l.b16 %v649
        %v953 = vunpack.c.l.b16 %v650
        %v954 = vunpack.c.l.b16 %v651
        %v955 = vunpack.c.l.b16 %v652
        %v956 = vunpack.c.l.b16 %v653
        %v957 = vunpack.c.l.b16 %v654
        %v958 = vunpack.c.l.b16 %v655
        %v959 = vunpack.c.l.b16 %v656
        %v960 = vpack.c.b16 %v833, %v832
        %v961 = vpack.c.b16 %v835, %v834
        %v962 = vpack.c.b16 %v837, %v836
        %v963 = vpack.c.b16 %v839, %v838
        %v964 = vpack.c.b16 %v841, %v840
        %v965 = vpack.c.b16 %v843, %v842
        %v966 = vpack.c.b16 %v845, %v844
        %v967 = vpack.c.b16 %v847, %v846
        %v968 = vpack.c.b16 %v849, %v848
        %v969 = vpack.c.b16 %v851, %v850
        %v970 = vpack.c.b16 %v853, %v852
        %v971 = vpack.c.b16 %v855, %v854
        %v972 = vpack.c.b16 %v857, %v856
        %v973 = vpack.c.b16 %v859, %v858
        %v974 = vpack.c.b16 %v861, %v860
        %v975 = vpack.c.b16 %v863, %v862
        %v976 = vpack.c.b16 %v865, %v864
        %v977 = vpack.c.b16 %v867, %v866
        %v978 = vpack.c.b16 %v869, %v868
        %v979 = vpack.c.b16 %v871, %v870
        %v980 = vpack.c.b16 %v873, %v872
        %v981 = vpack.c.b16 %v875, %v874
        %v982 = vpack.c.b16 %v877, %v876
        %v983 = vpack.c.b16 %v879, %v878
        %v984 = vpack.c.b16 %v881, %v880
        %v985 = vpack.c.b16 %v883, %v882
        %v986 = vpack.c.b16 %v885, %v884
        %v987 = vpack.c.b16 %v887, %v886
        %v988 = vpack.c.b16 %v889, %v888
        %v989 = vpack.c.b16 %v891, %v890
        %v990 = vpack.c.b16 %v893, %v892
        %v991 = vpack.c.b16 %v895, %v894
        %v992 = vpack.c.b16 %v897, %v896
        %v993 = vpack.c.b16 %v899, %v898
        %v994 = vpack.c.b16 %v901, %v900
        %v995 = vpack.c.b16 %v903, %v902
        %v996 = vpack.c.b16 %v905, %v904
        %v997 = vpack.c.b16 %v907, %v906
        %v998 = vpack.c.b16 %v909, %v908
        %v999 = vpack.c.b16 %v911, %v910
        %v1000 = vpack.c.b16 %v913, %v912
        %v1001 = vpack.c.b16 %v915, %v914
        %v1002 = vpack.c.b16 %v917, %v916
        %v1003 = vpack.c.b16 %v919, %v918
        %v1004 = vpack.c.b16 %v921, %v920
        %v1005 = vpack.c.b16 %v923, %v922
        %v1006 = vpack.c.b16 %v925, %v924
        %v1007 = vpack.c.b16 %v927, %v926
        %v1008 = vpack.c.b16 %v929, %v928
        %v1009 = vpack.c.b16 %v931, %v930
        %v1010 = vpack.c.b16 %v933, %v932
        %v1011 = vpack.c.b16 %v935, %v934
        %v1012 = vpack.c.b16 %v937, %v936
        %v1013 = vpack.c.b16 %v939, %v938
        %v1014 = vpack.c.b16 %v941, %v940
        %v1015 = vpack.c.b16 %v943, %v942
        %v1016 = vpack.c.b16 %v945, %v944
        %v1017 = vpack.c.b16 %v947, %v946
        %v1018 = vpack.c.b16 %v949, %v948
        %v1019 = vpack.c.b16 %v951, %v950
        %v1020 = vpack.c.b16 %v953, %v952
        %v1021 = vpack.c.b16 %v955, %v954
        %v1022 = vpack.c.b16 %v957, %v956
        %v1023 = vpack.c.b16 %v959, %v958
        %1088 = vmatprep.subr.bf16.mxu0 0
        %1089 = vmatpush1.bf16.msra.mxu0 %v967
        %1090 = vmatprep.subr.bf16.mxu0 0
        %1091 = vmatpush1.bf16.msra.mxu0 %v966
        %1092 = vmatprep.subr.bf16.mxu0 0
        %1093 = vmatpush1.bf16.msra.mxu0 %v965
        %1094 = vmatprep.subr.bf16.mxu0 0
        %1095 = vmatpush1.bf16.msra.mxu0 %v964
        %1096 = vmatprep.subr.bf16.mxu0 0
        %1097 = vmatpush1.bf16.msra.mxu0 %v963
        %1098 = vmatprep.subr.bf16.mxu0 0
        %1099 = vmatpush1.bf16.msra.mxu0 %v962
        %1100 = vmatprep.subr.bf16.mxu0 0
        %1101 = vmatpush1.bf16.msra.mxu0 %v961
        %1102 = vmatprep.subr.bf16.mxu0 0
        %1103 = vmatpush1.bf16.msra.mxu0 %v960
        %1104 = vmatprep.subr.bf16.mxu0 0
        %1105 = vmatpush2.bf16.msra.mxu0 %v975
        %1106 = vmatprep.subr.bf16.mxu0 0
        %1107 = vmatpush2.bf16.msra.mxu0 %v974
        %1108 = vmatprep.subr.bf16.mxu0 0
        %1109 = vmatpush2.bf16.msra.mxu0 %v973
        %1110 = vmatprep.subr.bf16.mxu0 0
        %1111 = vmatpush2.bf16.msra.mxu0 %v972
        %1112 = vmatprep.subr.bf16.mxu0 0
        %1113 = vmatpush2.bf16.msra.mxu0 %v971
        %1114 = vmatprep.subr.bf16.mxu0 0
        %1115 = vmatpush2.bf16.msra.mxu0 %v970
        %1116 = vmatprep.subr.bf16.mxu0 0
        %1117 = vmatpush2.bf16.msra.mxu0 %v969
        %1118 = vmatprep.subr.bf16.mxu0 0
        %1119 = vmatpush2.bf16.msra.mxu0 %v968
        %1120 = vmatprep.mubr.bf16.mxu0 %v689
        %1121 = vmatmul.mubr.bf16.gmra.mxu0 %v688
        %v1122 = vpop.f32.mrf.mxu0
        %v1123 = vadd.f32 %v662, %v1122
        %v1124 = vpop.f32.mrf.mxu0
        %v1125 = vpop.f32.mrf.mxu0
        %v1126 = vadd.f32 %v662, %v1125
        %v1127 = vpop.f32.mrf.mxu0
        %1128 = vdwg.mxu0
        %1129 = vmatprep.subr.bf16.mxu0 0
        %1130 = vmatpush1.bf16.msra.mxu0 %v983
        %1131 = vmatprep.subr.bf16.mxu0 0
        %1132 = vmatpush1.bf16.msra.mxu0 %v982
        %1133 = vmatprep.subr.bf16.mxu0 0
        %1134 = vmatpush1.bf16.msra.mxu0 %v981
        %1135 = vmatprep.subr.bf16.mxu0 0
        %1136 = vmatpush1.bf16.msra.mxu0 %v980
        %1137 = vmatprep.subr.bf16.mxu0 0
        %1138 = vmatpush1.bf16.msra.mxu0 %v979
        %1139 = vmatprep.subr.bf16.mxu0 0
        %1140 = vmatpush1.bf16.msra.mxu0 %v978
        %1141 = vmatprep.subr.bf16.mxu0 0
        %1142 = vmatpush1.bf16.msra.mxu0 %v977
        %1143 = vmatprep.subr.bf16.mxu0 0
        %1144 = vmatpush1.bf16.msra.mxu0 %v976
        %1145 = vmatprep.subr.bf16.mxu0 0
        %1146 = vmatpush2.bf16.msra.mxu0 %v991
        %1147 = vmatprep.subr.bf16.mxu0 0
        %1148 = vmatpush2.bf16.msra.mxu0 %v990
        %1149 = vmatprep.subr.bf16.mxu0 0
        %1150 = vmatpush2.bf16.msra.mxu0 %v989
        %1151 = vmatprep.subr.bf16.mxu0 0
        %1152 = vmatpush2.bf16.msra.mxu0 %v988
        %1153 = vmatprep.subr.bf16.mxu0 0
        %1154 = vmatpush2.bf16.msra.mxu0 %v987
        %1155 = vmatprep.subr.bf16.mxu0 0
        %1156 = vmatpush2.bf16.msra.mxu0 %v986
        %1157 = vmatprep.subr.bf16.mxu0 0
        %1158 = vmatpush2.bf16.msra.mxu0 %v985
        %1159 = vmatprep.subr.bf16.mxu0 0
        %1160 = vmatpush2.bf16.msra.mxu0 %v984
        %1161 = vmatprep.mubr.bf16.mxu0 %v691
        %1162 = vmatmul.mubr.bf16.gmra.mxu0 %v690
        %v1163 = vpop.f32.mrf.mxu0
        %v1164 = vadd.f32 %v1123, %v1163
        %v1165 = vpop.f32.mrf.mxu0
        %v1166 = vpop.f32.mrf.mxu0
        %v1167 = vadd.f32 %v1126, %v1166
        %v1168 = vpop.f32.mrf.mxu0
        %1169 = vdwg.mxu0
        %1170 = vmatprep.subr.bf16.mxu0 0
        %1171 = vmatpush1.bf16.msra.mxu0 %v999
        %1172 = vmatprep.subr.bf16.mxu0 0
        %1173 = vmatpush1.bf16.msra.mxu0 %v998
        %1174 = vmatprep.subr.bf16.mxu0 0
        %1175 = vmatpush1.bf16.msra.mxu0 %v997
        %1176 = vmatprep.subr.bf16.mxu0 0
        %1177 = vmatpush1.bf16.msra.mxu0 %v996
        %1178 = vmatprep.subr.bf16.mxu0 0
        %1179 = vmatpush1.bf16.msra.mxu0 %v995
        %1180 = vmatprep.subr.bf16.mxu0 0
        %1181 = vmatpush1.bf16.msra.mxu0 %v994
        %1182 = vmatprep.subr.bf16.mxu0 0
        %1183 = vmatpush1.bf16.msra.mxu0 %v993
        %1184 = vmatprep.subr.bf16.mxu0 0
        %1185 = vmatpush1.bf16.msra.mxu0 %v992
        %1186 = vmatprep.subr.bf16.mxu0 0
        %1187 = vmatpush2.bf16.msra.mxu0 %v1007
        %1188 = vmatprep.subr.bf16.mxu0 0
        %1189 = vmatpush2.bf16.msra.mxu0 %v1006
        %1190 = vmatprep.subr.bf16.mxu0 0
        %1191 = vmatpush2.bf16.msra.mxu0 %v1005
        %1192 = vmatprep.subr.bf16.mxu0 0
        %1193 = vmatpush2.bf16.msra.mxu0 %v1004
        %1194 = vmatprep.subr.bf16.mxu0 0
        %1195 = vmatpush2.bf16.msra.mxu0 %v1003
        %1196 = vmatprep.subr.bf16.mxu0 0
        %1197 = vmatpush2.bf16.msra.mxu0 %v1002
        %1198 = vmatprep.subr.bf16.mxu0 0
        %1199 = vmatpush2.bf16.msra.mxu0 %v1001
        %1200 = vmatprep.subr.bf16.mxu0 0
        %1201 = vmatpush2.bf16.msra.mxu0 %v1000
        %1202 = vmatprep.mubr.bf16.mxu0 %v693
        %1203 = vmatmul.mubr.bf16.gmra.mxu0 %v692
        %v1204 = vpop.f32.mrf.mxu0
        %v1205 = vadd.f32 %v1164, %v1204
        %v1206 = vpop.f32.mrf.mxu0
        %v1207 = vpop.f32.mrf.mxu0
        %v1208 = vadd.f32 %v1167, %v1207
        %v1209 = vpop.f32.mrf.mxu0
        %1210 = vdwg.mxu0
        %1211 = vmatprep.subr.bf16.mxu0 0
        %1212 = vmatpush1.bf16.msra.mxu0 %v1015
        %1213 = vmatprep.subr.bf16.mxu0 0
        %1214 = vmatpush1.bf16.msra.mxu0 %v1014
        %1215 = vmatprep.subr.bf16.mxu0 0
        %1216 = vmatpush1.bf16.msra.mxu0 %v1013
        %1217 = vmatprep.subr.bf16.mxu0 0
        %1218 = vmatpush1.bf16.msra.mxu0 %v1012
        %1219 = vmatprep.subr.bf16.mxu0 0
        %1220 = vmatpush1.bf16.msra.mxu0 %v1011
        %1221 = vmatprep.subr.bf16.mxu0 0
        %1222 = vmatpush1.bf16.msra.mxu0 %v1010
        %1223 = vmatprep.subr.bf16.mxu0 0
        %1224 = vmatpush1.bf16.msra.mxu0 %v1009
        %1225 = vmatprep.subr.bf16.mxu0 0
        %1226 = vmatpush1.bf16.msra.mxu0 %v1008
        %1227 = vmatprep.subr.bf16.mxu0 0
        %1228 = vmatpush2.bf16.msra.mxu0 %v1023
        %1229 = vmatprep.subr.bf16.mxu0 0
        %1230 = vmatpush2.bf16.msra.mxu0 %v1022
        %1231 = vmatprep.subr.bf16.mxu0 0
        %1232 = vmatpush2.bf16.msra.mxu0 %v1021
        %1233 = vmatprep.subr.bf16.mxu0 0
        %1234 = vmatpush2.bf16.msra.mxu0 %v1020
        %1235 = vmatprep.subr.bf16.mxu0 0
        %1236 = vmatpush2.bf16.msra.mxu0 %v1019
        %1237 = vmatprep.subr.bf16.mxu0 0
        %1238 = vmatpush2.bf16.msra.mxu0 %v1018
        %1239 = vmatprep.subr.bf16.mxu0 0
        %1240 = vmatpush2.bf16.msra.mxu0 %v1017
        %1241 = vmatprep.subr.bf16.mxu0 0
        %1242 = vmatpush2.bf16.msra.mxu0 %v1016
        %1243 = vmatprep.mubr.bf16.mxu0 %v695
        %1244 = vmatmul.mubr.bf16.gmra.mxu0 %v694
        %v1245 = vpop.f32.mrf.mxu0
        %v1246 = vadd.f32 %v1205, %v1245
        %v1247 = vpop.f32.mrf.mxu0
        %v1248 = vpop.f32.mrf.mxu0
        %v1249 = vadd.f32 %v1208, %v1248
        %v1250 = vpop.f32.mrf.mxu0
        %1251 = vdwg.mxu0
        %v1252 = vmax.f32 %v1246, 0.0
        %v1253 = vmax.f32 %v1249, 0.0
        %v1254 = vpack.c.bf16 %v1253, %v1252
        %v1255 = vld [vmem:[#allocation7] sm:$0xf]
        %v1256 = vld [vmem:[#allocation7 + $0x4] sm:$0xf]
        %v1257 = vld [vmem:[#allocation7 + $0x8] sm:$0xf]
        %v1258 = vld [vmem:[#allocation7 + $0xc] sm:$0xf]
        %v1259 = vld [vmem:[#allocation7 + $0x10] sm:$0xf]
        %v1260 = vld [vmem:[#allocation7 + $0x14] sm:$0xf]
        %v1261 = vld [vmem:[#allocation7 + $0x18] sm:$0xf]
        %v1262 = vld [vmem:[#allocation7 + $0x1c] sm:$0xf]
        %v1263 = vld [vmem:[#allocation7 + $0x20] sm:$0xf]
        %v1264 = vld [vmem:[#allocation7 + $0x24] sm:$0xf]
        %v1265 = vld [vmem:[#allocation7 + $0x28] sm:$0xf]
        %v1266 = vld [vmem:[#allocation7 + $0x2c] sm:$0xf]
        %v1267 = vld [vmem:[#allocation7 + $0x30] sm:$0xf]
        %v1268 = vld [vmem:[#allocation7 + $0x34] sm:$0xf]
        %v1269 = vld [vmem:[#allocation7 + $0x38] sm:$0xf]
        %v1270 = vld [vmem:[#allocation7 + $0x3c] sm:$0xf]
        %v1271 = vld [vmem:[%s4] sm:$0x1]
        %v1273 = vlaneseq
        %v1274 = vshrl.u32 %v1273, 7
        %v1275 = vsub.s32 0, %v1274
        %v1276 = vrot.slane %v1271, %v1275
        %v1294 = vunpack.c.l.b16 %v1255
        %v1295 = vunpack.c.l.b16 %v1256
        %v1296 = vunpack.c.l.b16 %v1257
        %v1297 = vunpack.c.l.b16 %v1258
        %v1298 = vunpack.c.l.b16 %v1259
        %v1299 = vunpack.c.l.b16 %v1260
        %v1300 = vunpack.c.l.b16 %v1261
        %v1301 = vunpack.c.l.b16 %v1262
        %v1302 = vunpack.c.l.b16 %v1263
        %v1303 = vunpack.c.l.b16 %v1264
        %v1304 = vunpack.c.l.b16 %v1265
        %v1305 = vunpack.c.l.b16 %v1266
        %v1306 = vunpack.c.l.b16 %v1267
        %v1307 = vunpack.c.l.b16 %v1268
        %v1308 = vunpack.c.l.b16 %v1269
        %v1309 = vunpack.c.l.b16 %v1270
        %v1310 = vpack.c.b16 %v1295, %v1294
        %v1311 = vpack.c.b16 %v1297, %v1296
        %v1312 = vpack.c.b16 %v1299, %v1298
        %v1313 = vpack.c.b16 %v1301, %v1300
        %v1314 = vpack.c.b16 %v1303, %v1302
        %v1315 = vpack.c.b16 %v1305, %v1304
        %v1316 = vpack.c.b16 %v1307, %v1306
        %v1317 = vpack.c.b16 %v1309, %v1308
        %1326 = vmatprep.subr.bf16.mxu0 0
        %1327 = vmatpush1.bf16.msra.mxu0 %v1317
        %1328 = vmatprep.subr.bf16.mxu0 0
        %1329 = vmatpush1.bf16.msra.mxu0 %v1316
        %1330 = vmatprep.subr.bf16.mxu0 0
        %1331 = vmatpush1.bf16.msra.mxu0 %v1315
        %1332 = vmatprep.subr.bf16.mxu0 0
        %1333 = vmatpush1.bf16.msra.mxu0 %v1314
        %1334 = vmatprep.subr.bf16.mxu0 0
        %1335 = vmatpush1.bf16.msra.mxu0 %v1313
        %1336 = vmatprep.subr.bf16.mxu0 0
        %1337 = vmatpush1.bf16.msra.mxu0 %v1312
        %1338 = vmatprep.subr.bf16.mxu0 0
        %1339 = vmatpush1.bf16.msra.mxu0 %v1311
        %1340 = vmatprep.subr.bf16.mxu0 0
        %1341 = vmatpush1.bf16.msra.mxu0 %v1310
        %1342 = vmatprep.subr.bf16.mxu0 0
        %1343 = vmatpush2.bf16.msra.mxu0 0
        %1344 = vmatprep.subr.bf16.mxu0 0
        %1345 = vmatpush2.bf16.msra.mxu0 0
        %1346 = vmatprep.subr.bf16.mxu0 0
        %1347 = vmatpush2.bf16.msra.mxu0 0
        %1348 = vmatprep.subr.bf16.mxu0 0
        %1349 = vmatpush2.bf16.msra.mxu0 0
        %1350 = vmatprep.subr.bf16.mxu0 0
        %1351 = vmatpush2.bf16.msra.mxu0 0
        %1352 = vmatprep.subr.bf16.mxu0 0
        %1353 = vmatpush2.bf16.msra.mxu0 0
        %1354 = vmatprep.subr.bf16.mxu0 0
        %1355 = vmatpush2.bf16.msra.mxu0 0
        %1356 = vmatprep.subr.bf16.mxu0 0
        %1357 = vmatpush2.bf16.msra.mxu0 0
        %1358 = vmatprep.mubr.bf16.mxu0 0
        %1359 = vmatmul.mubr.bf16.gmra.mxu0 %v1254
        %v1360 = vpop.f32.mrf.mxu0
        %v1361 = vadd.f32 %v1276, %v1360
        %v1362 = vpop.f32.mrf.mxu0
        %v1363 = vpop.f32.mrf.mxu0
        %v1364 = vadd.f32 %v1276, %v1363
        %v1365 = vpop.f32.mrf.mxu0
        %1366 = vdwg.mxu0
        %1367 = vst [vmem:[%s516] sm:$0xff] %v1361
        %1368 = vst [vmem:[%s516 + $0x8] sm:$0xff] %v1364
        %v1369 = vpack.c.bf16 %v1364, %v1361
        %v1370 = vld [vmem:[#allocation8] sm:$0xf]
        %v1371 = vld [vmem:[#allocation8 + $0x4] sm:$0xf]
        %v1372 = vld [vmem:[#allocation8 + $0x8] sm:$0xf]
        %v1373 = vld [vmem:[#allocation8 + $0xc] sm:$0xf]
        %v1374 = vld [vmem:[#allocation8 + $0x10] sm:$0xf]
        %v1375 = vld [vmem:[#allocation8 + $0x14] sm:$0xf]
        %v1376 = vld [vmem:[#allocation8 + $0x18] sm:$0xf]
        %v1377 = vld [vmem:[#allocation8 + $0x1c] sm:$0xf]
        %v1378 = vld [vmem:[#allocation8 + $0x20] sm:$0xf]
        %v1379 = vld [vmem:[#allocation8 + $0x24] sm:$0xf]
        %v1380 = vld [vmem:[#allocation8 + $0x28] sm:$0xf]
        %v1381 = vld [vmem:[#allocation8 + $0x2c] sm:$0xf]
        %v1382 = vld [vmem:[#allocation8 + $0x30] sm:$0xf]
        %v1383 = vld [vmem:[#allocation8 + $0x34] sm:$0xf]
        %v1384 = vld [vmem:[#allocation8 + $0x38] sm:$0xf]
        %v1385 = vld [vmem:[#allocation8 + $0x3c] sm:$0xf]
        %v1386 = vld [vmem:[%s6] sm:$0x1]
        %v1388 = vlaneseq
        %v1389 = vshrl.u32 %v1388, 7
        %v1390 = vsub.s32 0, %v1389
        %v1391 = vrot.slane %v1386, %v1390
        %v1409 = vunpack.c.l.b16 %v1370
        %v1410 = vunpack.c.l.b16 %v1371
        %v1411 = vunpack.c.l.b16 %v1372
        %v1412 = vunpack.c.l.b16 %v1373
        %v1413 = vunpack.c.l.b16 %v1374
        %v1414 = vunpack.c.l.b16 %v1375
        %v1415 = vunpack.c.l.b16 %v1376
        %v1416 = vunpack.c.l.b16 %v1377
        %v1417 = vunpack.c.l.b16 %v1378
        %v1418 = vunpack.c.l.b16 %v1379
        %v1419 = vunpack.c.l.b16 %v1380
        %v1420 = vunpack.c.l.b16 %v1381
        %v1421 = vunpack.c.l.b16 %v1382
        %v1422 = vunpack.c.l.b16 %v1383
        %v1423 = vunpack.c.l.b16 %v1384
        %v1424 = vunpack.c.l.b16 %v1385
        %v1425 = vpack.c.b16 %v1410, %v1409
        %v1426 = vpack.c.b16 %v1412, %v1411
        %v1427 = vpack.c.b16 %v1414, %v1413
        %v1428 = vpack.c.b16 %v1416, %v1415
        %v1429 = vpack.c.b16 %v1418, %v1417
        %v1430 = vpack.c.b16 %v1420, %v1419
        %v1431 = vpack.c.b16 %v1422, %v1421
        %v1432 = vpack.c.b16 %v1424, %v1423
        %1441 = vmatprep.subr.bf16.mxu0 0
        %1442 = vmatpush1.bf16.msra.mxu0 %v1432
        %1443 = vmatprep.subr.bf16.mxu0 0
        %1444 = vmatpush1.bf16.msra.mxu0 %v1431
        %1445 = vmatprep.subr.bf16.mxu0 0
        %1446 = vmatpush1.bf16.msra.mxu0 %v1430
        %1447 = vmatprep.subr.bf16.mxu0 0
        %1448 = vmatpush1.bf16.msra.mxu0 %v1429
        %1449 = vmatprep.subr.bf16.mxu0 0
        %1450 = vmatpush1.bf16.msra.mxu0 %v1428
        %1451 = vmatprep.subr.bf16.mxu0 0
        %1452 = vmatpush1.bf16.msra.mxu0 %v1427
        %1453 = vmatprep.subr.bf16.mxu0 0
        %1454 = vmatpush1.bf16.msra.mxu0 %v1426
        %1455 = vmatprep.subr.bf16.mxu0 0
        %1456 = vmatpush1.bf16.msra.mxu0 %v1425
        %1457 = vmatprep.subr.bf16.mxu0 0
        %1458 = vmatpush2.bf16.msra.mxu0 0
        %1459 = vmatprep.subr.bf16.mxu0 0
        %1460 = vmatpush2.bf16.msra.mxu0 0
        %1461 = vmatprep.subr.bf16.mxu0 0
        %1462 = vmatpush2.bf16.msra.mxu0 0
        %1463 = vmatprep.subr.bf16.mxu0 0
        %1464 = vmatpush2.bf16.msra.mxu0 0
        %1465 = vmatprep.subr.bf16.mxu0 0
        %1466 = vmatpush2.bf16.msra.mxu0 0
        %1467 = vmatprep.subr.bf16.mxu0 0
        %1468 = vmatpush2.bf16.msra.mxu0 0
        %1469 = vmatprep.subr.bf16.mxu0 0
        %1470 = vmatpush2.bf16.msra.mxu0 0
        %1471 = vmatprep.subr.bf16.mxu0 0
        %1472 = vmatpush2.bf16.msra.mxu0 0
        %1473 = vmatprep.mubr.bf16.mxu0 0
        %1474 = vmatmul.mubr.bf16.gmra.mxu0 %v1369
        %v1475 = vpop.f32.mrf.mxu0
        %v1476 = vadd.f32 %v1391, %v1475
        %v1477 = vpop.f32.mrf.mxu0
        %v1478 = vpop.f32.mrf.mxu0
        %v1479 = vadd.f32 %v1391, %v1478
        %v1480 = vpop.f32.mrf.mxu0
        %1481 = vdwg.mxu0
        %v1482 = vmax.f32 %v1476, 0.0
        %v1483 = vmax.f32 %v1479, 0.0
        %v1484 = vpack.c.bf16 %v1483, %v1482
        %v1485 = vld [vmem:[#allocation10] sm:$0xff]
        %v1486 = vld [vmem:[#allocation10 + $0x8] sm:$0xff]
        %v1487 = vld [vmem:[#allocation10 + $0x10] sm:$0xff]
        %v1488 = vld [vmem:[#allocation10 + $0x18] sm:$0xff]
        %v1489 = vld [vmem:[#allocation10 + $0x20] sm:$0xff]
        %v1490 = vld [vmem:[#allocation10 + $0x28] sm:$0xff]
        %v1491 = vld [vmem:[#allocation10 + $0x30] sm:$0xff]
        %v1492 = vld [vmem:[#allocation10 + $0x38] sm:$0xff]
        %v1493 = vld [vmem:[#allocation10 + $0x40] sm:$0xff]
        %v1494 = vld [vmem:[#allocation10 + $0x48] sm:$0xff]
        %v1495 = vld [vmem:[#allocation10 + $0x50] sm:$0xff]
        %v1496 = vld [vmem:[#allocation10 + $0x58] sm:$0xff]
        %v1497 = vld [vmem:[#allocation10 + $0x60] sm:$0xff]
        %v1498 = vld [vmem:[#allocation10 + $0x68] sm:$0xff]
        %v1499 = vld [vmem:[#allocation10 + $0x70] sm:$0xff]
        %v1500 = vld [vmem:[#allocation10 + $0x78] sm:$0xff]
        %v1501 = vld [vmem:[#allocation10 + $0x80] sm:$0xff]
        %v1502 = vld [vmem:[#allocation10 + $0x88] sm:$0xff]
        %v1503 = vld [vmem:[#allocation10 + $0x90] sm:$0xff]
        %v1504 = vld [vmem:[#allocation10 + $0x98] sm:$0xff]
        %v1505 = vld [vmem:[#allocation10 + $0xa0] sm:$0xff]
        %v1506 = vld [vmem:[#allocation10 + $0xa8] sm:$0xff]
        %v1507 = vld [vmem:[#allocation10 + $0xb0] sm:$0xff]
        %v1508 = vld [vmem:[#allocation10 + $0xb8] sm:$0xff]
        %v1509 = vld [vmem:[#allocation10 + $0xc0] sm:$0xff]
        %v1510 = vld [vmem:[#allocation10 + $0xc8] sm:$0xff]
        %v1511 = vld [vmem:[#allocation10 + $0xd0] sm:$0xff]
        %v1512 = vld [vmem:[#allocation10 + $0xd8] sm:$0xff]
        %v1513 = vld [vmem:[#allocation10 + $0xe0] sm:$0xff]
        %v1514 = vld [vmem:[#allocation10 + $0xe8] sm:$0xff]
        %v1515 = vld [vmem:[#allocation10 + $0xf0] sm:$0xff]
        %v1516 = vld [vmem:[#allocation10 + $0xf8] sm:$0xff]
        %v1517 = vld [vmem:[%s8] sm:$0xf]
        %v1519 = vlaneseq
        %v1520 = vshrl.u32 %v1519, 7
        %v1521 = vsub.s32 0, %v1520
        %v1522 = vrot.slane %v1517, %v1521
        %v1523 = vlaneseq
        %v1524 = vshrl.u32 %v1523, 7
        %v1525 = vsub.s32 1, %v1524
        %v1526 = vrot.slane %v1517, %v1525
        %v1527 = vlaneseq
        %v1528 = vshrl.u32 %v1527, 7
        %v1529 = vsub.s32 2, %v1528
        %v1530 = vrot.slane %v1517, %v1529
        %v1531 = vlaneseq
        %v1532 = vshrl.u32 %v1531, 7
        %v1533 = vsub.s32 3, %v1532
        %v1534 = vrot.slane %v1517, %v1533
        %v1571 = vunpack.c.l.b16 %v1485
        %v1572 = vunpack.c.h.b16 %v1485
        %v1573 = vunpack.c.l.b16 %v1486
        %v1574 = vunpack.c.h.b16 %v1486
        %v1575 = vunpack.c.l.b16 %v1487
        %v1576 = vunpack.c.h.b16 %v1487
        %v1577 = vunpack.c.l.b16 %v1488
        %v1578 = vunpack.c.h.b16 %v1488
        %v1579 = vunpack.c.l.b16 %v1489
        %v1580 = vunpack.c.h.b16 %v1489
        %v1581 = vunpack.c.l.b16 %v1490
        %v1582 = vunpack.c.h.b16 %v1490
        %v1583 = vunpack.c.l.b16 %v1491
        %v1584 = vunpack.c.h.b16 %v1491
        %v1585 = vunpack.c.l.b16 %v1492
        %v1586 = vunpack.c.h.b16 %v1492
        %v1587 = vunpack.c.l.b16 %v1493
        %v1588 = vunpack.c.h.b16 %v1493
        %v1589 = vunpack.c.l.b16 %v1494
        %v1590 = vunpack.c.h.b16 %v1494
        %v1591 = vunpack.c.l.b16 %v1495
        %v1592 = vunpack.c.h.b16 %v1495
        %v1593 = vunpack.c.l.b16 %v1496
        %v1594 = vunpack.c.h.b16 %v1496
        %v1595 = vunpack.c.l.b16 %v1497
        %v1596 = vunpack.c.h.b16 %v1497
        %v1597 = vunpack.c.l.b16 %v1498
        %v1598 = vunpack.c.h.b16 %v1498
        %v1599 = vunpack.c.l.b16 %v1499
        %v1600 = vunpack.c.h.b16 %v1499
        %v1601 = vunpack.c.l.b16 %v1500
        %v1602 = vunpack.c.h.b16 %v1500
        %v1603 = vunpack.c.l.b16 %v1501
        %v1604 = vunpack.c.h.b16 %v1501
        %v1605 = vunpack.c.l.b16 %v1502
        %v1606 = vunpack.c.h.b16 %v1502
        %v1607 = vunpack.c.l.b16 %v1503
        %v1608 = vunpack.c.h.b16 %v1503
        %v1609 = vunpack.c.l.b16 %v1504
        %v1610 = vunpack.c.h.b16 %v1504
        %v1611 = vunpack.c.l.b16 %v1505
        %v1612 = vunpack.c.h.b16 %v1505
        %v1613 = vunpack.c.l.b16 %v1506
        %v1614 = vunpack.c.h.b16 %v1506
        %v1615 = vunpack.c.l.b16 %v1507
        %v1616 = vunpack.c.h.b16 %v1507
        %v1617 = vunpack.c.l.b16 %v1508
        %v1618 = vunpack.c.h.b16 %v1508
        %v1619 = vunpack.c.l.b16 %v1509
        %v1620 = vunpack.c.h.b16 %v1509
        %v1621 = vunpack.c.l.b16 %v1510
        %v1622 = vunpack.c.h.b16 %v1510
        %v1623 = vunpack.c.l.b16 %v1511
        %v1624 = vunpack.c.h.b16 %v1511
        %v1625 = vunpack.c.l.b16 %v1512
        %v1626 = vunpack.c.h.b16 %v1512
        %v1627 = vunpack.c.l.b16 %v1513
        %v1628 = vunpack.c.h.b16 %v1513
        %v1629 = vunpack.c.l.b16 %v1514
        %v1630 = vunpack.c.h.b16 %v1514
        %v1631 = vunpack.c.l.b16 %v1515
        %v1632 = vunpack.c.h.b16 %v1515
        %v1633 = vunpack.c.l.b16 %v1516
        %v1634 = vunpack.c.h.b16 %v1516
        %v1635 = vpack.c.b16 %v1575, %v1571
        %v1636 = vpack.c.b16 %v1576, %v1572
        %v1637 = vpack.c.b16 %v1577, %v1573
        %v1638 = vpack.c.b16 %v1578, %v1574
        %v1639 = vpack.c.b16 %v1583, %v1579
        %v1640 = vpack.c.b16 %v1584, %v1580
        %v1641 = vpack.c.b16 %v1585, %v1581
        %v1642 = vpack.c.b16 %v1586, %v1582
        %v1643 = vpack.c.b16 %v1591, %v1587
        %v1644 = vpack.c.b16 %v1592, %v1588
        %v1645 = vpack.c.b16 %v1593, %v1589
        %v1646 = vpack.c.b16 %v1594, %v1590
        %v1647 = vpack.c.b16 %v1599, %v1595
        %v1648 = vpack.c.b16 %v1600, %v1596
        %v1649 = vpack.c.b16 %v1601, %v1597
        %v1650 = vpack.c.b16 %v1602, %v1598
        %v1651 = vpack.c.b16 %v1607, %v1603
        %v1652 = vpack.c.b16 %v1608, %v1604
        %v1653 = vpack.c.b16 %v1609, %v1605
        %v1654 = vpack.c.b16 %v1610, %v1606
        %v1655 = vpack.c.b16 %v1615, %v1611
        %v1656 = vpack.c.b16 %v1616, %v1612
        %v1657 = vpack.c.b16 %v1617, %v1613
        %v1658 = vpack.c.b16 %v1618, %v1614
        %v1659 = vpack.c.b16 %v1623, %v1619
        %v1660 = vpack.c.b16 %v1624, %v1620
        %v1661 = vpack.c.b16 %v1625, %v1621
        %v1662 = vpack.c.b16 %v1626, %v1622
        %v1663 = vpack.c.b16 %v1631, %v1627
        %v1664 = vpack.c.b16 %v1632, %v1628
        %v1665 = vpack.c.b16 %v1633, %v1629
        %v1666 = vpack.c.b16 %v1634, %v1630
        %1699 = vmatprep.subr.bf16.mxu0 %v1664
        %1700 = vmatpush1.bf16.msra.mxu0 %v1663
        %1701 = vmatprep.subr.bf16.mxu0 %v1660
        %1702 = vmatpush1.bf16.msra.mxu0 %v1659
        %1703 = vmatprep.subr.bf16.mxu0 %v1656
        %1704 = vmatpush1.bf16.msra.mxu0 %v1655
        %1705 = vmatprep.subr.bf16.mxu0 %v1652
        %1706 = vmatpush1.bf16.msra.mxu0 %v1651
        %1707 = vmatprep.subr.bf16.mxu0 %v1648
        %1708 = vmatpush1.bf16.msra.mxu0 %v1647
        %1709 = vmatprep.subr.bf16.mxu0 %v1644
        %1710 = vmatpush1.bf16.msra.mxu0 %v1643
        %1711 = vmatprep.subr.bf16.mxu0 %v1640
        %1712 = vmatpush1.bf16.msra.mxu0 %v1639
        %1713 = vmatprep.subr.bf16.mxu0 %v1636
        %1714 = vmatpush1.bf16.msra.mxu0 %v1635
        %1715 = vmatprep.subr.bf16.mxu0 0
        %1716 = vmatpush2.bf16.msra.mxu0 0
        %1717 = vmatprep.subr.bf16.mxu0 0
        %1718 = vmatpush2.bf16.msra.mxu0 0
        %1719 = vmatprep.subr.bf16.mxu0 0
        %1720 = vmatpush2.bf16.msra.mxu0 0
        %1721 = vmatprep.subr.bf16.mxu0 0
        %1722 = vmatpush2.bf16.msra.mxu0 0
        %1723 = vmatprep.subr.bf16.mxu0 0
        %1724 = vmatpush2.bf16.msra.mxu0 0
        %1725 = vmatprep.subr.bf16.mxu0 0
        %1726 = vmatpush2.bf16.msra.mxu0 0
        %1727 = vmatprep.subr.bf16.mxu0 0
        %1728 = vmatpush2.bf16.msra.mxu0 0
        %1729 = vmatprep.subr.bf16.mxu0 0
        %1730 = vmatpush2.bf16.msra.mxu0 0
        %1731 = vmatprep.mubr.bf16.mxu0 0
        %1732 = vmatmul.mubr.bf16.gmra.mxu0 %v1484
        %v1733 = vpop.f32.mrf.mxu0
        %v1734 = vadd.f32 %v1522, %v1733
        %v1735 = vpop.f32.mrf.mxu0
        %v1736 = vadd.f32 %v1526, %v1735
        %v1737 = vpop.f32.mrf.mxu0
        %v1738 = vadd.f32 %v1522, %v1737
        %v1739 = vpop.f32.mrf.mxu0
        %v1740 = vadd.f32 %v1526, %v1739
        %1741 = vdwg.mxu0
        %1742 = vmatprep.subr.bf16.mxu0 %v1666
        %1743 = vmatpush1.bf16.msra.mxu0 %v1665
        %1744 = vmatprep.subr.bf16.mxu0 %v1662
        %1745 = vmatpush1.bf16.msra.mxu0 %v1661
        %1746 = vmatprep.subr.bf16.mxu0 %v1658
        %1747 = vmatpush1.bf16.msra.mxu0 %v1657
        %1748 = vmatprep.subr.bf16.mxu0 %v1654
        %1749 = vmatpush1.bf16.msra.mxu0 %v1653
        %1750 = vmatprep.subr.bf16.mxu0 %v1650
        %1751 = vmatpush1.bf16.msra.mxu0 %v1649
        %1752 = vmatprep.subr.bf16.mxu0 %v1646
        %1753 = vmatpush1.bf16.msra.mxu0 %v1645
        %1754 = vmatprep.subr.bf16.mxu0 %v1642
        %1755 = vmatpush1.bf16.msra.mxu0 %v1641
        %1756 = vmatprep.subr.bf16.mxu0 %v1638
        %1757 = vmatpush1.bf16.msra.mxu0 %v1637
        %1758 = vmatprep.subr.bf16.mxu0 0
        %1759 = vmatpush2.bf16.msra.mxu0 0
        %1760 = vmatprep.subr.bf16.mxu0 0
        %1761 = vmatpush2.bf16.msra.mxu0 0
        %1762 = vmatprep.subr.bf16.mxu0 0
        %1763 = vmatpush2.bf16.msra.mxu0 0
        %1764 = vmatprep.subr.bf16.mxu0 0
        %1765 = vmatpush2.bf16.msra.mxu0 0
        %1766 = vmatprep.subr.bf16.mxu0 0
        %1767 = vmatpush2.bf16.msra.mxu0 0
        %1768 = vmatprep.subr.bf16.mxu0 0
        %1769 = vmatpush2.bf16.msra.mxu0 0
        %1770 = vmatprep.subr.bf16.mxu0 0
        %1771 = vmatpush2.bf16.msra.mxu0 0
        %1772 = vmatprep.subr.bf16.mxu0 0
        %1773 = vmatpush2.bf16.msra.mxu0 0
        %1774 = vmatprep.mubr.bf16.mxu0 0
        %1775 = vmatmul.mubr.bf16.gmra.mxu0 %v1484
        %v1776 = vpop.f32.mrf.mxu0
        %v1777 = vadd.f32 %v1530, %v1776
        %v1778 = vpop.f32.mrf.mxu0
        %v1779 = vadd.f32 %v1534, %v1778
        %v1780 = vpop.f32.mrf.mxu0
        %v1781 = vadd.f32 %v1530, %v1780
        %v1782 = vpop.f32.mrf.mxu0
        %v1783 = vadd.f32 %v1534, %v1782
        %1784 = vdwg.mxu0
        %v1785 = vmax.f32 %v1734, 0.0
        %v1786 = vmax.f32 %v1736, 0.0
        %v1787 = vmax.f32 %v1777, 0.0
        %v1788 = vmax.f32 %v1779, 0.0
        %v1789 = vmax.f32 %v1738, 0.0
        %v1790 = vmax.f32 %v1740, 0.0
        %v1791 = vmax.f32 %v1781, 0.0
        %v1792 = vmax.f32 %v1783, 0.0
        %v1793 = vpack.c.bf16 %v1789, %v1785
        %v1794 = vpack.c.bf16 %v1790, %v1786
        %v1795 = vpack.c.bf16 %v1791, %v1787
        %v1796 = vpack.c.bf16 %v1792, %v1788
        %v1797 = vld [vmem:[#allocation11] sm:$0xff]
        %v1798 = vld [vmem:[#allocation11 + $0x8] sm:$0xff]
        %v1799 = vld [vmem:[#allocation11 + $0x10] sm:$0xff]
        %v1800 = vld [vmem:[#allocation11 + $0x18] sm:$0xff]
        %v1801 = vld [vmem:[#allocation11 + $0x20] sm:$0xff]
        %v1802 = vld [vmem:[#allocation11 + $0x28] sm:$0xff]
        %v1803 = vld [vmem:[#allocation11 + $0x30] sm:$0xff]
        %v1804 = vld [vmem:[#allocation11 + $0x38] sm:$0xff]
        %v1805 = vld [vmem:[#allocation11 + $0x40] sm:$0xff]
        %v1806 = vld [vmem:[#allocation11 + $0x48] sm:$0xff]
        %v1807 = vld [vmem:[#allocation11 + $0x50] sm:$0xff]
        %v1808 = vld [vmem:[#allocation11 + $0x58] sm:$0xff]
        %v1809 = vld [vmem:[#allocation11 + $0x60] sm:$0xff]
        %v1810 = vld [vmem:[#allocation11 + $0x68] sm:$0xff]
        %v1811 = vld [vmem:[#allocation11 + $0x70] sm:$0xff]
        %v1812 = vld [vmem:[#allocation11 + $0x78] sm:$0xff]
        %v1813 = vld [vmem:[#allocation11 + $0x80] sm:$0xff]
        %v1814 = vld [vmem:[#allocation11 + $0x88] sm:$0xff]
        %v1815 = vld [vmem:[#allocation11 + $0x90] sm:$0xff]
        %v1816 = vld [vmem:[#allocation11 + $0x98] sm:$0xff]
        %v1817 = vld [vmem:[#allocation11 + $0xa0] sm:$0xff]
        %v1818 = vld [vmem:[#allocation11 + $0xa8] sm:$0xff]
        %v1819 = vld [vmem:[#allocation11 + $0xb0] sm:$0xff]
        %v1820 = vld [vmem:[#allocation11 + $0xb8] sm:$0xff]
        %v1821 = vld [vmem:[#allocation11 + $0xc0] sm:$0xff]
        %v1822 = vld [vmem:[#allocation11 + $0xc8] sm:$0xff]
        %v1823 = vld [vmem:[#allocation11 + $0xd0] sm:$0xff]
        %v1824 = vld [vmem:[#allocation11 + $0xd8] sm:$0xff]
        %v1825 = vld [vmem:[#allocation11 + $0xe0] sm:$0xff]
        %v1826 = vld [vmem:[#allocation11 + $0xe8] sm:$0xff]
        %v1827 = vld [vmem:[#allocation11 + $0xf0] sm:$0xff]
        %v1828 = vld [vmem:[#allocation11 + $0xf8] sm:$0xff]
        %v1829 = vld [vmem:[#allocation11 + $0x100] sm:$0xff]
        %v1830 = vld [vmem:[#allocation11 + $0x108] sm:$0xff]
        %v1831 = vld [vmem:[#allocation11 + $0x110] sm:$0xff]
        %v1832 = vld [vmem:[#allocation11 + $0x118] sm:$0xff]
        %v1833 = vld [vmem:[#allocation11 + $0x120] sm:$0xff]
        %v1834 = vld [vmem:[#allocation11 + $0x128] sm:$0xff]
        %v1835 = vld [vmem:[#allocation11 + $0x130] sm:$0xff]
        %v1836 = vld [vmem:[#allocation11 + $0x138] sm:$0xff]
        %v1837 = vld [vmem:[#allocation11 + $0x140] sm:$0xff]
        %v1838 = vld [vmem:[#allocation11 + $0x148] sm:$0xff]
        %v1839 = vld [vmem:[#allocation11 + $0x150] sm:$0xff]
        %v1840 = vld [vmem:[#allocation11 + $0x158] sm:$0xff]
        %v1841 = vld [vmem:[#allocation11 + $0x160] sm:$0xff]
        %v1842 = vld [vmem:[#allocation11 + $0x168] sm:$0xff]
        %v1843 = vld [vmem:[#allocation11 + $0x170] sm:$0xff]
        %v1844 = vld [vmem:[#allocation11 + $0x178] sm:$0xff]
        %v1845 = vld [vmem:[#allocation11 + $0x180] sm:$0xff]
        %v1846 = vld [vmem:[#allocation11 + $0x188] sm:$0xff]
        %v1847 = vld [vmem:[#allocation11 + $0x190] sm:$0xff]
        %v1848 = vld [vmem:[#allocation11 + $0x198] sm:$0xff]
        %v1849 = vld [vmem:[#allocation11 + $0x1a0] sm:$0xff]
        %v1850 = vld [vmem:[#allocation11 + $0x1a8] sm:$0xff]
        %v1851 = vld [vmem:[#allocation11 + $0x1b0] sm:$0xff]
        %v1852 = vld [vmem:[#allocation11 + $0x1b8] sm:$0xff]
        %v1853 = vld [vmem:[#allocation11 + $0x1c0] sm:$0xff]
        %v1854 = vld [vmem:[#allocation11 + $0x1c8] sm:$0xff]
        %v1855 = vld [vmem:[#allocation11 + $0x1d0] sm:$0xff]
        %v1856 = vld [vmem:[#allocation11 + $0x1d8] sm:$0xff]
        %v1857 = vld [vmem:[#allocation11 + $0x1e0] sm:$0xff]
        %v1858 = vld [vmem:[#allocation11 + $0x1e8] sm:$0xff]
        %v1859 = vld [vmem:[#allocation11 + $0x1f0] sm:$0xff]
        %v1860 = vld [vmem:[#allocation11 + $0x1f8] sm:$0xff]
        %v1861 = vld [vmem:[#allocation11 + $0x200] sm:$0xff]
        %v1862 = vld [vmem:[#allocation11 + $0x208] sm:$0xff]
        %v1863 = vld [vmem:[#allocation11 + $0x210] sm:$0xff]
        %v1864 = vld [vmem:[#allocation11 + $0x218] sm:$0xff]
        %v1865 = vld [vmem:[#allocation11 + $0x220] sm:$0xff]
        %v1866 = vld [vmem:[#allocation11 + $0x228] sm:$0xff]
        %v1867 = vld [vmem:[#allocation11 + $0x230] sm:$0xff]
        %v1868 = vld [vmem:[#allocation11 + $0x238] sm:$0xff]
        %v1869 = vld [vmem:[#allocation11 + $0x240] sm:$0xff]
        %v1870 = vld [vmem:[#allocation11 + $0x248] sm:$0xff]
        %v1871 = vld [vmem:[#allocation11 + $0x250] sm:$0xff]
        %v1872 = vld [vmem:[#allocation11 + $0x258] sm:$0xff]
        %v1873 = vld [vmem:[#allocation11 + $0x260] sm:$0xff]
        %v1874 = vld [vmem:[#allocation11 + $0x268] sm:$0xff]
        %v1875 = vld [vmem:[#allocation11 + $0x270] sm:$0xff]
        %v1876 = vld [vmem:[#allocation11 + $0x278] sm:$0xff]
        %v1877 = vld [vmem:[#allocation11 + $0x280] sm:$0xff]
        %v1878 = vld [vmem:[#allocation11 + $0x288] sm:$0xff]
        %v1879 = vld [vmem:[#allocation11 + $0x290] sm:$0xff]
        %v1880 = vld [vmem:[#allocation11 + $0x298] sm:$0xff]
        %v1881 = vld [vmem:[#allocation11 + $0x2a0] sm:$0xff]
        %v1882 = vld [vmem:[#allocation11 + $0x2a8] sm:$0xff]
        %v1883 = vld [vmem:[#allocation11 + $0x2b0] sm:$0xff]
        %v1884 = vld [vmem:[#allocation11 + $0x2b8] sm:$0xff]
        %v1885 = vld [vmem:[#allocation11 + $0x2c0] sm:$0xff]
        %v1886 = vld [vmem:[#allocation11 + $0x2c8] sm:$0xff]
        %v1887 = vld [vmem:[#allocation11 + $0x2d0] sm:$0xff]
        %v1888 = vld [vmem:[#allocation11 + $0x2d8] sm:$0xff]
        %v1889 = vld [vmem:[#allocation11 + $0x2e0] sm:$0xff]
        %v1890 = vld [vmem:[#allocation11 + $0x2e8] sm:$0xff]
        %v1891 = vld [vmem:[#allocation11 + $0x2f0] sm:$0xff]
        %v1892 = vld [vmem:[#allocation11 + $0x2f8] sm:$0xff]
        %v1893 = vld [vmem:[#allocation11 + $0x300] sm:$0xff]
        %v1894 = vld [vmem:[#allocation11 + $0x308] sm:$0xff]
        %v1895 = vld [vmem:[#allocation11 + $0x310] sm:$0xff]
        %v1896 = vld [vmem:[#allocation11 + $0x318] sm:$0xff]
        %v1897 = vld [vmem:[#allocation11 + $0x320] sm:$0xff]
        %v1898 = vld [vmem:[#allocation11 + $0x328] sm:$0xff]
        %v1899 = vld [vmem:[#allocation11 + $0x330] sm:$0xff]
        %v1900 = vld [vmem:[#allocation11 + $0x338] sm:$0xff]
        %v1901 = vld [vmem:[#allocation11 + $0x340] sm:$0xff]
        %v1902 = vld [vmem:[#allocation11 + $0x348] sm:$0xff]
        %v1903 = vld [vmem:[#allocation11 + $0x350] sm:$0xff]
        %v1904 = vld [vmem:[#allocation11 + $0x358] sm:$0xff]
        %v1905 = vld [vmem:[#allocation11 + $0x360] sm:$0xff]
        %v1906 = vld [vmem:[#allocation11 + $0x368] sm:$0xff]
        %v1907 = vld [vmem:[#allocation11 + $0x370] sm:$0xff]
        %v1908 = vld [vmem:[#allocation11 + $0x378] sm:$0xff]
        %v1909 = vld [vmem:[#allocation11 + $0x380] sm:$0xff]
        %v1910 = vld [vmem:[#allocation11 + $0x388] sm:$0xff]
        %v1911 = vld [vmem:[#allocation11 + $0x390] sm:$0xff]
        %v1912 = vld [vmem:[#allocation11 + $0x398] sm:$0xff]
        %v1913 = vld [vmem:[#allocation11 + $0x3a0] sm:$0xff]
        %v1914 = vld [vmem:[#allocation11 + $0x3a8] sm:$0xff]
        %v1915 = vld [vmem:[#allocation11 + $0x3b0] sm:$0xff]
        %v1916 = vld [vmem:[#allocation11 + $0x3b8] sm:$0xff]
        %v1917 = vld [vmem:[#allocation11 + $0x3c0] sm:$0xff]
        %v1918 = vld [vmem:[#allocation11 + $0x3c8] sm:$0xff]
        %v1919 = vld [vmem:[#allocation11 + $0x3d0] sm:$0xff]
        %v1920 = vld [vmem:[#allocation11 + $0x3d8] sm:$0xff]
        %v1921 = vld [vmem:[#allocation11 + $0x3e0] sm:$0xff]
        %v1922 = vld [vmem:[#allocation11 + $0x3e8] sm:$0xff]
        %v1923 = vld [vmem:[#allocation11 + $0x3f0] sm:$0xff]
        %v1924 = vld [vmem:[#allocation11 + $0x3f8] sm:$0xff]
        %v1925 = vld [vmem:[#allocation11 + $0x400] sm:$0xff]
        %v1926 = vld [vmem:[#allocation11 + $0x408] sm:$0xff]
        %v1927 = vld [vmem:[#allocation11 + $0x410] sm:$0xff]
        %v1928 = vld [vmem:[#allocation11 + $0x418] sm:$0xff]
        %v1929 = vld [vmem:[#allocation11 + $0x420] sm:$0xff]
        %v1930 = vld [vmem:[#allocation11 + $0x428] sm:$0xff]
        %v1931 = vld [vmem:[#allocation11 + $0x430] sm:$0xff]
        %v1932 = vld [vmem:[#allocation11 + $0x438] sm:$0xff]
        %v1933 = vld [vmem:[#allocation11 + $0x440] sm:$0xff]
        %v1934 = vld [vmem:[#allocation11 + $0x448] sm:$0xff]
        %v1935 = vld [vmem:[#allocation11 + $0x450] sm:$0xff]
        %v1936 = vld [vmem:[#allocation11 + $0x458] sm:$0xff]
        %v1937 = vld [vmem:[#allocation11 + $0x460] sm:$0xff]
        %v1938 = vld [vmem:[#allocation11 + $0x468] sm:$0xff]
        %v1939 = vld [vmem:[#allocation11 + $0x470] sm:$0xff]
        %v1940 = vld [vmem:[#allocation11 + $0x478] sm:$0xff]
        %v1941 = vld [vmem:[#allocation11 + $0x480] sm:$0xff]
        %v1942 = vld [vmem:[#allocation11 + $0x488] sm:$0xff]
        %v1943 = vld [vmem:[#allocation11 + $0x490] sm:$0xff]
        %v1944 = vld [vmem:[#allocation11 + $0x498] sm:$0xff]
        %v1945 = vld [vmem:[#allocation11 + $0x4a0] sm:$0xff]
        %v1946 = vld [vmem:[#allocation11 + $0x4a8] sm:$0xff]
        %v1947 = vld [vmem:[#allocation11 + $0x4b0] sm:$0xff]
        %v1948 = vld [vmem:[#allocation11 + $0x4b8] sm:$0xff]
        %v1949 = vld [vmem:[#allocation11 + $0x4c0] sm:$0xff]
        %v1950 = vld [vmem:[#allocation11 + $0x4c8] sm:$0xff]
        %v1951 = vld [vmem:[#allocation11 + $0x4d0] sm:$0xff]
        %v1952 = vld [vmem:[#allocation11 + $0x4d8] sm:$0xff]
        %v1953 = vld [vmem:[#allocation11 + $0x4e0] sm:$0xff]
        %v1954 = vld [vmem:[#allocation11 + $0x4e8] sm:$0xff]
        %v1955 = vld [vmem:[#allocation11 + $0x4f0] sm:$0xff]
        %v1956 = vld [vmem:[#allocation11 + $0x4f8] sm:$0xff]
        %v1957 = vld [vmem:[#allocation11 + $0x500] sm:$0xff]
        %v1958 = vld [vmem:[#allocation11 + $0x508] sm:$0xff]
        %v1959 = vld [vmem:[#allocation11 + $0x510] sm:$0xff]
        %v1960 = vld [vmem:[#allocation11 + $0x518] sm:$0xff]
        %v1961 = vld [vmem:[#allocation11 + $0x520] sm:$0xff]
        %v1962 = vld [vmem:[#allocation11 + $0x528] sm:$0xff]
        %v1963 = vld [vmem:[#allocation11 + $0x530] sm:$0xff]
        %v1964 = vld [vmem:[#allocation11 + $0x538] sm:$0xff]
        %v1965 = vld [vmem:[#allocation11 + $0x540] sm:$0xff]
        %v1966 = vld [vmem:[#allocation11 + $0x548] sm:$0xff]
        %v1967 = vld [vmem:[#allocation11 + $0x550] sm:$0xff]
        %v1968 = vld [vmem:[#allocation11 + $0x558] sm:$0xff]
        %v1969 = vld [vmem:[#allocation11 + $0x560] sm:$0xff]
        %v1970 = vld [vmem:[#allocation11 + $0x568] sm:$0xff]
        %v1971 = vld [vmem:[#allocation11 + $0x570] sm:$0xff]
        %v1972 = vld [vmem:[#allocation11 + $0x578] sm:$0xff]
        %v1973 = vld [vmem:[#allocation11 + $0x580] sm:$0xff]
        %v1974 = vld [vmem:[#allocation11 + $0x588] sm:$0xff]
        %v1975 = vld [vmem:[#allocation11 + $0x590] sm:$0xff]
        %v1976 = vld [vmem:[#allocation11 + $0x598] sm:$0xff]
        %v1977 = vld [vmem:[#allocation11 + $0x5a0] sm:$0xff]
        %v1978 = vld [vmem:[#allocation11 + $0x5a8] sm:$0xff]
        %v1979 = vld [vmem:[#allocation11 + $0x5b0] sm:$0xff]
        %v1980 = vld [vmem:[#allocation11 + $0x5b8] sm:$0xff]
        %v1981 = vld [vmem:[#allocation11 + $0x5c0] sm:$0xff]
        %v1982 = vld [vmem:[#allocation11 + $0x5c8] sm:$0xff]
        %v1983 = vld [vmem:[#allocation11 + $0x5d0] sm:$0xff]
        %v1984 = vld [vmem:[#allocation11 + $0x5d8] sm:$0xff]
        %v1985 = vld [vmem:[#allocation11 + $0x5e0] sm:$0xff]
        %v1986 = vld [vmem:[#allocation11 + $0x5e8] sm:$0xff]
        %v1987 = vld [vmem:[#allocation11 + $0x5f0] sm:$0xff]
        %v1988 = vld [vmem:[#allocation11 + $0x5f8] sm:$0xff]
        %v1989 = vld [vmem:[#allocation11 + $0x600] sm:$0xff]
        %v1990 = vld [vmem:[#allocation11 + $0x608] sm:$0xff]
        %v1991 = vld [vmem:[#allocation11 + $0x610] sm:$0xff]
        %v1992 = vld [vmem:[#allocation11 + $0x618] sm:$0xff]
        %v1993 = vld [vmem:[#allocation11 + $0x620] sm:$0xff]
        %v1994 = vld [vmem:[#allocation11 + $0x628] sm:$0xff]
        %v1995 = vld [vmem:[#allocation11 + $0x630] sm:$0xff]
        %v1996 = vld [vmem:[#allocation11 + $0x638] sm:$0xff]
        %v1997 = vld [vmem:[#allocation11 + $0x640] sm:$0xff]
        %v1998 = vld [vmem:[#allocation11 + $0x648] sm:$0xff]
        %v1999 = vld [vmem:[#allocation11 + $0x650] sm:$0xff]
        %v2000 = vld [vmem:[#allocation11 + $0x658] sm:$0xff]
        %v2001 = vld [vmem:[#allocation11 + $0x660] sm:$0xff]
        %v2002 = vld [vmem:[#allocation11 + $0x668] sm:$0xff]
        %v2003 = vld [vmem:[#allocation11 + $0x670] sm:$0xff]
        %v2004 = vld [vmem:[#allocation11 + $0x678] sm:$0xff]
        %v2005 = vld [vmem:[#allocation11 + $0x680] sm:$0xff]
        %v2006 = vld [vmem:[#allocation11 + $0x688] sm:$0xff]
        %v2007 = vld [vmem:[#allocation11 + $0x690] sm:$0xff]
        %v2008 = vld [vmem:[#allocation11 + $0x698] sm:$0xff]
        %v2009 = vld [vmem:[#allocation11 + $0x6a0] sm:$0xff]
        %v2010 = vld [vmem:[#allocation11 + $0x6a8] sm:$0xff]
        %v2011 = vld [vmem:[#allocation11 + $0x6b0] sm:$0xff]
        %v2012 = vld [vmem:[#allocation11 + $0x6b8] sm:$0xff]
        %v2013 = vld [vmem:[#allocation11 + $0x6c0] sm:$0xff]
        %v2014 = vld [vmem:[#allocation11 + $0x6c8] sm:$0xff]
        %v2015 = vld [vmem:[#allocation11 + $0x6d0] sm:$0xff]
        %v2016 = vld [vmem:[#allocation11 + $0x6d8] sm:$0xff]
        %v2017 = vld [vmem:[#allocation11 + $0x6e0] sm:$0xff]
        %v2018 = vld [vmem:[#allocation11 + $0x6e8] sm:$0xff]
        %v2019 = vld [vmem:[#allocation11 + $0x6f0] sm:$0xff]
        %v2020 = vld [vmem:[#allocation11 + $0x6f8] sm:$0xff]
        %v2021 = vld [vmem:[#allocation11 + $0x700] sm:$0xff]
        %v2022 = vld [vmem:[#allocation11 + $0x708] sm:$0xff]
        %v2023 = vld [vmem:[#allocation11 + $0x710] sm:$0xff]
        %v2024 = vld [vmem:[#allocation11 + $0x718] sm:$0xff]
        %v2025 = vld [vmem:[#allocation11 + $0x720] sm:$0xff]
        %v2026 = vld [vmem:[#allocation11 + $0x728] sm:$0xff]
        %v2027 = vld [vmem:[#allocation11 + $0x730] sm:$0xff]
        %v2028 = vld [vmem:[#allocation11 + $0x738] sm:$0xff]
        %v2029 = vld [vmem:[#allocation11 + $0x740] sm:$0xff]
        %v2030 = vld [vmem:[#allocation11 + $0x748] sm:$0xff]
        %v2031 = vld [vmem:[#allocation11 + $0x750] sm:$0xff]
        %v2032 = vld [vmem:[#allocation11 + $0x758] sm:$0xff]
        %v2033 = vld [vmem:[#allocation11 + $0x760] sm:$0xff]
        %v2034 = vld [vmem:[#allocation11 + $0x768] sm:$0xff]
        %v2035 = vld [vmem:[#allocation11 + $0x770] sm:$0xff]
        %v2036 = vld [vmem:[#allocation11 + $0x778] sm:$0xff]
        %v2037 = vld [vmem:[#allocation11 + $0x780] sm:$0xff]
        %v2038 = vld [vmem:[#allocation11 + $0x788] sm:$0xff]
        %v2039 = vld [vmem:[#allocation11 + $0x790] sm:$0xff]
        %v2040 = vld [vmem:[#allocation11 + $0x798] sm:$0xff]
        %v2041 = vld [vmem:[#allocation11 + $0x7a0] sm:$0xff]
        %v2042 = vld [vmem:[#allocation11 + $0x7a8] sm:$0xff]
        %v2043 = vld [vmem:[#allocation11 + $0x7b0] sm:$0xff]
        %v2044 = vld [vmem:[#allocation11 + $0x7b8] sm:$0xff]
        %v2045 = vld [vmem:[#allocation11 + $0x7c0] sm:$0xff]
        %v2046 = vld [vmem:[#allocation11 + $0x7c8] sm:$0xff]
        %v2047 = vld [vmem:[#allocation11 + $0x7d0] sm:$0xff]
        %v2048 = vld [vmem:[#allocation11 + $0x7d8] sm:$0xff]
        %v2049 = vld [vmem:[#allocation11 + $0x7e0] sm:$0xff]
        %v2050 = vld [vmem:[#allocation11 + $0x7e8] sm:$0xff]
        %v2051 = vld [vmem:[#allocation11 + $0x7f0] sm:$0xff]
        %v2052 = vld [vmem:[#allocation11 + $0x7f8] sm:$0xff]
        %v2053 = vld [vmem:[%s10] sm:$0xff]
        %v2055 = vlaneseq
        %v2056 = vshrl.u32 %v2055, 7
        %v2057 = vsub.s32 0, %v2056
        %v2058 = vrot.slane %v2053, %v2057
        %v2059 = vlaneseq
        %v2060 = vshrl.u32 %v2059, 7
        %v2061 = vsub.s32 1, %v2060
        %v2062 = vrot.slane %v2053, %v2061
        %v2063 = vlaneseq
        %v2064 = vshrl.u32 %v2063, 7
        %v2065 = vsub.s32 2, %v2064
        %v2066 = vrot.slane %v2053, %v2065
        %v2067 = vlaneseq
        %v2068 = vshrl.u32 %v2067, 7
        %v2069 = vsub.s32 3, %v2068
        %v2070 = vrot.slane %v2053, %v2069
        %v2071 = vlaneseq
        %v2072 = vshrl.u32 %v2071, 7
        %v2073 = vsub.s32 4, %v2072
        %v2074 = vrot.slane %v2053, %v2073
        %v2075 = vlaneseq
        %v2076 = vshrl.u32 %v2075, 7
        %v2077 = vsub.s32 5, %v2076
        %v2078 = vrot.slane %v2053, %v2077
        %v2079 = vlaneseq
        %v2080 = vshrl.u32 %v2079, 7
        %v2081 = vsub.s32 6, %v2080
        %v2082 = vrot.slane %v2053, %v2081
        %v2083 = vlaneseq
        %v2084 = vshrl.u32 %v2083, 7
        %v2085 = vsub.s32 7, %v2084
        %v2086 = vrot.slane %v2053, %v2085
        %v2351 = vunpack.c.l.b16 %v1797
        %v2352 = vunpack.c.h.b16 %v1797
        %v2353 = vunpack.c.l.b16 %v1798
        %v2354 = vunpack.c.h.b16 %v1798
        %v2355 = vunpack.c.l.b16 %v1799
        %v2356 = vunpack.c.h.b16 %v1799
        %v2357 = vunpack.c.l.b16 %v1800
        %v2358 = vunpack.c.h.b16 %v1800
        %v2359 = vunpack.c.l.b16 %v1801
        %v2360 = vunpack.c.h.b16 %v1801
        %v2361 = vunpack.c.l.b16 %v1802
        %v2362 = vunpack.c.h.b16 %v1802
        %v2363 = vunpack.c.l.b16 %v1803
        %v2364 = vunpack.c.h.b16 %v1803
        %v2365 = vunpack.c.l.b16 %v1804
        %v2366 = vunpack.c.h.b16 %v1804
        %v2367 = vunpack.c.l.b16 %v1805
        %v2368 = vunpack.c.h.b16 %v1805
        %v2369 = vunpack.c.l.b16 %v1806
        %v2370 = vunpack.c.h.b16 %v1806
        %v2371 = vunpack.c.l.b16 %v1807
        %v2372 = vunpack.c.h.b16 %v1807
        %v2373 = vunpack.c.l.b16 %v1808
        %v2374 = vunpack.c.h.b16 %v1808
        %v2375 = vunpack.c.l.b16 %v1809
        %v2376 = vunpack.c.h.b16 %v1809
        %v2377 = vunpack.c.l.b16 %v1810
        %v2378 = vunpack.c.h.b16 %v1810
        %v2379 = vunpack.c.l.b16 %v1811
        %v2380 = vunpack.c.h.b16 %v1811
        %v2381 = vunpack.c.l.b16 %v1812
        %v2382 = vunpack.c.h.b16 %v1812
        %v2383 = vunpack.c.l.b16 %v1813
        %v2384 = vunpack.c.h.b16 %v1813
        %v2385 = vunpack.c.l.b16 %v1814
        %v2386 = vunpack.c.h.b16 %v1814
        %v2387 = vunpack.c.l.b16 %v1815
        %v2388 = vunpack.c.h.b16 %v1815
        %v2389 = vunpack.c.l.b16 %v1816
        %v2390 = vunpack.c.h.b16 %v1816
        %v2391 = vunpack.c.l.b16 %v1817
        %v2392 = vunpack.c.h.b16 %v1817
        %v2393 = vunpack.c.l.b16 %v1818
        %v2394 = vunpack.c.h.b16 %v1818
        %v2395 = vunpack.c.l.b16 %v1819
        %v2396 = vunpack.c.h.b16 %v1819
        %v2397 = vunpack.c.l.b16 %v1820
        %v2398 = vunpack.c.h.b16 %v1820
        %v2399 = vunpack.c.l.b16 %v1821
        %v2400 = vunpack.c.h.b16 %v1821
        %v2401 = vunpack.c.l.b16 %v1822
        %v2402 = vunpack.c.h.b16 %v1822
        %v2403 = vunpack.c.l.b16 %v1823
        %v2404 = vunpack.c.h.b16 %v1823
        %v2405 = vunpack.c.l.b16 %v1824
        %v2406 = vunpack.c.h.b16 %v1824
        %v2407 = vunpack.c.l.b16 %v1825
        %v2408 = vunpack.c.h.b16 %v1825
        %v2409 = vunpack.c.l.b16 %v1826
        %v2410 = vunpack.c.h.b16 %v1826
        %v2411 = vunpack.c.l.b16 %v1827
        %v2412 = vunpack.c.h.b16 %v1827
        %v2413 = vunpack.c.l.b16 %v1828
        %v2414 = vunpack.c.h.b16 %v1828
        %v2415 = vunpack.c.l.b16 %v1829
        %v2416 = vunpack.c.h.b16 %v1829
        %v2417 = vunpack.c.l.b16 %v1830
        %v2418 = vunpack.c.h.b16 %v1830
        %v2419 = vunpack.c.l.b16 %v1831
        %v2420 = vunpack.c.h.b16 %v1831
        %v2421 = vunpack.c.l.b16 %v1832
        %v2422 = vunpack.c.h.b16 %v1832
        %v2423 = vunpack.c.l.b16 %v1833
        %v2424 = vunpack.c.h.b16 %v1833
        %v2425 = vunpack.c.l.b16 %v1834
        %v2426 = vunpack.c.h.b16 %v1834
        %v2427 = vunpack.c.l.b16 %v1835
        %v2428 = vunpack.c.h.b16 %v1835
        %v2429 = vunpack.c.l.b16 %v1836
        %v2430 = vunpack.c.h.b16 %v1836
        %v2431 = vunpack.c.l.b16 %v1837
        %v2432 = vunpack.c.h.b16 %v1837
        %v2433 = vunpack.c.l.b16 %v1838
        %v2434 = vunpack.c.h.b16 %v1838
        %v2435 = vunpack.c.l.b16 %v1839
        %v2436 = vunpack.c.h.b16 %v1839
        %v2437 = vunpack.c.l.b16 %v1840
        %v2438 = vunpack.c.h.b16 %v1840
        %v2439 = vunpack.c.l.b16 %v1841
        %v2440 = vunpack.c.h.b16 %v1841
        %v2441 = vunpack.c.l.b16 %v1842
        %v2442 = vunpack.c.h.b16 %v1842
        %v2443 = vunpack.c.l.b16 %v1843
        %v2444 = vunpack.c.h.b16 %v1843
        %v2445 = vunpack.c.l.b16 %v1844
        %v2446 = vunpack.c.h.b16 %v1844
        %v2447 = vunpack.c.l.b16 %v1845
        %v2448 = vunpack.c.h.b16 %v1845
        %v2449 = vunpack.c.l.b16 %v1846
        %v2450 = vunpack.c.h.b16 %v1846
        %v2451 = vunpack.c.l.b16 %v1847
        %v2452 = vunpack.c.h.b16 %v1847
        %v2453 = vunpack.c.l.b16 %v1848
        %v2454 = vunpack.c.h.b16 %v1848
        %v2455 = vunpack.c.l.b16 %v1849
        %v2456 = vunpack.c.h.b16 %v1849
        %v2457 = vunpack.c.l.b16 %v1850
        %v2458 = vunpack.c.h.b16 %v1850
        %v2459 = vunpack.c.l.b16 %v1851
        %v2460 = vunpack.c.h.b16 %v1851
        %v2461 = vunpack.c.l.b16 %v1852
        %v2462 = vunpack.c.h.b16 %v1852
        %v2463 = vunpack.c.l.b16 %v1853
        %v2464 = vunpack.c.h.b16 %v1853
        %v2465 = vunpack.c.l.b16 %v1854
        %v2466 = vunpack.c.h.b16 %v1854
        %v2467 = vunpack.c.l.b16 %v1855
        %v2468 = vunpack.c.h.b16 %v1855
        %v2469 = vunpack.c.l.b16 %v1856
        %v2470 = vunpack.c.h.b16 %v1856
        %v2471 = vunpack.c.l.b16 %v1857
        %v2472 = vunpack.c.h.b16 %v1857
        %v2473 = vunpack.c.l.b16 %v1858
        %v2474 = vunpack.c.h.b16 %v1858
        %v2475 = vunpack.c.l.b16 %v1859
        %v2476 = vunpack.c.h.b16 %v1859
        %v2477 = vunpack.c.l.b16 %v1860
        %v2478 = vunpack.c.h.b16 %v1860
        %v2479 = vunpack.c.l.b16 %v1861
        %v2480 = vunpack.c.h.b16 %v1861
        %v2481 = vunpack.c.l.b16 %v1862
        %v2482 = vunpack.c.h.b16 %v1862
        %v2483 = vunpack.c.l.b16 %v1863
        %v2484 = vunpack.c.h.b16 %v1863
        %v2485 = vunpack.c.l.b16 %v1864
        %v2486 = vunpack.c.h.b16 %v1864
        %v2487 = vunpack.c.l.b16 %v1865
        %v2488 = vunpack.c.h.b16 %v1865
        %v2489 = vunpack.c.l.b16 %v1866
        %v2490 = vunpack.c.h.b16 %v1866
        %v2491 = vunpack.c.l.b16 %v1867
        %v2492 = vunpack.c.h.b16 %v1867
        %v2493 = vunpack.c.l.b16 %v1868
        %v2494 = vunpack.c.h.b16 %v1868
        %v2495 = vunpack.c.l.b16 %v1869
        %v2496 = vunpack.c.h.b16 %v1869
        %v2497 = vunpack.c.l.b16 %v1870
        %v2498 = vunpack.c.h.b16 %v1870
        %v2499 = vunpack.c.l.b16 %v1871
        %v2500 = vunpack.c.h.b16 %v1871
        %v2501 = vunpack.c.l.b16 %v1872
        %v2502 = vunpack.c.h.b16 %v1872
        %v2503 = vunpack.c.l.b16 %v1873
        %v2504 = vunpack.c.h.b16 %v1873
        %v2505 = vunpack.c.l.b16 %v1874
        %v2506 = vunpack.c.h.b16 %v1874
        %v2507 = vunpack.c.l.b16 %v1875
        %v2508 = vunpack.c.h.b16 %v1875
        %v2509 = vunpack.c.l.b16 %v1876
        %v2510 = vunpack.c.h.b16 %v1876
        %v2511 = vunpack.c.l.b16 %v1877
        %v2512 = vunpack.c.h.b16 %v1877
        %v2513 = vunpack.c.l.b16 %v1878
        %v2514 = vunpack.c.h.b16 %v1878
        %v2515 = vunpack.c.l.b16 %v1879
        %v2516 = vunpack.c.h.b16 %v1879
        %v2517 = vunpack.c.l.b16 %v1880
        %v2518 = vunpack.c.h.b16 %v1880
        %v2519 = vunpack.c.l.b16 %v1881
        %v2520 = vunpack.c.h.b16 %v1881
        %v2521 = vunpack.c.l.b16 %v1882
        %v2522 = vunpack.c.h.b16 %v1882
        %v2523 = vunpack.c.l.b16 %v1883
        %v2524 = vunpack.c.h.b16 %v1883
        %v2525 = vunpack.c.l.b16 %v1884
        %v2526 = vunpack.c.h.b16 %v1884
        %v2527 = vunpack.c.l.b16 %v1885
        %v2528 = vunpack.c.h.b16 %v1885
        %v2529 = vunpack.c.l.b16 %v1886
        %v2530 = vunpack.c.h.b16 %v1886
        %v2531 = vunpack.c.l.b16 %v1887
        %v2532 = vunpack.c.h.b16 %v1887
        %v2533 = vunpack.c.l.b16 %v1888
        %v2534 = vunpack.c.h.b16 %v1888
        %v2535 = vunpack.c.l.b16 %v1889
        %v2536 = vunpack.c.h.b16 %v1889
        %v2537 = vunpack.c.l.b16 %v1890
        %v2538 = vunpack.c.h.b16 %v1890
        %v2539 = vunpack.c.l.b16 %v1891
        %v2540 = vunpack.c.h.b16 %v1891
        %v2541 = vunpack.c.l.b16 %v1892
        %v2542 = vunpack.c.h.b16 %v1892
        %v2543 = vunpack.c.l.b16 %v1893
        %v2544 = vunpack.c.h.b16 %v1893
        %v2545 = vunpack.c.l.b16 %v1894
        %v2546 = vunpack.c.h.b16 %v1894
        %v2547 = vunpack.c.l.b16 %v1895
        %v2548 = vunpack.c.h.b16 %v1895
        %v2549 = vunpack.c.l.b16 %v1896
        %v2550 = vunpack.c.h.b16 %v1896
        %v2551 = vunpack.c.l.b16 %v1897
        %v2552 = vunpack.c.h.b16 %v1897
        %v2553 = vunpack.c.l.b16 %v1898
        %v2554 = vunpack.c.h.b16 %v1898
        %v2555 = vunpack.c.l.b16 %v1899
        %v2556 = vunpack.c.h.b16 %v1899
        %v2557 = vunpack.c.l.b16 %v1900
        %v2558 = vunpack.c.h.b16 %v1900
        %v2559 = vunpack.c.l.b16 %v1901
        %v2560 = vunpack.c.h.b16 %v1901
        %v2561 = vunpack.c.l.b16 %v1902
        %v2562 = vunpack.c.h.b16 %v1902
        %v2563 = vunpack.c.l.b16 %v1903
        %v2564 = vunpack.c.h.b16 %v1903
        %v2565 = vunpack.c.l.b16 %v1904
        %v2566 = vunpack.c.h.b16 %v1904
        %v2567 = vunpack.c.l.b16 %v1905
        %v2568 = vunpack.c.h.b16 %v1905
        %v2569 = vunpack.c.l.b16 %v1906
        %v2570 = vunpack.c.h.b16 %v1906
        %v2571 = vunpack.c.l.b16 %v1907
        %v2572 = vunpack.c.h.b16 %v1907
        %v2573 = vunpack.c.l.b16 %v1908
        %v2574 = vunpack.c.h.b16 %v1908
        %v2575 = vunpack.c.l.b16 %v1909
        %v2576 = vunpack.c.h.b16 %v1909
        %v2577 = vunpack.c.l.b16 %v1910
        %v2578 = vunpack.c.h.b16 %v1910
        %v2579 = vunpack.c.l.b16 %v1911
        %v2580 = vunpack.c.h.b16 %v1911
        %v2581 = vunpack.c.l.b16 %v1912
        %v2582 = vunpack.c.h.b16 %v1912
        %v2583 = vunpack.c.l.b16 %v1913
        %v2584 = vunpack.c.h.b16 %v1913
        %v2585 = vunpack.c.l.b16 %v1914
        %v2586 = vunpack.c.h.b16 %v1914
        %v2587 = vunpack.c.l.b16 %v1915
        %v2588 = vunpack.c.h.b16 %v1915
        %v2589 = vunpack.c.l.b16 %v1916
        %v2590 = vunpack.c.h.b16 %v1916
        %v2591 = vunpack.c.l.b16 %v1917
        %v2592 = vunpack.c.h.b16 %v1917
        %v2593 = vunpack.c.l.b16 %v1918
        %v2594 = vunpack.c.h.b16 %v1918
        %v2595 = vunpack.c.l.b16 %v1919
        %v2596 = vunpack.c.h.b16 %v1919
        %v2597 = vunpack.c.l.b16 %v1920
        %v2598 = vunpack.c.h.b16 %v1920
        %v2599 = vunpack.c.l.b16 %v1921
        %v2600 = vunpack.c.h.b16 %v1921
        %v2601 = vunpack.c.l.b16 %v1922
        %v2602 = vunpack.c.h.b16 %v1922
        %v2603 = vunpack.c.l.b16 %v1923
        %v2604 = vunpack.c.h.b16 %v1923
        %v2605 = vunpack.c.l.b16 %v1924
        %v2606 = vunpack.c.h.b16 %v1924
        %v2607 = vunpack.c.l.b16 %v1925
        %v2608 = vunpack.c.h.b16 %v1925
        %v2609 = vunpack.c.l.b16 %v1926
        %v2610 = vunpack.c.h.b16 %v1926
        %v2611 = vunpack.c.l.b16 %v1927
        %v2612 = vunpack.c.h.b16 %v1927
        %v2613 = vunpack.c.l.b16 %v1928
        %v2614 = vunpack.c.h.b16 %v1928
        %v2615 = vunpack.c.l.b16 %v1929
        %v2616 = vunpack.c.h.b16 %v1929
        %v2617 = vunpack.c.l.b16 %v1930
        %v2618 = vunpack.c.h.b16 %v1930
        %v2619 = vunpack.c.l.b16 %v1931
        %v2620 = vunpack.c.h.b16 %v1931
        %v2621 = vunpack.c.l.b16 %v1932
        %v2622 = vunpack.c.h.b16 %v1932
        %v2623 = vunpack.c.l.b16 %v1933
        %v2624 = vunpack.c.h.b16 %v1933
        %v2625 = vunpack.c.l.b16 %v1934
        %v2626 = vunpack.c.h.b16 %v1934
        %v2627 = vunpack.c.l.b16 %v1935
        %v2628 = vunpack.c.h.b16 %v1935
        %v2629 = vunpack.c.l.b16 %v1936
        %v2630 = vunpack.c.h.b16 %v1936
        %v2631 = vunpack.c.l.b16 %v1937
        %v2632 = vunpack.c.h.b16 %v1937
        %v2633 = vunpack.c.l.b16 %v1938
        %v2634 = vunpack.c.h.b16 %v1938
        %v2635 = vunpack.c.l.b16 %v1939
        %v2636 = vunpack.c.h.b16 %v1939
        %v2637 = vunpack.c.l.b16 %v1940
        %v2638 = vunpack.c.h.b16 %v1940
        %v2639 = vunpack.c.l.b16 %v1941
        %v2640 = vunpack.c.h.b16 %v1941
        %v2641 = vunpack.c.l.b16 %v1942
        %v2642 = vunpack.c.h.b16 %v1942
        %v2643 = vunpack.c.l.b16 %v1943
        %v2644 = vunpack.c.h.b16 %v1943
        %v2645 = vunpack.c.l.b16 %v1944
        %v2646 = vunpack.c.h.b16 %v1944
        %v2647 = vunpack.c.l.b16 %v1945
        %v2648 = vunpack.c.h.b16 %v1945
        %v2649 = vunpack.c.l.b16 %v1946
        %v2650 = vunpack.c.h.b16 %v1946
        %v2651 = vunpack.c.l.b16 %v1947
        %v2652 = vunpack.c.h.b16 %v1947
        %v2653 = vunpack.c.l.b16 %v1948
        %v2654 = vunpack.c.h.b16 %v1948
        %v2655 = vunpack.c.l.b16 %v1949
        %v2656 = vunpack.c.h.b16 %v1949
        %v2657 = vunpack.c.l.b16 %v1950
        %v2658 = vunpack.c.h.b16 %v1950
        %v2659 = vunpack.c.l.b16 %v1951
        %v2660 = vunpack.c.h.b16 %v1951
        %v2661 = vunpack.c.l.b16 %v1952
        %v2662 = vunpack.c.h.b16 %v1952
        %v2663 = vunpack.c.l.b16 %v1953
        %v2664 = vunpack.c.h.b16 %v1953
        %v2665 = vunpack.c.l.b16 %v1954
        %v2666 = vunpack.c.h.b16 %v1954
        %v2667 = vunpack.c.l.b16 %v1955
        %v2668 = vunpack.c.h.b16 %v1955
        %v2669 = vunpack.c.l.b16 %v1956
        %v2670 = vunpack.c.h.b16 %v1956
        %v2671 = vunpack.c.l.b16 %v1957
        %v2672 = vunpack.c.h.b16 %v1957
        %v2673 = vunpack.c.l.b16 %v1958
        %v2674 = vunpack.c.h.b16 %v1958
        %v2675 = vunpack.c.l.b16 %v1959
        %v2676 = vunpack.c.h.b16 %v1959
        %v2677 = vunpack.c.l.b16 %v1960
        %v2678 = vunpack.c.h.b16 %v1960
        %v2679 = vunpack.c.l.b16 %v1961
        %v2680 = vunpack.c.h.b16 %v1961
        %v2681 = vunpack.c.l.b16 %v1962
        %v2682 = vunpack.c.h.b16 %v1962
        %v2683 = vunpack.c.l.b16 %v1963
        %v2684 = vunpack.c.h.b16 %v1963
        %v2685 = vunpack.c.l.b16 %v1964
        %v2686 = vunpack.c.h.b16 %v1964
        %v2687 = vunpack.c.l.b16 %v1965
        %v2688 = vunpack.c.h.b16 %v1965
        %v2689 = vunpack.c.l.b16 %v1966
        %v2690 = vunpack.c.h.b16 %v1966
        %v2691 = vunpack.c.l.b16 %v1967
        %v2692 = vunpack.c.h.b16 %v1967
        %v2693 = vunpack.c.l.b16 %v1968
        %v2694 = vunpack.c.h.b16 %v1968
        %v2695 = vunpack.c.l.b16 %v1969
        %v2696 = vunpack.c.h.b16 %v1969
        %v2697 = vunpack.c.l.b16 %v1970
        %v2698 = vunpack.c.h.b16 %v1970
        %v2699 = vunpack.c.l.b16 %v1971
        %v2700 = vunpack.c.h.b16 %v1971
        %v2701 = vunpack.c.l.b16 %v1972
        %v2702 = vunpack.c.h.b16 %v1972
        %v2703 = vunpack.c.l.b16 %v1973
        %v2704 = vunpack.c.h.b16 %v1973
        %v2705 = vunpack.c.l.b16 %v1974
        %v2706 = vunpack.c.h.b16 %v1974
        %v2707 = vunpack.c.l.b16 %v1975
        %v2708 = vunpack.c.h.b16 %v1975
        %v2709 = vunpack.c.l.b16 %v1976
        %v2710 = vunpack.c.h.b16 %v1976
        %v2711 = vunpack.c.l.b16 %v1977
        %v2712 = vunpack.c.h.b16 %v1977
        %v2713 = vunpack.c.l.b16 %v1978
        %v2714 = vunpack.c.h.b16 %v1978
        %v2715 = vunpack.c.l.b16 %v1979
        %v2716 = vunpack.c.h.b16 %v1979
        %v2717 = vunpack.c.l.b16 %v1980
        %v2718 = vunpack.c.h.b16 %v1980
        %v2719 = vunpack.c.l.b16 %v1981
        %v2720 = vunpack.c.h.b16 %v1981
        %v2721 = vunpack.c.l.b16 %v1982
        %v2722 = vunpack.c.h.b16 %v1982
        %v2723 = vunpack.c.l.b16 %v1983
        %v2724 = vunpack.c.h.b16 %v1983
        %v2725 = vunpack.c.l.b16 %v1984
        %v2726 = vunpack.c.h.b16 %v1984
        %v2727 = vunpack.c.l.b16 %v1985
        %v2728 = vunpack.c.h.b16 %v1985
        %v2729 = vunpack.c.l.b16 %v1986
        %v2730 = vunpack.c.h.b16 %v1986
        %v2731 = vunpack.c.l.b16 %v1987
        %v2732 = vunpack.c.h.b16 %v1987
        %v2733 = vunpack.c.l.b16 %v1988
        %v2734 = vunpack.c.h.b16 %v1988
        %v2735 = vunpack.c.l.b16 %v1989
        %v2736 = vunpack.c.h.b16 %v1989
        %v2737 = vunpack.c.l.b16 %v1990
        %v2738 = vunpack.c.h.b16 %v1990
        %v2739 = vunpack.c.l.b16 %v1991
        %v2740 = vunpack.c.h.b16 %v1991
        %v2741 = vunpack.c.l.b16 %v1992
        %v2742 = vunpack.c.h.b16 %v1992
        %v2743 = vunpack.c.l.b16 %v1993
        %v2744 = vunpack.c.h.b16 %v1993
        %v2745 = vunpack.c.l.b16 %v1994
        %v2746 = vunpack.c.h.b16 %v1994
        %v2747 = vunpack.c.l.b16 %v1995
        %v2748 = vunpack.c.h.b16 %v1995
        %v2749 = vunpack.c.l.b16 %v1996
        %v2750 = vunpack.c.h.b16 %v1996
        %v2751 = vunpack.c.l.b16 %v1997
        %v2752 = vunpack.c.h.b16 %v1997
        %v2753 = vunpack.c.l.b16 %v1998
        %v2754 = vunpack.c.h.b16 %v1998
        %v2755 = vunpack.c.l.b16 %v1999
        %v2756 = vunpack.c.h.b16 %v1999
        %v2757 = vunpack.c.l.b16 %v2000
        %v2758 = vunpack.c.h.b16 %v2000
        %v2759 = vunpack.c.l.b16 %v2001
        %v2760 = vunpack.c.h.b16 %v2001
        %v2761 = vunpack.c.l.b16 %v2002
        %v2762 = vunpack.c.h.b16 %v2002
        %v2763 = vunpack.c.l.b16 %v2003
        %v2764 = vunpack.c.h.b16 %v2003
        %v2765 = vunpack.c.l.b16 %v2004
        %v2766 = vunpack.c.h.b16 %v2004
        %v2767 = vunpack.c.l.b16 %v2005
        %v2768 = vunpack.c.h.b16 %v2005
        %v2769 = vunpack.c.l.b16 %v2006
        %v2770 = vunpack.c.h.b16 %v2006
        %v2771 = vunpack.c.l.b16 %v2007
        %v2772 = vunpack.c.h.b16 %v2007
        %v2773 = vunpack.c.l.b16 %v2008
        %v2774 = vunpack.c.h.b16 %v2008
        %v2775 = vunpack.c.l.b16 %v2009
        %v2776 = vunpack.c.h.b16 %v2009
        %v2777 = vunpack.c.l.b16 %v2010
        %v2778 = vunpack.c.h.b16 %v2010
        %v2779 = vunpack.c.l.b16 %v2011
        %v2780 = vunpack.c.h.b16 %v2011
        %v2781 = vunpack.c.l.b16 %v2012
        %v2782 = vunpack.c.h.b16 %v2012
        %v2783 = vunpack.c.l.b16 %v2013
        %v2784 = vunpack.c.h.b16 %v2013
        %v2785 = vunpack.c.l.b16 %v2014
        %v2786 = vunpack.c.h.b16 %v2014
        %v2787 = vunpack.c.l.b16 %v2015
        %v2788 = vunpack.c.h.b16 %v2015
        %v2789 = vunpack.c.l.b16 %v2016
        %v2790 = vunpack.c.h.b16 %v2016
        %v2791 = vunpack.c.l.b16 %v2017
        %v2792 = vunpack.c.h.b16 %v2017
        %v2793 = vunpack.c.l.b16 %v2018
        %v2794 = vunpack.c.h.b16 %v2018
        %v2795 = vunpack.c.l.b16 %v2019
        %v2796 = vunpack.c.h.b16 %v2019
        %v2797 = vunpack.c.l.b16 %v2020
        %v2798 = vunpack.c.h.b16 %v2020
        %v2799 = vunpack.c.l.b16 %v2021
        %v2800 = vunpack.c.h.b16 %v2021
        %v2801 = vunpack.c.l.b16 %v2022
        %v2802 = vunpack.c.h.b16 %v2022
        %v2803 = vunpack.c.l.b16 %v2023
        %v2804 = vunpack.c.h.b16 %v2023
        %v2805 = vunpack.c.l.b16 %v2024
        %v2806 = vunpack.c.h.b16 %v2024
        %v2807 = vunpack.c.l.b16 %v2025
        %v2808 = vunpack.c.h.b16 %v2025
        %v2809 = vunpack.c.l.b16 %v2026
        %v2810 = vunpack.c.h.b16 %v2026
        %v2811 = vunpack.c.l.b16 %v2027
        %v2812 = vunpack.c.h.b16 %v2027
        %v2813 = vunpack.c.l.b16 %v2028
        %v2814 = vunpack.c.h.b16 %v2028
        %v2815 = vunpack.c.l.b16 %v2029
        %v2816 = vunpack.c.h.b16 %v2029
        %v2817 = vunpack.c.l.b16 %v2030
        %v2818 = vunpack.c.h.b16 %v2030
        %v2819 = vunpack.c.l.b16 %v2031
        %v2820 = vunpack.c.h.b16 %v2031
        %v2821 = vunpack.c.l.b16 %v2032
        %v2822 = vunpack.c.h.b16 %v2032
        %v2823 = vunpack.c.l.b16 %v2033
        %v2824 = vunpack.c.h.b16 %v2033
        %v2825 = vunpack.c.l.b16 %v2034
        %v2826 = vunpack.c.h.b16 %v2034
        %v2827 = vunpack.c.l.b16 %v2035
        %v2828 = vunpack.c.h.b16 %v2035
        %v2829 = vunpack.c.l.b16 %v2036
        %v2830 = vunpack.c.h.b16 %v2036
        %v2831 = vunpack.c.l.b16 %v2037
        %v2832 = vunpack.c.h.b16 %v2037
        %v2833 = vunpack.c.l.b16 %v2038
        %v2834 = vunpack.c.h.b16 %v2038
        %v2835 = vunpack.c.l.b16 %v2039
        %v2836 = vunpack.c.h.b16 %v2039
        %v2837 = vunpack.c.l.b16 %v2040
        %v2838 = vunpack.c.h.b16 %v2040
        %v2839 = vunpack.c.l.b16 %v2041
        %v2840 = vunpack.c.h.b16 %v2041
        %v2841 = vunpack.c.l.b16 %v2042
        %v2842 = vunpack.c.h.b16 %v2042
        %v2843 = vunpack.c.l.b16 %v2043
        %v2844 = vunpack.c.h.b16 %v2043
        %v2845 = vunpack.c.l.b16 %v2044
        %v2846 = vunpack.c.h.b16 %v2044
        %v2847 = vunpack.c.l.b16 %v2045
        %v2848 = vunpack.c.h.b16 %v2045
        %v2849 = vunpack.c.l.b16 %v2046
        %v2850 = vunpack.c.h.b16 %v2046
        %v2851 = vunpack.c.l.b16 %v2047
        %v2852 = vunpack.c.h.b16 %v2047
        %v2853 = vunpack.c.l.b16 %v2048
        %v2854 = vunpack.c.h.b16 %v2048
        %v2855 = vunpack.c.l.b16 %v2049
        %v2856 = vunpack.c.h.b16 %v2049
        %v2857 = vunpack.c.l.b16 %v2050
        %v2858 = vunpack.c.h.b16 %v2050
        %v2859 = vunpack.c.l.b16 %v2051
        %v2860 = vunpack.c.h.b16 %v2051
        %v2861 = vunpack.c.l.b16 %v2052
        %v2862 = vunpack.c.h.b16 %v2052
        %v2863 = vpack.c.b16 %v2359, %v2351
        %v2864 = vpack.c.b16 %v2360, %v2352
        %v2865 = vpack.c.b16 %v2361, %v2353
        %v2866 = vpack.c.b16 %v2362, %v2354
        %v2867 = vpack.c.b16 %v2363, %v2355
        %v2868 = vpack.c.b16 %v2364, %v2356
        %v2869 = vpack.c.b16 %v2365, %v2357
        %v2870 = vpack.c.b16 %v2366, %v2358
        %v2871 = vpack.c.b16 %v2375, %v2367
        %v2872 = vpack.c.b16 %v2376, %v2368
        %v2873 = vpack.c.b16 %v2377, %v2369
        %v2874 = vpack.c.b16 %v2378, %v2370
        %v2875 = vpack.c.b16 %v2379, %v2371
        %v2876 = vpack.c.b16 %v2380, %v2372
        %v2877 = vpack.c.b16 %v2381, %v2373
        %v2878 = vpack.c.b16 %v2382, %v2374
        %v2879 = vpack.c.b16 %v2391, %v2383
        %v2880 = vpack.c.b16 %v2392, %v2384
        %v2881 = vpack.c.b16 %v2393, %v2385
        %v2882 = vpack.c.b16 %v2394, %v2386
        %v2883 = vpack.c.b16 %v2395, %v2387
        %v2884 = vpack.c.b16 %v2396, %v2388
        %v2885 = vpack.c.b16 %v2397, %v2389
        %v2886 = vpack.c.b16 %v2398, %v2390
        %v2887 = vpack.c.b16 %v2407, %v2399
        %v2888 = vpack.c.b16 %v2408, %v2400
        %v2889 = vpack.c.b16 %v2409, %v2401
        %v2890 = vpack.c.b16 %v2410, %v2402
        %v2891 = vpack.c.b16 %v2411, %v2403
        %v2892 = vpack.c.b16 %v2412, %v2404
        %v2893 = vpack.c.b16 %v2413, %v2405
        %v2894 = vpack.c.b16 %v2414, %v2406
        %v2895 = vpack.c.b16 %v2423, %v2415
        %v2896 = vpack.c.b16 %v2424, %v2416
        %v2897 = vpack.c.b16 %v2425, %v2417
        %v2898 = vpack.c.b16 %v2426, %v2418
        %v2899 = vpack.c.b16 %v2427, %v2419
        %v2900 = vpack.c.b16 %v2428, %v2420
        %v2901 = vpack.c.b16 %v2429, %v2421
        %v2902 = vpack.c.b16 %v2430, %v2422
        %v2903 = vpack.c.b16 %v2439, %v2431
        %v2904 = vpack.c.b16 %v2440, %v2432
        %v2905 = vpack.c.b16 %v2441, %v2433
        %v2906 = vpack.c.b16 %v2442, %v2434
        %v2907 = vpack.c.b16 %v2443, %v2435
        %v2908 = vpack.c.b16 %v2444, %v2436
        %v2909 = vpack.c.b16 %v2445, %v2437
        %v2910 = vpack.c.b16 %v2446, %v2438
        %v2911 = vpack.c.b16 %v2455, %v2447
        %v2912 = vpack.c.b16 %v2456, %v2448
        %v2913 = vpack.c.b16 %v2457, %v2449
        %v2914 = vpack.c.b16 %v2458, %v2450
        %v2915 = vpack.c.b16 %v2459, %v2451
        %v2916 = vpack.c.b16 %v2460, %v2452
        %v2917 = vpack.c.b16 %v2461, %v2453
        %v2918 = vpack.c.b16 %v2462, %v2454
        %v2919 = vpack.c.b16 %v2471, %v2463
        %v2920 = vpack.c.b16 %v2472, %v2464
        %v2921 = vpack.c.b16 %v2473, %v2465
        %v2922 = vpack.c.b16 %v2474, %v2466
        %v2923 = vpack.c.b16 %v2475, %v2467
        %v2924 = vpack.c.b16 %v2476, %v2468
        %v2925 = vpack.c.b16 %v2477, %v2469
        %v2926 = vpack.c.b16 %v2478, %v2470
        %v2927 = vpack.c.b16 %v2487, %v2479
        %v2928 = vpack.c.b16 %v2488, %v2480
        %v2929 = vpack.c.b16 %v2489, %v2481
        %v2930 = vpack.c.b16 %v2490, %v2482
        %v2931 = vpack.c.b16 %v2491, %v2483
        %v2932 = vpack.c.b16 %v2492, %v2484
        %v2933 = vpack.c.b16 %v2493, %v2485
        %v2934 = vpack.c.b16 %v2494, %v2486
        %v2935 = vpack.c.b16 %v2503, %v2495
        %v2936 = vpack.c.b16 %v2504, %v2496
        %v2937 = vpack.c.b16 %v2505, %v2497
        %v2938 = vpack.c.b16 %v2506, %v2498
        %v2939 = vpack.c.b16 %v2507, %v2499
        %v2940 = vpack.c.b16 %v2508, %v2500
        %v2941 = vpack.c.b16 %v2509, %v2501
        %v2942 = vpack.c.b16 %v2510, %v2502
        %v2943 = vpack.c.b16 %v2519, %v2511
        %v2944 = vpack.c.b16 %v2520, %v2512
        %v2945 = vpack.c.b16 %v2521, %v2513
        %v2946 = vpack.c.b16 %v2522, %v2514
        %v2947 = vpack.c.b16 %v2523, %v2515
        %v2948 = vpack.c.b16 %v2524, %v2516
        %v2949 = vpack.c.b16 %v2525, %v2517
        %v2950 = vpack.c.b16 %v2526, %v2518
        %v2951 = vpack.c.b16 %v2535, %v2527
        %v2952 = vpack.c.b16 %v2536, %v2528
        %v2953 = vpack.c.b16 %v2537, %v2529
        %v2954 = vpack.c.b16 %v2538, %v2530
        %v2955 = vpack.c.b16 %v2539, %v2531
        %v2956 = vpack.c.b16 %v2540, %v2532
        %v2957 = vpack.c.b16 %v2541, %v2533
        %v2958 = vpack.c.b16 %v2542, %v2534
        %v2959 = vpack.c.b16 %v2551, %v2543
        %v2960 = vpack.c.b16 %v2552, %v2544
        %v2961 = vpack.c.b16 %v2553, %v2545
        %v2962 = vpack.c.b16 %v2554, %v2546
        %v2963 = vpack.c.b16 %v2555, %v2547
        %v2964 = vpack.c.b16 %v2556, %v2548
        %v2965 = vpack.c.b16 %v2557, %v2549
        %v2966 = vpack.c.b16 %v2558, %v2550
        %v2967 = vpack.c.b16 %v2567, %v2559
        %v2968 = vpack.c.b16 %v2568, %v2560
        %v2969 = vpack.c.b16 %v2569, %v2561
        %v2970 = vpack.c.b16 %v2570, %v2562
        %v2971 = vpack.c.b16 %v2571, %v2563
        %v2972 = vpack.c.b16 %v2572, %v2564
        %v2973 = vpack.c.b16 %v2573, %v2565
        %v2974 = vpack.c.b16 %v2574, %v2566
        %v2975 = vpack.c.b16 %v2583, %v2575
        %v2976 = vpack.c.b16 %v2584, %v2576
        %v2977 = vpack.c.b16 %v2585, %v2577
        %v2978 = vpack.c.b16 %v2586, %v2578
        %v2979 = vpack.c.b16 %v2587, %v2579
        %v2980 = vpack.c.b16 %v2588, %v2580
        %v2981 = vpack.c.b16 %v2589, %v2581
        %v2982 = vpack.c.b16 %v2590, %v2582
        %v2983 = vpack.c.b16 %v2599, %v2591
        %v2984 = vpack.c.b16 %v2600, %v2592
        %v2985 = vpack.c.b16 %v2601, %v2593
        %v2986 = vpack.c.b16 %v2602, %v2594
        %v2987 = vpack.c.b16 %v2603, %v2595
        %v2988 = vpack.c.b16 %v2604, %v2596
        %v2989 = vpack.c.b16 %v2605, %v2597
        %v2990 = vpack.c.b16 %v2606, %v2598
        %v2991 = vpack.c.b16 %v2615, %v2607
        %v2992 = vpack.c.b16 %v2616, %v2608
        %v2993 = vpack.c.b16 %v2617, %v2609
        %v2994 = vpack.c.b16 %v2618, %v2610
        %v2995 = vpack.c.b16 %v2619, %v2611
        %v2996 = vpack.c.b16 %v2620, %v2612
        %v2997 = vpack.c.b16 %v2621, %v2613
        %v2998 = vpack.c.b16 %v2622, %v2614
        %v2999 = vpack.c.b16 %v2631, %v2623
        %v3000 = vpack.c.b16 %v2632, %v2624
        %v3001 = vpack.c.b16 %v2633, %v2625
        %v3002 = vpack.c.b16 %v2634, %v2626
        %v3003 = vpack.c.b16 %v2635, %v2627
        %v3004 = vpack.c.b16 %v2636, %v2628
        %v3005 = vpack.c.b16 %v2637, %v2629
        %v3006 = vpack.c.b16 %v2638, %v2630
        %v3007 = vpack.c.b16 %v2647, %v2639
        %v3008 = vpack.c.b16 %v2648, %v2640
        %v3009 = vpack.c.b16 %v2649, %v2641
        %v3010 = vpack.c.b16 %v2650, %v2642
        %v3011 = vpack.c.b16 %v2651, %v2643
        %v3012 = vpack.c.b16 %v2652, %v2644
        %v3013 = vpack.c.b16 %v2653, %v2645
        %v3014 = vpack.c.b16 %v2654, %v2646
        %v3015 = vpack.c.b16 %v2663, %v2655
        %v3016 = vpack.c.b16 %v2664, %v2656
        %v3017 = vpack.c.b16 %v2665, %v2657
        %v3018 = vpack.c.b16 %v2666, %v2658
        %v3019 = vpack.c.b16 %v2667, %v2659
        %v3020 = vpack.c.b16 %v2668, %v2660
        %v3021 = vpack.c.b16 %v2669, %v2661
        %v3022 = vpack.c.b16 %v2670, %v2662
        %v3023 = vpack.c.b16 %v2679, %v2671
        %v3024 = vpack.c.b16 %v2680, %v2672
        %v3025 = vpack.c.b16 %v2681, %v2673
        %v3026 = vpack.c.b16 %v2682, %v2674
        %v3027 = vpack.c.b16 %v2683, %v2675
        %v3028 = vpack.c.b16 %v2684, %v2676
        %v3029 = vpack.c.b16 %v2685, %v2677
        %v3030 = vpack.c.b16 %v2686, %v2678
        %v3031 = vpack.c.b16 %v2695, %v2687
        %v3032 = vpack.c.b16 %v2696, %v2688
        %v3033 = vpack.c.b16 %v2697, %v2689
        %v3034 = vpack.c.b16 %v2698, %v2690
        %v3035 = vpack.c.b16 %v2699, %v2691
        %v3036 = vpack.c.b16 %v2700, %v2692
        %v3037 = vpack.c.b16 %v2701, %v2693
        %v3038 = vpack.c.b16 %v2702, %v2694
        %v3039 = vpack.c.b16 %v2711, %v2703
        %v3040 = vpack.c.b16 %v2712, %v2704
        %v3041 = vpack.c.b16 %v2713, %v2705
        %v3042 = vpack.c.b16 %v2714, %v2706
        %v3043 = vpack.c.b16 %v2715, %v2707
        %v3044 = vpack.c.b16 %v2716, %v2708
        %v3045 = vpack.c.b16 %v2717, %v2709
        %v3046 = vpack.c.b16 %v2718, %v2710
        %v3047 = vpack.c.b16 %v2727, %v2719
        %v3048 = vpack.c.b16 %v2728, %v2720
        %v3049 = vpack.c.b16 %v2729, %v2721
        %v3050 = vpack.c.b16 %v2730, %v2722
        %v3051 = vpack.c.b16 %v2731, %v2723
        %v3052 = vpack.c.b16 %v2732, %v2724
        %v3053 = vpack.c.b16 %v2733, %v2725
        %v3054 = vpack.c.b16 %v2734, %v2726
        %v3055 = vpack.c.b16 %v2743, %v2735
        %v3056 = vpack.c.b16 %v2744, %v2736
        %v3057 = vpack.c.b16 %v2745, %v2737
        %v3058 = vpack.c.b16 %v2746, %v2738
        %v3059 = vpack.c.b16 %v2747, %v2739
        %v3060 = vpack.c.b16 %v2748, %v2740
        %v3061 = vpack.c.b16 %v2749, %v2741
        %v3062 = vpack.c.b16 %v2750, %v2742
        %v3063 = vpack.c.b16 %v2759, %v2751
        %v3064 = vpack.c.b16 %v2760, %v2752
        %v3065 = vpack.c.b16 %v2761, %v2753
        %v3066 = vpack.c.b16 %v2762, %v2754
        %v3067 = vpack.c.b16 %v2763, %v2755
        %v3068 = vpack.c.b16 %v2764, %v2756
        %v3069 = vpack.c.b16 %v2765, %v2757
        %v3070 = vpack.c.b16 %v2766, %v2758
        %v3071 = vpack.c.b16 %v2775, %v2767
        %v3072 = vpack.c.b16 %v2776, %v2768
        %v3073 = vpack.c.b16 %v2777, %v2769
        %v3074 = vpack.c.b16 %v2778, %v2770
        %v3075 = vpack.c.b16 %v2779, %v2771
        %v3076 = vpack.c.b16 %v2780, %v2772
        %v3077 = vpack.c.b16 %v2781, %v2773
        %v3078 = vpack.c.b16 %v2782, %v2774
        %v3079 = vpack.c.b16 %v2791, %v2783
        %v3080 = vpack.c.b16 %v2792, %v2784
        %v3081 = vpack.c.b16 %v2793, %v2785
        %v3082 = vpack.c.b16 %v2794, %v2786
        %v3083 = vpack.c.b16 %v2795, %v2787
        %v3084 = vpack.c.b16 %v2796, %v2788
        %v3085 = vpack.c.b16 %v2797, %v2789
        %v3086 = vpack.c.b16 %v2798, %v2790
        %v3087 = vpack.c.b16 %v2807, %v2799
        %v3088 = vpack.c.b16 %v2808, %v2800
        %v3089 = vpack.c.b16 %v2809, %v2801
        %v3090 = vpack.c.b16 %v2810, %v2802
        %v3091 = vpack.c.b16 %v2811, %v2803
        %v3092 = vpack.c.b16 %v2812, %v2804
        %v3093 = vpack.c.b16 %v2813, %v2805
        %v3094 = vpack.c.b16 %v2814, %v2806
        %v3095 = vpack.c.b16 %v2823, %v2815
        %v3096 = vpack.c.b16 %v2824, %v2816
        %v3097 = vpack.c.b16 %v2825, %v2817
        %v3098 = vpack.c.b16 %v2826, %v2818
        %v3099 = vpack.c.b16 %v2827, %v2819
        %v3100 = vpack.c.b16 %v2828, %v2820
        %v3101 = vpack.c.b16 %v2829, %v2821
        %v3102 = vpack.c.b16 %v2830, %v2822
        %v3103 = vpack.c.b16 %v2839, %v2831
        %v3104 = vpack.c.b16 %v2840, %v2832
        %v3105 = vpack.c.b16 %v2841, %v2833
        %v3106 = vpack.c.b16 %v2842, %v2834
        %v3107 = vpack.c.b16 %v2843, %v2835
        %v3108 = vpack.c.b16 %v2844, %v2836
        %v3109 = vpack.c.b16 %v2845, %v2837
        %v3110 = vpack.c.b16 %v2846, %v2838
        %v3111 = vpack.c.b16 %v2855, %v2847
        %v3112 = vpack.c.b16 %v2856, %v2848
        %v3113 = vpack.c.b16 %v2857, %v2849
        %v3114 = vpack.c.b16 %v2858, %v2850
        %v3115 = vpack.c.b16 %v2859, %v2851
        %v3116 = vpack.c.b16 %v2860, %v2852
        %v3117 = vpack.c.b16 %v2861, %v2853
        %v3118 = vpack.c.b16 %v2862, %v2854
        %3375 = vmatprep.subr.bf16.mxu0 %v2920
        %3376 = vmatpush1.bf16.msra.mxu0 %v2919
        %3377 = vmatprep.subr.bf16.mxu0 %v2912
        %3378 = vmatpush1.bf16.msra.mxu0 %v2911
        %3379 = vmatprep.subr.bf16.mxu0 %v2904
        %3380 = vmatpush1.bf16.msra.mxu0 %v2903
        %3381 = vmatprep.subr.bf16.mxu0 %v2896
        %3382 = vmatpush1.bf16.msra.mxu0 %v2895
        %3383 = vmatprep.subr.bf16.mxu0 %v2888
        %3384 = vmatpush1.bf16.msra.mxu0 %v2887
        %3385 = vmatprep.subr.bf16.mxu0 %v2880
        %3386 = vmatpush1.bf16.msra.mxu0 %v2879
        %3387 = vmatprep.subr.bf16.mxu0 %v2872
        %3388 = vmatpush1.bf16.msra.mxu0 %v2871
        %3389 = vmatprep.subr.bf16.mxu0 %v2864
        %3390 = vmatpush1.bf16.msra.mxu0 %v2863
        %3391 = vmatprep.subr.bf16.mxu0 %v2984
        %3392 = vmatpush2.bf16.msra.mxu0 %v2983
        %3393 = vmatprep.subr.bf16.mxu0 %v2976
        %3394 = vmatpush2.bf16.msra.mxu0 %v2975
        %3395 = vmatprep.subr.bf16.mxu0 %v2968
        %3396 = vmatpush2.bf16.msra.mxu0 %v2967
        %3397 = vmatprep.subr.bf16.mxu0 %v2960
        %3398 = vmatpush2.bf16.msra.mxu0 %v2959
        %3399 = vmatprep.subr.bf16.mxu0 %v2952
        %3400 = vmatpush2.bf16.msra.mxu0 %v2951
        %3401 = vmatprep.subr.bf16.mxu0 %v2944
        %3402 = vmatpush2.bf16.msra.mxu0 %v2943
        %3403 = vmatprep.subr.bf16.mxu0 %v2936
        %3404 = vmatpush2.bf16.msra.mxu0 %v2935
        %3405 = vmatprep.subr.bf16.mxu0 %v2928
        %3406 = vmatpush2.bf16.msra.mxu0 %v2927
        %3407 = vmatprep.mubr.bf16.mxu0 %v1794
        %3408 = vmatmul.mubr.bf16.gmra.mxu0 %v1793
        %v3409 = vpop.f32.mrf.mxu0
        %v3410 = vadd.f32 %v2058, %v3409
        %v3411 = vpop.f32.mrf.mxu0
        %v3412 = vadd.f32 %v2062, %v3411
        %v3413 = vpop.f32.mrf.mxu0
        %v3414 = vadd.f32 %v2058, %v3413
        %v3415 = vpop.f32.mrf.mxu0
        %v3416 = vadd.f32 %v2062, %v3415
        %3417 = vdwg.mxu0
        %3418 = vmatprep.subr.bf16.mxu0 %v3048
        %3419 = vmatpush1.bf16.msra.mxu0 %v3047
        %3420 = vmatprep.subr.bf16.mxu0 %v3040
        %3421 = vmatpush1.bf16.msra.mxu0 %v3039
        %3422 = vmatprep.subr.bf16.mxu0 %v3032
        %3423 = vmatpush1.bf16.msra.mxu0 %v3031
        %3424 = vmatprep.subr.bf16.mxu0 %v3024
        %3425 = vmatpush1.bf16.msra.mxu0 %v3023
        %3426 = vmatprep.subr.bf16.mxu0 %v3016
        %3427 = vmatpush1.bf16.msra.mxu0 %v3015
        %3428 = vmatprep.subr.bf16.mxu0 %v3008
        %3429 = vmatpush1.bf16.msra.mxu0 %v3007
        %3430 = vmatprep.subr.bf16.mxu0 %v3000
        %3431 = vmatpush1.bf16.msra.mxu0 %v2999
        %3432 = vmatprep.subr.bf16.mxu0 %v2992
        %3433 = vmatpush1.bf16.msra.mxu0 %v2991
        %3434 = vmatprep.subr.bf16.mxu0 %v3112
        %3435 = vmatpush2.bf16.msra.mxu0 %v3111
        %3436 = vmatprep.subr.bf16.mxu0 %v3104
        %3437 = vmatpush2.bf16.msra.mxu0 %v3103
        %3438 = vmatprep.subr.bf16.mxu0 %v3096
        %3439 = vmatpush2.bf16.msra.mxu0 %v3095
        %3440 = vmatprep.subr.bf16.mxu0 %v3088
        %3441 = vmatpush2.bf16.msra.mxu0 %v3087
        %3442 = vmatprep.subr.bf16.mxu0 %v3080
        %3443 = vmatpush2.bf16.msra.mxu0 %v3079
        %3444 = vmatprep.subr.bf16.mxu0 %v3072
        %3445 = vmatpush2.bf16.msra.mxu0 %v3071
        %3446 = vmatprep.subr.bf16.mxu0 %v3064
        %3447 = vmatpush2.bf16.msra.mxu0 %v3063
        %3448 = vmatprep.subr.bf16.mxu0 %v3056
        %3449 = vmatpush2.bf16.msra.mxu0 %v3055
        %3450 = vmatprep.mubr.bf16.mxu0 %v1796
        %3451 = vmatmul.mubr.bf16.gmra.mxu0 %v1795
        %v3452 = vpop.f32.mrf.mxu0
        %v3453 = vadd.f32 %v3410, %v3452
        %v3454 = vpop.f32.mrf.mxu0
        %v3455 = vadd.f32 %v3412, %v3454
        %v3456 = vpop.f32.mrf.mxu0
        %v3457 = vadd.f32 %v3414, %v3456
        %v3458 = vpop.f32.mrf.mxu0
        %v3459 = vadd.f32 %v3416, %v3458
        %3460 = vdwg.mxu0
        %3461 = vmatprep.subr.bf16.mxu0 %v2922
        %3462 = vmatpush1.bf16.msra.mxu0 %v2921
        %3463 = vmatprep.subr.bf16.mxu0 %v2914
        %3464 = vmatpush1.bf16.msra.mxu0 %v2913
        %3465 = vmatprep.subr.bf16.mxu0 %v2906
        %3466 = vmatpush1.bf16.msra.mxu0 %v2905
        %3467 = vmatprep.subr.bf16.mxu0 %v2898
        %3468 = vmatpush1.bf16.msra.mxu0 %v2897
        %3469 = vmatprep.subr.bf16.mxu0 %v2890
        %3470 = vmatpush1.bf16.msra.mxu0 %v2889
        %3471 = vmatprep.subr.bf16.mxu0 %v2882
        %3472 = vmatpush1.bf16.msra.mxu0 %v2881
        %3473 = vmatprep.subr.bf16.mxu0 %v2874
        %3474 = vmatpush1.bf16.msra.mxu0 %v2873
        %3475 = vmatprep.subr.bf16.mxu0 %v2866
        %3476 = vmatpush1.bf16.msra.mxu0 %v2865
        %3477 = vmatprep.subr.bf16.mxu0 %v2986
        %3478 = vmatpush2.bf16.msra.mxu0 %v2985
        %3479 = vmatprep.subr.bf16.mxu0 %v2978
        %3480 = vmatpush2.bf16.msra.mxu0 %v2977
        %3481 = vmatprep.subr.bf16.mxu0 %v2970
        %3482 = vmatpush2.bf16.msra.mxu0 %v2969
        %3483 = vmatprep.subr.bf16.mxu0 %v2962
        %3484 = vmatpush2.bf16.msra.mxu0 %v2961
        %3485 = vmatprep.subr.bf16.mxu0 %v2954
        %3486 = vmatpush2.bf16.msra.mxu0 %v2953
        %3487 = vmatprep.subr.bf16.mxu0 %v2946
        %3488 = vmatpush2.bf16.msra.mxu0 %v2945
        %3489 = vmatprep.subr.bf16.mxu0 %v2938
        %3490 = vmatpush2.bf16.msra.mxu0 %v2937
        %3491 = vmatprep.subr.bf16.mxu0 %v2930
        %3492 = vmatpush2.bf16.msra.mxu0 %v2929
        %3493 = vmatprep.mubr.bf16.mxu0 %v1794
        %3494 = vmatmul.mubr.bf16.gmra.mxu0 %v1793
        %v3495 = vpop.f32.mrf.mxu0
        %v3496 = vadd.f32 %v2066, %v3495
        %v3497 = vpop.f32.mrf.mxu0
        %v3498 = vadd.f32 %v2070, %v3497
        %v3499 = vpop.f32.mrf.mxu0
        %v3500 = vadd.f32 %v2066, %v3499
        %v3501 = vpop.f32.mrf.mxu0
        %v3502 = vadd.f32 %v2070, %v3501
        %3503 = vdwg.mxu0
        %3504 = vmatprep.subr.bf16.mxu0 %v3050
        %3505 = vmatpush1.bf16.msra.mxu0 %v3049
        %3506 = vmatprep.subr.bf16.mxu0 %v3042
        %3507 = vmatpush1.bf16.msra.mxu0 %v3041
        %3508 = vmatprep.subr.bf16.mxu0 %v3034
        %3509 = vmatpush1.bf16.msra.mxu0 %v3033
        %3510 = vmatprep.subr.bf16.mxu0 %v3026
        %3511 = vmatpush1.bf16.msra.mxu0 %v3025
        %3512 = vmatprep.subr.bf16.mxu0 %v3018
        %3513 = vmatpush1.bf16.msra.mxu0 %v3017
        %3514 = vmatprep.subr.bf16.mxu0 %v3010
        %3515 = vmatpush1.bf16.msra.mxu0 %v3009
        %3516 = vmatprep.subr.bf16.mxu0 %v3002
        %3517 = vmatpush1.bf16.msra.mxu0 %v3001
        %3518 = vmatprep.subr.bf16.mxu0 %v2994
        %3519 = vmatpush1.bf16.msra.mxu0 %v2993
        %3520 = vmatprep.subr.bf16.mxu0 %v3114
        %3521 = vmatpush2.bf16.msra.mxu0 %v3113
        %3522 = vmatprep.subr.bf16.mxu0 %v3106
        %3523 = vmatpush2.bf16.msra.mxu0 %v3105
        %3524 = vmatprep.subr.bf16.mxu0 %v3098
        %3525 = vmatpush2.bf16.msra.mxu0 %v3097
        %3526 = vmatprep.subr.bf16.mxu0 %v3090
        %3527 = vmatpush2.bf16.msra.mxu0 %v3089
        %3528 = vmatprep.subr.bf16.mxu0 %v3082
        %3529 = vmatpush2.bf16.msra.mxu0 %v3081
        %3530 = vmatprep.subr.bf16.mxu0 %v3074
        %3531 = vmatpush2.bf16.msra.mxu0 %v3073
        %3532 = vmatprep.subr.bf16.mxu0 %v3066
        %3533 = vmatpush2.bf16.msra.mxu0 %v3065
        %3534 = vmatprep.subr.bf16.mxu0 %v3058
        %3535 = vmatpush2.bf16.msra.mxu0 %v3057
        %3536 = vmatprep.mubr.bf16.mxu0 %v1796
        %3537 = vmatmul.mubr.bf16.gmra.mxu0 %v1795
        %v3538 = vpop.f32.mrf.mxu0
        %v3539 = vadd.f32 %v3496, %v3538
        %v3540 = vpop.f32.mrf.mxu0
        %v3541 = vadd.f32 %v3498, %v3540
        %v3542 = vpop.f32.mrf.mxu0
        %v3543 = vadd.f32 %v3500, %v3542
        %v3544 = vpop.f32.mrf.mxu0
        %v3545 = vadd.f32 %v3502, %v3544
        %3546 = vdwg.mxu0
        %3547 = vmatprep.subr.bf16.mxu0 %v2924
        %3548 = vmatpush1.bf16.msra.mxu0 %v2923
        %3549 = vmatprep.subr.bf16.mxu0 %v2916
        %3550 = vmatpush1.bf16.msra.mxu0 %v2915
        %3551 = vmatprep.subr.bf16.mxu0 %v2908
        %3552 = vmatpush1.bf16.msra.mxu0 %v2907
        %3553 = vmatprep.subr.bf16.mxu0 %v2900
        %3554 = vmatpush1.bf16.msra.mxu0 %v2899
        %3555 = vmatprep.subr.bf16.mxu0 %v2892
        %3556 = vmatpush1.bf16.msra.mxu0 %v2891
        %3557 = vmatprep.subr.bf16.mxu0 %v2884
        %3558 = vmatpush1.bf16.msra.mxu0 %v2883
        %3559 = vmatprep.subr.bf16.mxu0 %v2876
        %3560 = vmatpush1.bf16.msra.mxu0 %v2875
        %3561 = vmatprep.subr.bf16.mxu0 %v2868
        %3562 = vmatpush1.bf16.msra.mxu0 %v2867
        %3563 = vmatprep.subr.bf16.mxu0 %v2988
        %3564 = vmatpush2.bf16.msra.mxu0 %v2987
        %3565 = vmatprep.subr.bf16.mxu0 %v2980
        %3566 = vmatpush2.bf16.msra.mxu0 %v2979
        %3567 = vmatprep.subr.bf16.mxu0 %v2972
        %3568 = vmatpush2.bf16.msra.mxu0 %v2971
        %3569 = vmatprep.subr.bf16.mxu0 %v2964
        %3570 = vmatpush2.bf16.msra.mxu0 %v2963
        %3571 = vmatprep.subr.bf16.mxu0 %v2956
        %3572 = vmatpush2.bf16.msra.mxu0 %v2955
        %3573 = vmatprep.subr.bf16.mxu0 %v2948
        %3574 = vmatpush2.bf16.msra.mxu0 %v2947
        %3575 = vmatprep.subr.bf16.mxu0 %v2940
        %3576 = vmatpush2.bf16.msra.mxu0 %v2939
        %3577 = vmatprep.subr.bf16.mxu0 %v2932
        %3578 = vmatpush2.bf16.msra.mxu0 %v2931
        %3579 = vmatprep.mubr.bf16.mxu0 %v1794
        %3580 = vmatmul.mubr.bf16.gmra.mxu0 %v1793
        %v3581 = vpop.f32.mrf.mxu0
        %v3582 = vadd.f32 %v2074, %v3581
        %v3583 = vpop.f32.mrf.mxu0
        %v3584 = vadd.f32 %v2078, %v3583
        %v3585 = vpop.f32.mrf.mxu0
        %v3586 = vadd.f32 %v2074, %v3585
        %v3587 = vpop.f32.mrf.mxu0
        %v3588 = vadd.f32 %v2078, %v3587
        %3589 = vdwg.mxu0
        %3590 = vmatprep.subr.bf16.mxu0 %v3052
        %3591 = vmatpush1.bf16.msra.mxu0 %v3051
        %3592 = vmatprep.subr.bf16.mxu0 %v3044
        %3593 = vmatpush1.bf16.msra.mxu0 %v3043
        %3594 = vmatprep.subr.bf16.mxu0 %v3036
        %3595 = vmatpush1.bf16.msra.mxu0 %v3035
        %3596 = vmatprep.subr.bf16.mxu0 %v3028
        %3597 = vmatpush1.bf16.msra.mxu0 %v3027
        %3598 = vmatprep.subr.bf16.mxu0 %v3020
        %3599 = vmatpush1.bf16.msra.mxu0 %v3019
        %3600 = vmatprep.subr.bf16.mxu0 %v3012
        %3601 = vmatpush1.bf16.msra.mxu0 %v3011
        %3602 = vmatprep.subr.bf16.mxu0 %v3004
        %3603 = vmatpush1.bf16.msra.mxu0 %v3003
        %3604 = vmatprep.subr.bf16.mxu0 %v2996
        %3605 = vmatpush1.bf16.msra.mxu0 %v2995
        %3606 = vmatprep.subr.bf16.mxu0 %v3116
        %3607 = vmatpush2.bf16.msra.mxu0 %v3115
        %3608 = vmatprep.subr.bf16.mxu0 %v3108
        %3609 = vmatpush2.bf16.msra.mxu0 %v3107
        %3610 = vmatprep.subr.bf16.mxu0 %v3100
        %3611 = vmatpush2.bf16.msra.mxu0 %v3099
        %3612 = vmatprep.subr.bf16.mxu0 %v3092
        %3613 = vmatpush2.bf16.msra.mxu0 %v3091
        %3614 = vmatprep.subr.bf16.mxu0 %v3084
        %3615 = vmatpush2.bf16.msra.mxu0 %v3083
        %3616 = vmatprep.subr.bf16.mxu0 %v3076
        %3617 = vmatpush2.bf16.msra.mxu0 %v3075
        %3618 = vmatprep.subr.bf16.mxu0 %v3068
        %3619 = vmatpush2.bf16.msra.mxu0 %v3067
        %3620 = vmatprep.subr.bf16.mxu0 %v3060
        %3621 = vmatpush2.bf16.msra.mxu0 %v3059
        %3622 = vmatprep.mubr.bf16.mxu0 %v1796
        %3623 = vmatmul.mubr.bf16.gmra.mxu0 %v1795
        %v3624 = vpop.f32.mrf.mxu0
        %v3625 = vadd.f32 %v3582, %v3624
        %v3626 = vpop.f32.mrf.mxu0
        %v3627 = vadd.f32 %v3584, %v3626
        %v3628 = vpop.f32.mrf.mxu0
        %v3629 = vadd.f32 %v3586, %v3628
        %v3630 = vpop.f32.mrf.mxu0
        %v3631 = vadd.f32 %v3588, %v3630
        %3632 = vdwg.mxu0
        %3633 = vmatprep.subr.bf16.mxu0 %v2926
        %3634 = vmatpush1.bf16.msra.mxu0 %v2925
        %3635 = vmatprep.subr.bf16.mxu0 %v2918
        %3636 = vmatpush1.bf16.msra.mxu0 %v2917
        %3637 = vmatprep.subr.bf16.mxu0 %v2910
        %3638 = vmatpush1.bf16.msra.mxu0 %v2909
        %3639 = vmatprep.subr.bf16.mxu0 %v2902
        %3640 = vmatpush1.bf16.msra.mxu0 %v2901
        %3641 = vmatprep.subr.bf16.mxu0 %v2894
        %3642 = vmatpush1.bf16.msra.mxu0 %v2893
        %3643 = vmatprep.subr.bf16.mxu0 %v2886
        %3644 = vmatpush1.bf16.msra.mxu0 %v2885
        %3645 = vmatprep.subr.bf16.mxu0 %v2878
        %3646 = vmatpush1.bf16.msra.mxu0 %v2877
        %3647 = vmatprep.subr.bf16.mxu0 %v2870
        %3648 = vmatpush1.bf16.msra.mxu0 %v2869
        %3649 = vmatprep.subr.bf16.mxu0 %v2990
        %3650 = vmatpush2.bf16.msra.mxu0 %v2989
        %3651 = vmatprep.subr.bf16.mxu0 %v2982
        %3652 = vmatpush2.bf16.msra.mxu0 %v2981
        %3653 = vmatprep.subr.bf16.mxu0 %v2974
        %3654 = vmatpush2.bf16.msra.mxu0 %v2973
        %3655 = vmatprep.subr.bf16.mxu0 %v2966
        %3656 = vmatpush2.bf16.msra.mxu0 %v2965
        %3657 = vmatprep.subr.bf16.mxu0 %v2958
        %3658 = vmatpush2.bf16.msra.mxu0 %v2957
        %3659 = vmatprep.subr.bf16.mxu0 %v2950
        %3660 = vmatpush2.bf16.msra.mxu0 %v2949
        %3661 = vmatprep.subr.bf16.mxu0 %v2942
        %3662 = vmatpush2.bf16.msra.mxu0 %v2941
        %3663 = vmatprep.subr.bf16.mxu0 %v2934
        %3664 = vmatpush2.bf16.msra.mxu0 %v2933
        %3665 = vmatprep.mubr.bf16.mxu0 %v1794
        %3666 = vmatmul.mubr.bf16.gmra.mxu0 %v1793
        %v3667 = vpop.f32.mrf.mxu0
        %v3668 = vadd.f32 %v2082, %v3667
        %v3669 = vpop.f32.mrf.mxu0
        %v3670 = vadd.f32 %v2086, %v3669
        %v3671 = vpop.f32.mrf.mxu0
        %v3672 = vadd.f32 %v2082, %v3671
        %v3673 = vpop.f32.mrf.mxu0
        %v3674 = vadd.f32 %v2086, %v3673
        %3675 = vdwg.mxu0
        %3676 = vmatprep.subr.bf16.mxu0 %v3054
        %3677 = vmatpush1.bf16.msra.mxu0 %v3053
        %3678 = vmatprep.subr.bf16.mxu0 %v3046
        %3679 = vmatpush1.bf16.msra.mxu0 %v3045
        %3680 = vmatprep.subr.bf16.mxu0 %v3038
        %3681 = vmatpush1.bf16.msra.mxu0 %v3037
        %3682 = vmatprep.subr.bf16.mxu0 %v3030
        %3683 = vmatpush1.bf16.msra.mxu0 %v3029
        %3684 = vmatprep.subr.bf16.mxu0 %v3022
        %3685 = vmatpush1.bf16.msra.mxu0 %v3021
        %3686 = vmatprep.subr.bf16.mxu0 %v3014
        %3687 = vmatpush1.bf16.msra.mxu0 %v3013
        %3688 = vmatprep.subr.bf16.mxu0 %v3006
        %3689 = vmatpush1.bf16.msra.mxu0 %v3005
        %3690 = vmatprep.subr.bf16.mxu0 %v2998
        %3691 = vmatpush1.bf16.msra.mxu0 %v2997
        %3692 = vmatprep.subr.bf16.mxu0 %v3118
        %3693 = vmatpush2.bf16.msra.mxu0 %v3117
        %3694 = vmatprep.subr.bf16.mxu0 %v3110
        %3695 = vmatpush2.bf16.msra.mxu0 %v3109
        %3696 = vmatprep.subr.bf16.mxu0 %v3102
        %3697 = vmatpush2.bf16.msra.mxu0 %v3101
        %3698 = vmatprep.subr.bf16.mxu0 %v3094
        %3699 = vmatpush2.bf16.msra.mxu0 %v3093
        %3700 = vmatprep.subr.bf16.mxu0 %v3086
        %3701 = vmatpush2.bf16.msra.mxu0 %v3085
        %3702 = vmatprep.subr.bf16.mxu0 %v3078
        %3703 = vmatpush2.bf16.msra.mxu0 %v3077
        %3704 = vmatprep.subr.bf16.mxu0 %v3070
        %3705 = vmatpush2.bf16.msra.mxu0 %v3069
        %3706 = vmatprep.subr.bf16.mxu0 %v3062
        %3707 = vmatpush2.bf16.msra.mxu0 %v3061
        %3708 = vmatprep.mubr.bf16.mxu0 %v1796
        %3709 = vmatmul.mubr.bf16.gmra.mxu0 %v1795
        %v3710 = vpop.f32.mrf.mxu0
        %v3711 = vadd.f32 %v3668, %v3710
        %v3712 = vpop.f32.mrf.mxu0
        %v3713 = vadd.f32 %v3670, %v3712
        %v3714 = vpop.f32.mrf.mxu0
        %v3715 = vadd.f32 %v3672, %v3714
        %v3716 = vpop.f32.mrf.mxu0
        %v3717 = vadd.f32 %v3674, %v3716
        %3718 = vdwg.mxu0
        %v3719 = vmax.f32 %v3453, -30.0
        %v3720 = vmax.f32 %v3455, -30.0
        %v3721 = vmax.f32 %v3539, -30.0
        %v3722 = vmax.f32 %v3541, -30.0
        %v3723 = vmax.f32 %v3625, -30.0
        %v3724 = vmax.f32 %v3627, -30.0
        %v3725 = vmax.f32 %v3711, -30.0
        %v3726 = vmax.f32 %v3713, -30.0
        %v3727 = vmax.f32 %v3457, -30.0
        %v3728 = vmax.f32 %v3459, -30.0
        %v3729 = vmax.f32 %v3543, -30.0
        %v3730 = vmax.f32 %v3545, -30.0
        %v3731 = vmax.f32 %v3629, -30.0
        %v3732 = vmax.f32 %v3631, -30.0
        %v3733 = vmax.f32 %v3715, -30.0
        %v3734 = vmax.f32 %v3717, -30.0
        %v3735 = vsub.f32 0.0, %v3719
        %v3736 = vsub.f32 0.0, %v3720
        %v3737 = vsub.f32 0.0, %v3721
        %v3738 = vsub.f32 0.0, %v3722
        %v3739 = vsub.f32 0.0, %v3723
        %v3740 = vsub.f32 0.0, %v3724
        %v3741 = vsub.f32 0.0, %v3725
        %v3742 = vsub.f32 0.0, %v3726
        %v3743 = vsub.f32 0.0, %v3727
        %v3744 = vsub.f32 0.0, %v3728
        %v3745 = vsub.f32 0.0, %v3729
        %v3746 = vsub.f32 0.0, %v3730
        %v3747 = vsub.f32 0.0, %v3731
        %v3748 = vsub.f32 0.0, %v3732
        %v3749 = vsub.f32 0.0, %v3733
        %v3750 = vsub.f32 0.0, %v3734
        %v3751 = vmul.f32 %v3735, 1.442695
        %v3752 = vpow.pop %v3751
        %v3753 = vmul.f32 %v3736, 1.442695
        %v3754 = vpow.pop %v3753
        %v3755 = vmul.f32 %v3737, 1.442695
        %v3756 = vpow.pop %v3755
        %v3757 = vmul.f32 %v3738, 1.442695
        %v3758 = vpow.pop %v3757
        %v3759 = vmul.f32 %v3739, 1.442695
        %v3760 = vpow.pop %v3759
        %v3761 = vmul.f32 %v3740, 1.442695
        %v3762 = vpow.pop %v3761
        %v3763 = vmul.f32 %v3741, 1.442695
        %v3764 = vpow.pop %v3763
        %v3765 = vmul.f32 %v3742, 1.442695
        %v3766 = vpow.pop %v3765
        %v3767 = vmul.f32 %v3743, 1.442695
        %v3768 = vpow.pop %v3767
        %v3769 = vmul.f32 %v3744, 1.442695
        %v3770 = vpow.pop %v3769
        %v3771 = vmul.f32 %v3745, 1.442695
        %v3772 = vpow.pop %v3771
        %v3773 = vmul.f32 %v3746, 1.442695
        %v3774 = vpow.pop %v3773
        %v3775 = vmul.f32 %v3747, 1.442695
        %v3776 = vpow.pop %v3775
        %v3777 = vmul.f32 %v3748, 1.442695
        %v3778 = vpow.pop %v3777
        %v3779 = vmul.f32 %v3749, 1.442695
        %v3780 = vpow.pop %v3779
        %v3781 = vmul.f32 %v3750, 1.442695
        %v3782 = vpow.pop %v3781
        %v3783 = vadd.f32 %v3752, 1.0
        %v3784 = vadd.f32 %v3754, 1.0
        %v3785 = vadd.f32 %v3756, 1.0
        %v3786 = vadd.f32 %v3758, 1.0
        %v3787 = vadd.f32 %v3760, 1.0
        %v3788 = vadd.f32 %v3762, 1.0
        %v3789 = vadd.f32 %v3764, 1.0
        %v3790 = vadd.f32 %v3766, 1.0
        %v3791 = vadd.f32 %v3768, 1.0
        %v3792 = vadd.f32 %v3770, 1.0
        %v3793 = vadd.f32 %v3772, 1.0
        %v3794 = vadd.f32 %v3774, 1.0
        %v3795 = vadd.f32 %v3776, 1.0
        %v3796 = vadd.f32 %v3778, 1.0
        %v3797 = vadd.f32 %v3780, 1.0
        %v3798 = vadd.f32 %v3782, 1.0
        %v3799 = vrcp.pop %v3783
        %v3800 = vrcp.pop %v3784
        %v3801 = vrcp.pop %v3785
        %v3802 = vrcp.pop %v3786
        %v3803 = vrcp.pop %v3787
        %v3804 = vrcp.pop %v3788
        %v3805 = vrcp.pop %v3789
        %v3806 = vrcp.pop %v3790
        %v3807 = vrcp.pop %v3791
        %v3808 = vrcp.pop %v3792
        %v3809 = vrcp.pop %v3793
        %v3810 = vrcp.pop %v3794
        %v3811 = vrcp.pop %v3795
        %v3812 = vrcp.pop %v3796
        %v3813 = vrcp.pop %v3797
        %v3814 = vrcp.pop %v3798
        %3815 = vst [vmem:[%s509] sm:$0xff] %v3799
        %3816 = vst [vmem:[%s509 + $0x8] sm:$0xff] %v3800
        %3817 = vst [vmem:[%s509 + $0x10] sm:$0xff] %v3801
        %3818 = vst [vmem:[%s509 + $0x18] sm:$0xff] %v3802
        %3819 = vst [vmem:[%s509 + $0x20] sm:$0xff] %v3803
        %3820 = vst [vmem:[%s509 + $0x28] sm:$0xff] %v3804
        %3821 = vst [vmem:[%s509 + $0x30] sm:$0xff] %v3805
        %3822 = vst [vmem:[%s509 + $0x38] sm:$0xff] %v3806
        %3823 = vst [vmem:[%s509 + $0x40] sm:$0xff] %v3807
        %3824 = vst [vmem:[%s509 + $0x48] sm:$0xff] %v3808
        %3825 = vst [vmem:[%s509 + $0x50] sm:$0xff] %v3809
        %3826 = vst [vmem:[%s509 + $0x58] sm:$0xff] %v3810
        %3827 = vst [vmem:[%s509 + $0x60] sm:$0xff] %v3811
        %3828 = vst [vmem:[%s509 + $0x68] sm:$0xff] %v3812
        %3829 = vst [vmem:[%s509 + $0x70] sm:$0xff] %v3813
        %3830 = vst [vmem:[%s509 + $0x78] sm:$0xff] %v3814
        %s3831 = sand.u32 %s280, 1
        %s3832 = scalar_lea.sflag [#allocation4], %s3831
        %s3833 = sand.u32 %s280, 1
        %s3834 = smul.addr %s3833, 128
        %s3835 = scalar_lea.vmem [#allocation13], %s3834
        %s3836 = sand.u32 %s306, 1
        %s3837 = scalar_lea.sflag [#allocation15], %s3836
        %s3838 = sand.u32 %s306, 1
        %s3839 = smul.addr %s3838, 16
        %s3840 = scalar_lea.vmem [#allocation14], %s3839
        // Predicated region
        $region89: #{tpu_custom_call.1} parent=63 // pred_check
          %p3841 = pneg %p290
        $region90: #{tpu_custom_call.1} parent=63 // pred_check_branch
          %3843 = sbr.rel (%p3841) target = $region92
        $region91: #{tpu_custom_call.1} parent=63 // pred_region
          %s3844 = smul.u32 2, %s36
          %s3846 = ssub.s32 2048, 2048
          %3847 = vsyncadd %s3832, %s3846
          %s3848 = smul.addr %s3844, 8
          %s3849 = smul.addr %s3848, 128
          %s3850 = scalar_lea.hbm %s11, %s3849
          %s3851 = sshll.u32 %s3835, 4
          %s3852 = int_to_ptr.vmem [resolvable:$true] %s3851
          %3857 = dma.vmem_to_hbm [thread:$0]  %s3852, 2048, %s3850, %s3832, 1024, 1024, 64
        $region92: #{tpu_custom_call.1} parent=63 // pred_fallthru
          _
        // Predicated region
        $region93: #{tpu_custom_call.1} parent=63 // pred_check
          %p3858 = pneg %p316
        $region94: #{tpu_custom_call.1} parent=63 // pred_check_branch
          %3860 = sbr.rel (%p3858) target = $region96
        $region95: #{tpu_custom_call.1} parent=63 // pred_region
          %s3861 = smul.u32 2, %s36
          %s3863 = ssub.s32 256, 256
          %3864 = vsyncadd %s3837, %s3863
          %s3865 = smul.addr %s3861, 128
          %s3866 = scalar_lea.hbm %s12, %s3865
          %s3867 = sshll.u32 %s3840, 4
          %s3868 = int_to_ptr.vmem [resolvable:$true] %s3867
          %3873 = dma.vmem_to_hbm [thread:$0]  %s3868, 256, %s3866, %s3837, 128, 128, 8
        $region96: #{tpu_custom_call.1} parent=63 // pred_fallthru
          _
      $region64: #{tpu_custom_call.1} parent=5 // pred_fallthru
        _
      %p3874 = scmp.le.s32.totalorder 2, %s31
      // Predicated region
      $region97: #{tpu_custom_call.1} parent=5 // pred_check
        %p3875 = pneg %p3874
      $region98: #{tpu_custom_call.1} parent=5 // pred_check_branch
        %3877 = sbr.rel (%p3875) target = $region100
      $region99: #{tpu_custom_call.1} parent=5 // pred_region
        %s3878 = ssub.s32 %s31, 2
        // Predicated region
        $region101: #{tpu_custom_call.1} parent=99 // pred_check
          %p3879 = pneg %p296
        $region102: #{tpu_custom_call.1} parent=99 // pred_check_branch
          %3881 = sbr.rel (%p3879) target = $region104
        $region103: #{tpu_custom_call.1} parent=99 // pred_region
          %s3882 = sand.u32 %s281, 1
          %s3883 = scalar_lea.sflag [#allocation4], %s3882
          %s3884 = sand.u32 %s281, 1
          %s3885 = smul.addr %s3884, 128
          %s3886 = scalar_lea.vmem [#allocation13], %s3885
          %3887 = dma.done %s3883, 2048
        $region104: #{tpu_custom_call.1} parent=99 // pred_fallthru
          _
        // Predicated region
        $region105: #{tpu_custom_call.1} parent=99 // pred_check
          %p3888 = pneg %p322
        $region106: #{tpu_custom_call.1} parent=99 // pred_check_branch
          %3890 = sbr.rel (%p3888) target = $region108
        $region107: #{tpu_custom_call.1} parent=99 // pred_region
          %s3891 = sand.u32 %s307, 1
          %s3892 = scalar_lea.sflag [#allocation15], %s3891
          %s3893 = sand.u32 %s307, 1
          %s3894 = smul.addr %s3893, 16
          %s3895 = scalar_lea.vmem [#allocation14], %s3894
          %3896 = dma.done %s3892, 256
        $region108: #{tpu_custom_call.1} parent=99 // pred_fallthru
          _
      $region100: #{tpu_custom_call.1} parent=5 // pred_fallthru
        _
    $region6: #{tpu_custom_call.1} parent=1 // loop_footer
      %s35 = sadd.s32 1, %s31
    $region7: #{tpu_custom_call.1} parent=1 // loop_footer_branch
      %30 = sbr.rel target = $region3
    $region8: #{tpu_custom_call.1} parent=1 // loop_exit
      _
    %3897 = vsyncpa [#allocation3], 1
    %s3898 = scalar_lea.sflag [#allocation3], 1
    %3899 = vsyncpa %s3898, 1
    %3900 = vsyncpa [#allocation6], 1
    %3901 = vsyncpa [#allocation9], 1
    %3902 = vsyncpa [#allocation12], 1
    %3903 = vsyncpa [#allocation4], 1
    %s3904 = scalar_lea.sflag [#allocation4], 1
    %3905 = vsyncpa %s3904, 1
    %3906 = vsyncpa [#allocation15], 1
    %s3907 = scalar_lea.sflag [#allocation15], 1
    %3908 = vsyncpa %s3907, 1

</llo_original>
